<compile_context>
chip_gen: v6e
topology: v6e:2x2x1
jax: 0.10.0
libtpu: 0.0.40
codegen_flags: <defaults>
</compile_context>

<pallas_src>
import math
import functools

import jax
import jax.numpy as jnp
from jax import lax
from jax.experimental import pallas as pl
from jax.experimental.pallas import tpu as pltpu


_MASK = -1e30  # finite fill value: avoids NaN from exp(-inf - (-inf)) on fully-masked rows


def _gelu_exact(x):
    # PyTorch nn.GELU() default = exact erf formulation
    return 0.5 * x * (1.0 + lax.erf(x * jnp.float32(1.0 / math.sqrt(2.0))))


def _layernorm(h, gamma, beta, eps):
    mu = jnp.mean(h, axis=-1, keepdims=True)
    var = jnp.mean((h - mu) ** 2, axis=-1, keepdims=True)
    return (h - mu) * lax.rsqrt(var + eps) * gamma + beta


def transformer_block_kernel(
    xq_ref, xkv_ref, pm_ref,
    wq_ref, bq_ref, wk_ref, bk_ref, wv_ref, bv_ref, wfc_ref, bfc_ref,
    g1_ref, be1_ref, w1_ref, b1_ref, w2_ref, b2_ref, g2_ref, be2_ref,
    out_ref,
    q_sc, m_sc, l_sc, acc_sc,
    *, n_heads, d_k, eps, block_q, block_k,
):
    qi = pl.program_id(1)
    ki = pl.program_id(2)
    num_kv = pl.num_programs(2)

    cd = wq_ref.dtype                                        # compute dtype (bf16 or f32)
    approx = jnp.dtype(cd) == jnp.dtype(jnp.bfloat16)        # trace-time bool
    q_start = qi * block_q
    k_start = ki * block_k
    scale = jnp.float32(1.0 / math.sqrt(d_k))

    # --- per-query-tile init (first KV step): zero accumulators, project Q once ---
    @pl.when(ki == 0)
    def _init():
        m_sc[...] = jnp.full_like(m_sc, _MASK)
        l_sc[...] = jnp.zeros_like(l_sc)
        acc_sc[...] = jnp.zeros_like(acc_sc)
        q = jnp.dot(xq_ref[0].astype(cd), wq_ref[...],
                    preferred_element_type=jnp.float32) + bq_ref[...]
        q_sc[...] = jnp.swapaxes(
            q.reshape(block_q, n_heads, d_k), 0, 1).astype(q_sc.dtype)

    # --- online-softmax update; skip KV tiles fully in the causal future ---
    @pl.when(k_start <= q_start + block_q - 1)
    def _update():
        xkv = xkv_ref[0].astype(cd)                          # (TK, D)
        k = jnp.dot(xkv, wk_ref[...], preferred_element_type=jnp.float32) + bk_ref[...]
        v = jnp.dot(xkv, wv_ref[...], preferred_element_type=jnp.float32) + bv_ref[...]
        k3 = jnp.swapaxes(k.reshape(block_k, n_heads, d_k), 0, 1).astype(cd)  # (h,TK,dk)
        v3 = jnp.swapaxes(v.reshape(block_k, n_heads, d_k), 0, 1).astype(cd)
        q3 = q_sc[...]                                       # (h, TQ, dk)

        # All heads in one batched contraction -> (h, TQ, TK) f32 scores.
        s = jnp.einsum('hqd,hkd->hqk', q3, k3,
                       preferred_element_type=jnp.float32) * scale

        # Mask built once per (q,kv) tile, broadcast across heads.
        row = q_start + lax.broadcasted_iota(jnp.int32, (block_q, block_k), 0)
        col = k_start + lax.broadcasted_iota(jnp.int32, (block_q, block_k), 1)
        valid = (col <= row) & (pm_ref[0] > 0.5)             # (TQ, TK)
        s = jnp.where(valid[None, :, :], s, _MASK)

        m_prev = m_sc[...]
        m_new = jnp.maximum(m_prev, jnp.max(s, axis=-1, keepdims=True))
        alpha = jnp.exp(m_prev - m_new)
        p = jnp.exp(s - m_new)
        l_sc[...] = alpha * l_sc[...] + jnp.sum(p, axis=-1, keepdims=True)
        acc_sc[...] = alpha * acc_sc[...] + jnp.einsum(
            'hqk,hkd->hqd', p.astype(cd), v3, preferred_element_type=jnp.float32)
        m_sc[...] = m_new

    # --- finalize: out-proj, residual+LN1, FFN(GELU), residual+LN2, store ---
    @pl.when(ki == num_kv - 1)
    def _finalize():
        x = xq_ref[0]                                        # (TQ, D) f32
        inv_l = pl.reciprocal(l_sc[...], approx=approx)      # EUP slot
        attn_heads = acc_sc[...] * inv_l                     # (h, TQ, dk)
        A = jnp.swapaxes(attn_heads, 0, 1).reshape(block_q, n_heads * d_k)

        attn = jnp.dot(A.astype(cd), wfc_ref[...],
                       preferred_element_type=jnp.float32) + bfc_ref[...]
        h1 = _layernorm(x + attn, g1_ref[...], be1_ref[...], eps)

        z = jnp.dot(h1.astype(cd), w1_ref[...],
                    preferred_element_type=jnp.float32) + b1_ref[...]
        z = _gelu_exact(z)
        z = jnp.dot(z.astype(cd), w2_ref[...],
                    preferred_element_type=jnp.float32) + b2_ref[...]

        h2 = _layernorm(h1 + z, g2_ref[...], be2_ref[...], eps)
        # TODO(synk): dropout layers are identity at inference; no RNG applied.
        # NOTE: D=32 in this toy config makes the output store lane-sparse
        # (masked vst); real configs should keep D >= 128 for lane-dense stores.
        out_ref[0] = h2.astype(out_ref.dtype)


def transformer_block(x, pad_mask, params, *, n_heads, d_k, eps=1e-5,
                      block_q=None, block_k=None, compute_dtype=jnp.bfloat16):
    N, T, D = x.shape
    # v6e/v7x MXU is 2x256^2 -> prefer 256-row tiles when T allows (128 is the v5e floor).
    if block_q is None:
        block_q = T if T <= 256 else 256
    if block_k is None:
        block_k = T if T <= 256 else 256
    assert T % block_q == 0 and T % block_k == 0

    pm = pad_mask.reshape(N, 1, T).astype(jnp.float32)

    matmul_weights = {"wq", "wk", "wv", "wfc", "w1", "w2"}
    param_order = [
        "wq", "bq", "wk", "bk", "wv", "bv", "wfc", "bfc",
        "g1", "be1", "w1", "b1", "w2", "b2", "g2", "be2",
    ]
    # Cast matmul weights to the compute dtype (halves weight DMA bytes in bf16 mode);
    # biases / LN params stay f32.
    param_vals = [
        params[n].astype(compute_dtype) if n in matmul_weights
        else params[n].astype(jnp.float32)
        for n in param_order
    ]

    def const_spec(a):
        nd = a.ndim
        return pl.BlockSpec(a.shape, lambda n, qi, ki, _nd=nd: (0,) * _nd)

    in_specs = [
        pl.BlockSpec((1, block_q, D), lambda n, qi, ki: (n, qi, 0)),   # x (query rows)
        pl.BlockSpec((1, block_k, D), lambda n, qi, ki: (n, ki, 0)),   # x (key/value rows)
        pl.BlockSpec((1, 1, block_k), lambda n, qi, ki: (n, 0, ki)),   # pad mask (keys)
    ] + [const_spec(p) for p in param_vals]

    kernel = functools.partial(
        transformer_block_kernel,
        n_heads=n_heads, d_k=d_k, eps=eps, block_q=block_q, block_k=block_k,
    )

    return pl.pallas_call(
        kernel,
        out_shape=jax.ShapeDtypeStruct((N, T, D), x.dtype),
        grid_spec=pltpu.PrefetchScalarGridSpec(
            num_scalar_prefetch=0,
            grid=(N, T // block_q, T // block_k),        # reduction (KV) axis last
            in_specs=in_specs,
            out_specs=pl.BlockSpec((1, block_q, D), lambda n, qi, ki: (n, qi, 0)),
            scratch_shapes=[
                pltpu.VMEM((n_heads, block_q, d_k), compute_dtype),  # cached Q tile
                pltpu.VMEM((n_heads, block_q, 1), jnp.float32),      # m (running max)
                pltpu.VMEM((n_heads, block_q, 1), jnp.float32),      # l (running sum)
                pltpu.VMEM((n_heads, block_q, d_k), jnp.float32),    # acc
            ],
        ),
        compiler_params=pltpu.CompilerParams(
            dimension_semantics=("parallel", "parallel", "arbitrary"),
            vmem_limit_bytes=48 * 1024 * 1024,   # explicit budget, safe on v5e/v6e/v7x
        ),
    )(x, x, pm, *param_vals)


# ----------------- pure-JAX reference (mirrors the PyTorch forward) -----------------
def reference_block(x, pad_mask, params, *, n_heads, d_k, eps=1e-5):
    N, T, D = x.shape
    q = x @ params["wq"] + params["bq"]
    k = x @ params["wk"] + params["bk"]
    v = x @ params["wv"] + params["bv"]
    q = q.reshape(N, T, n_heads, d_k).transpose(0, 2, 1, 3)
    k = k.reshape(N, T, n_heads, d_k).transpose(0, 2, 1, 3)
    v = v.reshape(N, T, n_heads, d_k).transpose(0, 2, 1, 3)
    s = jnp.einsum("nhtd,nhsd->nhts", q, k) / math.sqrt(d_k)
    s = jnp.where(pad_mask[:, None, None, :] == 0, -jnp.inf, s)
    causal = jnp.tril(jnp.ones((T, T), dtype=bool))
    s = jnp.where(causal[None, None], s, -jnp.inf)
    w = jax.nn.softmax(s, axis=-1)
    a = jnp.einsum("nhts,nhsd->nhtd", w, v)
    a = a.transpose(0, 2, 1, 3).reshape(N, T, n_heads * d_k)
    attn_out = a @ params["wfc"] + params["bfc"]

    def ln(h, g, b):
        mu = jnp.mean(h, -1, keepdims=True)
        var = jnp.mean((h - mu) ** 2, -1, keepdims=True)
        return (h - mu) / jnp.sqrt(var + eps) * g + b

    h1 = ln(x + attn_out, params["g1"], params["be1"])
    z = h1 @ params["w1"] + params["b1"]
    z = 0.5 * z * (1.0 + lax.erf(z / jnp.sqrt(2.0)))
    z = z @ params["w2"] + params["b2"]
    return ln(h1 + z, params["g2"], params["be2"])


if __name__ == "__main__":
    # Small config: d_model=32, n_heads=4, d_k=8, seq T=8, batch N=2, max_len=8
    N, T, D = 2, 8, 32
    n_heads, d_k = 4, 8
    H = n_heads * d_k            # 32
    FF = 4 * D                   # 128

    key = jax.random.PRNGKey(0)
    keys = jax.random.split(key, 12)

    def w(k, shape):
        return jax.random.normal(k, shape, dtype=jnp.float32) * 0.05

    params = {
        "wq": w(keys[0], (D, H)),  "bq": w(keys[1], (1, H)),
        "wk": w(keys[2], (D, H)),  "bk": w(keys[3], (1, H)),
        "wv": w(keys[4], (D, H)),  "bv": w(keys[5], (1, H)),
        "wfc": w(keys[6], (H, D)), "bfc": w(keys[7], (1, D)),
        "g1": jnp.ones((1, D), jnp.float32),  "be1": jnp.zeros((1, D), jnp.float32),
        "w1": w(keys[8], (D, FF)), "b1": w(keys[9], (1, FF)),
        "w2": w(keys[10], (FF, D)), "b2": w(keys[11], (1, D)),
        "g2": jnp.ones((1, D), jnp.float32),  "be2": jnp.zeros((1, D), jnp.float32),
    }

    x = jax.random.normal(jax.random.PRNGKey(42), (N, T, D), dtype=jnp.float32)
    # pad mask: last two positions of every sequence are padding
    pad_mask = jnp.concatenate(
        [jnp.ones((N, T - 2), jnp.float32), jnp.zeros((N, 2), jnp.float32)], axis=1
    )

    ref = reference_block(x, pad_mask, params, n_heads=n_heads, d_k=d_k)

    # 1) f32 compute path: tight numerical check against the reference.
    out_f32 = transformer_block(x, pad_mask, params, n_heads=n_heads, d_k=d_k,
                                compute_dtype=jnp.float32)
    out_f32 = jax.block_until_ready(out_f32)
    assert out_f32.shape == (N, T, D)
    assert jnp.allclose(out_f32, ref, atol=1e-4, rtol=1e-4), (
        f"f32 path max abs err {jnp.max(jnp.abs(out_f32 - ref))}"
    )

    # 2) bf16 MXU path (default / production config): looser tolerance.
    out_bf16 = transformer_block(x, pad_mask, params, n_heads=n_heads, d_k=d_k,
                                 compute_dtype=jnp.bfloat16)
    out_bf16 = jax.block_until_ready(out_bf16)
    assert out_bf16.shape == (N, T, D)
    assert jnp.allclose(out_bf16, ref, atol=5e-2, rtol=5e-2), (
        f"bf16 path max abs err {jnp.max(jnp.abs(out_bf16 - ref))}"
    )

    print("KERNEL_OK")
</pallas_src>

<mosaic_0001>
module attributes {stable_mosaic.version = 11 : i64} {
  func.func @transformer_block_kernel(%arg0: i32, %arg1: i32, %arg2: i32, %arg3: memref<1x8x32xf32, #tpu.memory_space<vmem>>, %arg4: memref<1x8x32xf32, #tpu.memory_space<vmem>>, %arg5: memref<1x1x8xf32, #tpu.memory_space<vmem>>, %arg6: memref<32x32xf32, #tpu.memory_space<vmem>>, %arg7: memref<1x32xf32, #tpu.memory_space<vmem>>, %arg8: memref<32x32xf32, #tpu.memory_space<vmem>>, %arg9: memref<1x32xf32, #tpu.memory_space<vmem>>, %arg10: memref<32x32xf32, #tpu.memory_space<vmem>>, %arg11: memref<1x32xf32, #tpu.memory_space<vmem>>, %arg12: memref<32x32xf32, #tpu.memory_space<vmem>>, %arg13: memref<1x32xf32, #tpu.memory_space<vmem>>, %arg14: memref<1x32xf32, #tpu.memory_space<vmem>>, %arg15: memref<1x32xf32, #tpu.memory_space<vmem>>, %arg16: memref<32x128xf32, #tpu.memory_space<vmem>>, %arg17: memref<1x128xf32, #tpu.memory_space<vmem>>, %arg18: memref<128x32xf32, #tpu.memory_space<vmem>>, %arg19: memref<1x32xf32, #tpu.memory_space<vmem>>, %arg20: memref<1x32xf32, #tpu.memory_space<vmem>>, %arg21: memref<1x32xf32, #tpu.memory_space<vmem>>, %arg22: memref<1x8x32xf32, #tpu.memory_space<vmem>>, %arg23: memref<4x8x8xf32, #tpu.memory_space<vmem>>, %arg24: memref<4x8x1xf32, #tpu.memory_space<vmem>>, %arg25: memref<4x8x1xf32, #tpu.memory_space<vmem>>, %arg26: memref<4x8x8xf32, #tpu.memory_space<vmem>>) attributes {dimension_semantics = [#tpu.dimension_semantics<parallel>, #tpu.dimension_semantics<parallel>, #tpu.dimension_semantics<arbitrary>], iteration_bounds = array<i64: 2, 1, 1>, scalar_prefetch = 0 : i64, scratch_operands = 4 : i64, tpu.core_type = #tpu.core_type<tc>, window_params = [{transform_indices = @transform_0, window_bounds = array<i64: 1, 8, 32>}, {transform_indices = @transform_1, window_bounds = array<i64: 1, 8, 32>}, {transform_indices = @transform_2, window_bounds = array<i64: 1, 1, 8>}, {pipeline_mode = #tpu.pipeline_mode<synchronous>, transform_indices = @transform_3, window_bounds = array<i64: 32, 32>}, {pipeline_mode = #tpu.pipeline_mode<synchronous>, transform_indices = @transform_4, window_bounds = array<i64: 1, 32>}, {pipeline_mode = #tpu.pipeline_mode<synchronous>, transform_indices = @transform_5, window_bounds = array<i64: 32, 32>}, {pipeline_mode = #tpu.pipeline_mode<synchronous>, transform_indices = @transform_6, window_bounds = array<i64: 1, 32>}, {pipeline_mode = #tpu.pipeline_mode<synchronous>, transform_indices = @transform_7, window_bounds = array<i64: 32, 32>}, {pipeline_mode = #tpu.pipeline_mode<synchronous>, transform_indices = @transform_8, window_bounds = array<i64: 1, 32>}, {pipeline_mode = #tpu.pipeline_mode<synchronous>, transform_indices = @transform_9, window_bounds = array<i64: 32, 32>}, {pipeline_mode = #tpu.pipeline_mode<synchronous>, transform_indices = @transform_10, window_bounds = array<i64: 1, 32>}, {pipeline_mode = #tpu.pipeline_mode<synchronous>, transform_indices = @transform_11, window_bounds = array<i64: 1, 32>}, {pipeline_mode = #tpu.pipeline_mode<synchronous>, transform_indices = @transform_12, window_bounds = array<i64: 1, 32>}, {pipeline_mode = #tpu.pipeline_mode<synchronous>, transform_indices = @transform_13, window_bounds = array<i64: 32, 128>}, {pipeline_mode = #tpu.pipeline_mode<synchronous>, transform_indices = @transform_14, window_bounds = array<i64: 1, 128>}, {pipeline_mode = #tpu.pipeline_mode<synchronous>, transform_indices = @transform_15, window_bounds = array<i64: 128, 32>}, {pipeline_mode = #tpu.pipeline_mode<synchronous>, transform_indices = @transform_16, window_bounds = array<i64: 1, 32>}, {pipeline_mode = #tpu.pipeline_mode<synchronous>, transform_indices = @transform_17, window_bounds = array<i64: 1, 32>}, {pipeline_mode = #tpu.pipeline_mode<synchronous>, transform_indices = @transform_18, window_bounds = array<i64: 1, 32>}, {transform_indices = @transform_19, window_bounds = array<i64: 1, 8, 32>}]} {
    %c8_i32 = arith.constant 8 : i32
    %0 = arith.muli %arg1, %c8_i32 : i32
    %c8_i32_0 = arith.constant 8 : i32
    %1 = arith.muli %arg2, %c8_i32_0 : i32
    %c0_i32 = arith.constant 0 : i32
    %2 = arith.cmpi eq, %arg2, %c0_i32 : i32
    %3 = arith.extui %2 : i1 to i32
    %c0_i32_1 = arith.constant 0 : i32
    %4 = arith.cmpi ne, %3, %c0_i32_1 : i32
    scf.if %4 {
      %cst_6 = arith.constant -1.000000e+30 : f32
      %13 = vector.broadcast %cst_6 : f32 to vector<4x8x1xf32>
      %c0 = arith.constant 0 : index
      %c0_7 = arith.constant 0 : index
      %c0_8 = arith.constant 0 : index
      %14 = vector.load %arg24[%c0, %c0_7, %c0_8] : memref<4x8x1xf32, #tpu.memory_space<vmem>>, vector<4x8x1xf32>
      tpu.vector_store %arg24[%c0, %c0_7, %c0_8], %13 {strides = array<i32>} : memref<4x8x1xf32, #tpu.memory_space<vmem>>, vector<4x8x1xf32>,
      %cst_9 = arith.constant 0.000000e+00 : f32
      %15 = vector.broadcast %cst_9 : f32 to vector<4x8x1xf32>
      %c0_10 = arith.constant 0 : index
      %c0_11 = arith.constant 0 : index
      %c0_12 = arith.constant 0 : index
      %16 = vector.load %arg25[%c0_10, %c0_11, %c0_12] : memref<4x8x1xf32, #tpu.memory_space<vmem>>, vector<4x8x1xf32>
      tpu.vector_store %arg25[%c0_10, %c0_11, %c0_12], %15 {strides = array<i32>} : memref<4x8x1xf32, #tpu.memory_space<vmem>>, vector<4x8x1xf32>,
      %cst_13 = arith.constant 0.000000e+00 : f32
      %17 = vector.broadcast %cst_13 : f32 to vector<4x8x8xf32>
      %c0_14 = arith.constant 0 : index
      %c0_15 = arith.constant 0 : index
      %c0_16 = arith.constant 0 : index
      %18 = vector.load %arg26[%c0_14, %c0_15, %c0_16] : memref<4x8x8xf32, #tpu.memory_space<vmem>>, vector<4x8x8xf32>
      tpu.vector_store %arg26[%c0_14, %c0_15, %c0_16], %17 {strides = array<i32>} : memref<4x8x8xf32, #tpu.memory_space<vmem>>, vector<4x8x8xf32>,
      %c0_17 = arith.constant 0 : index
      %c0_18 = arith.constant 0 : index
      %c0_19 = arith.constant 0 : index
      %19 = vector.load %arg3[%c0_17, %c0_18, %c0_19] : memref<1x8x32xf32, #tpu.memory_space<vmem>>, vector<1x8x32xf32>
      %20 = vector.shape_cast %19 : vector<1x8x32xf32> to vector<8x32xf32>
      %c0_20 = arith.constant 0 : index
      %c0_21 = arith.constant 0 : index
      %21 = vector.load %arg6[%c0_20, %c0_21] : memref<32x32xf32, #tpu.memory_space<vmem>>, vector<32x32xf32>
      %cst_22 = arith.constant dense<0.000000e+00> : vector<8x32xf32>
      %22 = tpu.matmul %20, %21, %cst_22 {dimension_numbers = #tpu.dot_dimension_numbers<[1], [0], [0], [1], [0, 0, 1, 1], [], []>} : vector<8x32xf32>, vector<32x32xf32>, vector<8x32xf32> -> vector<8x32xf32>
      %c0_23 = arith.constant 0 : index
      %c0_24 = arith.constant 0 : index
      %23 = vector.load %arg7[%c0_23, %c0_24] : memref<1x32xf32, #tpu.memory_space<vmem>>, vector<1x32xf32>
      %24 = vector.broadcast %23 : vector<1x32xf32> to vector<8x32xf32>
      %25 = arith.addf %22, %24 : vector<8x32xf32>
      %26 = vector.shape_cast %25 : vector<8x32xf32> to vector<8x4x8xf32>
      %27 = tpu.transpose %26, [1, 0, 2] : vector<8x4x8xf32> -> vector<4x8x8xf32>
      %c0_25 = arith.constant 0 : index
      %c0_26 = arith.constant 0 : index
      %c0_27 = arith.constant 0 : index
      %28 = vector.load %arg23[%c0_25, %c0_26, %c0_27] : memref<4x8x8xf32, #tpu.memory_space<vmem>>, vector<4x8x8xf32>
      tpu.vector_store %arg23[%c0_25, %c0_26, %c0_27], %27 {strides = array<i32>} : memref<4x8x8xf32, #tpu.memory_space<vmem>>, vector<4x8x8xf32>,
    } else {
    }
    %c8_i32_2 = arith.constant 8 : i32
    %5 = arith.addi %0, %c8_i32_2 : i32
    %c1_i32 = arith.constant 1 : i32
    %6 = arith.subi %5, %c1_i32 : i32
    %7 = arith.cmpi sle, %1, %6 : i32
    %8 = arith.extui %7 : i1 to i32
    %cst = arith.constant 0.353553385 : f32
    %c0_i32_3 = arith.constant 0 : i32
    %9 = arith.cmpi ne, %8, %c0_i32_3 : i32
    scf.if %9 {
      %c0 = arith.constant 0 : index
      %c0_6 = arith.constant 0 : index
      %c0_7 = arith.constant 0 : index
      %13 = vector.load %arg4[%c0, %c0_6, %c0_7] : memref<1x8x32xf32, #tpu.memory_space<vmem>>, vector<1x8x32xf32>
      %14 = vector.shape_cast %13 : vector<1x8x32xf32> to vector<8x32xf32>
      %c0_8 = arith.constant 0 : index
      %c0_9 = arith.constant 0 : index
      %15 = vector.load %arg8[%c0_8, %c0_9] : memref<32x32xf32, #tpu.memory_space<vmem>>, vector<32x32xf32>
      %cst_10 = arith.constant dense<0.000000e+00> : vector<8x32xf32>
      %16 = tpu.matmul %14, %15, %cst_10 {dimension_numbers = #tpu.dot_dimension_numbers<[1], [0], [0], [1], [0, 0, 1, 1], [], []>} : vector<8x32xf32>, vector<32x32xf32>, vector<8x32xf32> -> vector<8x32xf32>
      %c0_11 = arith.constant 0 : index
      %c0_12 = arith.constant 0 : index
      %17 = vector.load %arg9[%c0_11, %c0_12] : memref<1x32xf32, #tpu.memory_space<vmem>>, vector<1x32xf32>
      %18 = vector.broadcast %17 : vector<1x32xf32> to vector<8x32xf32>
      %19 = arith.addf %16, %18 : vector<8x32xf32>
      %c0_13 = arith.constant 0 : index
      %c0_14 = arith.constant 0 : index
      %20 = vector.load %arg10[%c0_13, %c0_14] : memref<32x32xf32, #tpu.memory_space<vmem>>, vector<32x32xf32>
      %cst_15 = arith.constant dense<0.000000e+00> : vector<8x32xf32>
      %21 = tpu.matmul %14, %20, %cst_15 {dimension_numbers = #tpu.dot_dimension_numbers<[1], [0], [0], [1], [0, 0, 1, 1], [], []>} : vector<8x32xf32>, vector<32x32xf32>, vector<8x32xf32> -> vector<8x32xf32>
      %c0_16 = arith.constant 0 : index
      %c0_17 = arith.constant 0 : index
      %22 = vector.load %arg11[%c0_16, %c0_17] : memref<1x32xf32, #tpu.memory_space<vmem>>, vector<1x32xf32>
      %23 = vector.broadcast %22 : vector<1x32xf32> to vector<8x32xf32>
      %24 = arith.addf %21, %23 : vector<8x32xf32>
      %25 = vector.shape_cast %19 : vector<8x32xf32> to vector<8x4x8xf32>
      %26 = tpu.transpose %25, [1, 0, 2] : vector<8x4x8xf32> -> vector<4x8x8xf32>
      %27 = vector.shape_cast %24 : vector<8x32xf32> to vector<8x4x8xf32>
      %28 = tpu.transpose %27, [1, 0, 2] : vector<8x4x8xf32> -> vector<4x8x8xf32>
      %c0_18 = arith.constant 0 : index
      %c0_19 = arith.constant 0 : index
      %c0_20 = arith.constant 0 : index
      %29 = vector.load %arg23[%c0_18, %c0_19, %c0_20] : memref<4x8x8xf32, #tpu.memory_space<vmem>>, vector<4x8x8xf32>
      "tpu.trace_start"() <{level = 10 : i32, message = "hqd,hkd->hqk"}> : () -> ()
      %cst_21 = arith.constant dense<0.000000e+00> : vector<4x8x8xf32>
      %30 = tpu.matmul %29, %26, %cst_21 {dimension_numbers = #tpu.dot_dimension_numbers<[2], [2], [1], [1], [0, 0, 0, 1, 1, 1], [0], [0]>} : vector<4x8x8xf32>, vector<4x8x8xf32>, vector<4x8x8xf32> -> vector<4x8x8xf32>
      "tpu.trace_stop"() : () -> ()
      %31 = vector.broadcast %cst : f32 to vector<4x8x8xf32>
      %32 = arith.mulf %30, %31 : vector<4x8x8xf32>
      %33 = tpu.iota {dimensions = array<i32: 0>} : vector<8x8xi32>
      %34 = vector.broadcast %0 : i32 to vector<8x8xi32>
      %35 = arith.addi %34, %33 : vector<8x8xi32>
      %36 = tpu.iota {dimensions = array<i32: 1>} : vector<8x8xi32>
      %37 = vector.broadcast %1 : i32 to vector<8x8xi32>
      %38 = arith.addi %37, %36 : vector<8x8xi32>
      %39 = arith.cmpi sle, %38, %35 : vector<8x8xi32>
      %c0_22 = arith.constant 0 : index
      %c0_23 = arith.constant 0 : index
      %c0_24 = arith.constant 0 : index
      %40 = vector.load %arg5[%c0_22, %c0_23, %c0_24] : memref<1x1x8xf32, #tpu.memory_space<vmem>>, vector<1x1x8xf32>
      %41 = vector.shape_cast %40 : vector<1x1x8xf32> to vector<1x8xf32>
      %cst_25 = arith.constant 5.000000e-01 : f32
      %42 = vector.broadcast %cst_25 : f32 to vector<1x8xf32>
      %43 = arith.cmpf ogt, %41, %42 : vector<1x8xf32>
      %44 = vector.broadcast %43 : vector<1x8xi1> to vector<8x8xi1>
      %45 = arith.andi %39, %44 : vector<8x8xi1>
      %46 = vector.shape_cast %45 : vector<8x8xi1> to vector<1x8x8xi1>
      %cst_26 = arith.constant -1.000000e+30 : f32
      %47 = vector.shape_cast %46 : vector<1x8x8xi1> to vector<1x8x8xi1>
      %48 = vector.broadcast %47 : vector<1x8x8xi1> to vector<4x8x8xi1>
      %49 = vector.broadcast %cst_26 : f32 to vector<4x8x8xf32>
      %50 = arith.select %48, %32, %49 : vector<4x8x8xi1>, vector<4x8x8xf32>
      %c0_27 = arith.constant 0 : index
      %c0_28 = arith.constant 0 : index
      %c0_29 = arith.constant 0 : index
      %51 = vector.load %arg24[%c0_27, %c0_28, %c0_29] : memref<4x8x1xf32, #tpu.memory_space<vmem>>, vector<4x8x1xf32>
      %cst_30 = arith.constant dense<0xFF800000> : vector<4x8xf32>
      %52 = vector.multi_reduction <maximumf>, %50, %cst_30 [2] : vector<4x8x8xf32> to vector<4x8xf32>
      %53 = vector.shape_cast %52 : vector<4x8xf32> to vector<4x8x1xf32>
      %54 = arith.maximumf %51, %53 : vector<4x8x1xf32>
      %55 = arith.subf %51, %54 : vector<4x8x1xf32>
      %56 = math.exp %55 : vector<4x8x1xf32>
      %57 = vector.broadcast %54 : vector<4x8x1xf32> to vector<4x8x8xf32>
      %58 = arith.subf %50, %57 : vector<4x8x8xf32>
      %59 = math.exp %58 : vector<4x8x8xf32>
      %c0_31 = arith.constant 0 : index
      %c0_32 = arith.constant 0 : index
      %c0_33 = arith.constant 0 : index
      %60 = vector.load %arg25[%c0_31, %c0_32, %c0_33] : memref<4x8x1xf32, #tpu.memory_space<vmem>>, vector<4x8x1xf32>
      %61 = arith.mulf %56, %60 : vector<4x8x1xf32>
      %cst_34 = arith.constant dense<0.000000e+00> : vector<4x8xf32>
      %62 = vector.multi_reduction <add>, %59, %cst_34 [2] : vector<4x8x8xf32> to vector<4x8xf32>
      %63 = vector.shape_cast %62 : vector<4x8xf32> to vector<4x8x1xf32>
      %64 = arith.addf %61, %63 : vector<4x8x1xf32>
      %c0_35 = arith.constant 0 : index
      %c0_36 = arith.constant 0 : index
      %c0_37 = arith.constant 0 : index
      %65 = vector.load %arg25[%c0_35, %c0_36, %c0_37] : memref<4x8x1xf32, #tpu.memory_space<vmem>>, vector<4x8x1xf32>
      tpu.vector_store %arg25[%c0_35, %c0_36, %c0_37], %64 {strides = array<i32>} : memref<4x8x1xf32, #tpu.memory_space<vmem>>, vector<4x8x1xf32>,
      %c0_38 = arith.constant 0 : index
      %c0_39 = arith.constant 0 : index
      %c0_40 = arith.constant 0 : index
      %66 = vector.load %arg26[%c0_38, %c0_39, %c0_40] : memref<4x8x8xf32, #tpu.memory_space<vmem>>, vector<4x8x8xf32>
      %67 = vector.broadcast %56 : vector<4x8x1xf32> to vector<4x8x8xf32>
      %68 = arith.mulf %67, %66 : vector<4x8x8xf32>
      "tpu.trace_start"() <{level = 10 : i32, message = "hqk,hkd->hqd"}> : () -> ()
      %cst_41 = arith.constant dense<0.000000e+00> : vector<4x8x8xf32>
      %69 = tpu.matmul %59, %28, %cst_41 {dimension_numbers = #tpu.dot_dimension_numbers<[2], [1], [1], [2], [0, 0, 0, 1, 1, 2], [0], [0]>} : vector<4x8x8xf32>, vector<4x8x8xf32>, vector<4x8x8xf32> -> vector<4x8x8xf32>
      "tpu.trace_stop"() : () -> ()
      %70 = arith.addf %68, %69 : vector<4x8x8xf32>
      %c0_42 = arith.constant 0 : index
      %c0_43 = arith.constant 0 : index
      %c0_44 = arith.constant 0 : index
      %71 = vector.load %arg26[%c0_42, %c0_43, %c0_44] : memref<4x8x8xf32, #tpu.memory_space<vmem>>, vector<4x8x8xf32>
      tpu.vector_store %arg26[%c0_42, %c0_43, %c0_44], %70 {strides = array<i32>} : memref<4x8x8xf32, #tpu.memory_space<vmem>>, vector<4x8x8xf32>,
      %c0_45 = arith.constant 0 : index
      %c0_46 = arith.constant 0 : index
      %c0_47 = arith.constant 0 : index
      %72 = vector.load %arg24[%c0_45, %c0_46, %c0_47] : memref<4x8x1xf32, #tpu.memory_space<vmem>>, vector<4x8x1xf32>
      tpu.vector_store %arg24[%c0_45, %c0_46, %c0_47], %54 {strides = array<i32>} : memref<4x8x1xf32, #tpu.memory_space<vmem>>, vector<4x8x1xf32>,
    } else {
    }
    %c0_i32_4 = arith.constant 0 : i32
    %10 = arith.cmpi eq, %arg2, %c0_i32_4 : i32
    %11 = arith.extui %10 : i1 to i32
    %c0_i32_5 = arith.constant 0 : i32
    %12 = arith.cmpi ne, %11, %c0_i32_5 : i32
    scf.if %12 {
      %c0 = arith.constant 0 : index
      %c0_6 = arith.constant 0 : index
      %c0_7 = arith.constant 0 : index
      %13 = vector.load %arg3[%c0, %c0_6, %c0_7] : memref<1x8x32xf32, #tpu.memory_space<vmem>>, vector<1x8x32xf32>
      %14 = vector.shape_cast %13 : vector<1x8x32xf32> to vector<8x32xf32>
      %c0_8 = arith.constant 0 : index
      %c0_9 = arith.constant 0 : index
      %c0_10 = arith.constant 0 : index
      %15 = vector.load %arg25[%c0_8, %c0_9, %c0_10] : memref<4x8x1xf32, #tpu.memory_space<vmem>>, vector<4x8x1xf32>
      %16 = tpu.reciprocal %15 : vector<4x8x1xf32> -> vector<4x8x1xf32>
      %c0_11 = arith.constant 0 : index
      %c0_12 = arith.constant 0 : index
      %c0_13 = arith.constant 0 : index
      %17 = vector.load %arg26[%c0_11, %c0_12, %c0_13] : memref<4x8x8xf32, #tpu.memory_space<vmem>>, vector<4x8x8xf32>
      %18 = vector.broadcast %16 : vector<4x8x1xf32> to vector<4x8x8xf32>
      %19 = arith.mulf %17, %18 : vector<4x8x8xf32>
      %20 = tpu.transpose %19, [1, 0, 2] : vector<4x8x8xf32> -> vector<8x4x8xf32>
      %21 = vector.shape_cast %20 : vector<8x4x8xf32> to vector<8x32xf32>
      %c0_14 = arith.constant 0 : index
      %c0_15 = arith.constant 0 : index
      %22 = vector.load %arg12[%c0_14, %c0_15] : memref<32x32xf32, #tpu.memory_space<vmem>>, vector<32x32xf32>
      %cst_16 = arith.constant dense<0.000000e+00> : vector<8x32xf32>
      %23 = tpu.matmul %21, %22, %cst_16 {dimension_numbers = #tpu.dot_dimension_numbers<[1], [0], [0], [1], [0, 0, 1, 1], [], []>} : vector<8x32xf32>, vector<32x32xf32>, vector<8x32xf32> -> vector<8x32xf32>
      %c0_17 = arith.constant 0 : index
      %c0_18 = arith.constant 0 : index
      %24 = vector.load %arg13[%c0_17, %c0_18] : memref<1x32xf32, #tpu.memory_space<vmem>>, vector<1x32xf32>
      %25 = vector.broadcast %24 : vector<1x32xf32> to vector<8x32xf32>
      %26 = arith.addf %23, %25 : vector<8x32xf32>
      %27 = arith.addf %14, %26 : vector<8x32xf32>
      %c0_19 = arith.constant 0 : index
      %c0_20 = arith.constant 0 : index
      %28 = vector.load %arg14[%c0_19, %c0_20] : memref<1x32xf32, #tpu.memory_space<vmem>>, vector<1x32xf32>
      %c0_21 = arith.constant 0 : index
      %c0_22 = arith.constant 0 : index
      %29 = vector.load %arg15[%c0_21, %c0_22] : memref<1x32xf32, #tpu.memory_space<vmem>>, vector<1x32xf32>
      %cst_23 = arith.constant dense<0.000000e+00> : vector<8xf32>
      %30 = vector.multi_reduction <add>, %27, %cst_23 [1] : vector<8x32xf32> to vector<8xf32>
      %31 = vector.shape_cast %30 : vector<8xf32> to vector<8x1xf32>
      %cst_24 = arith.constant 3.200000e+01 : f32
      %32 = vector.broadcast %cst_24 : f32 to vector<8x1xf32>
      %33 = arith.divf %31, %32 : vector<8x1xf32>
      %34 = vector.broadcast %33 : vector<8x1xf32> to vector<8x32xf32>
      %35 = arith.subf %27, %34 : vector<8x32xf32>
      %36 = arith.mulf %35, %35 : vector<8x32xf32>
      %cst_25 = arith.constant dense<0.000000e+00> : vector<8xf32>
      %37 = vector.multi_reduction <add>, %36, %cst_25 [1] : vector<8x32xf32> to vector<8xf32>
      %38 = vector.shape_cast %37 : vector<8xf32> to vector<8x1xf32>
      %cst_26 = arith.constant 3.200000e+01 : f32
      %39 = vector.broadcast %cst_26 : f32 to vector<8x1xf32>
      %40 = arith.divf %38, %39 : vector<8x1xf32>
      %41 = vector.broadcast %33 : vector<8x1xf32> to vector<8x32xf32>
      %42 = arith.subf %27, %41 : vector<8x32xf32>
      %cst_27 = arith.constant 9.99999974E-6 : f32
      %43 = vector.broadcast %cst_27 : f32 to vector<8x1xf32>
      %44 = arith.addf %40, %43 : vector<8x1xf32>
      %45 = math.rsqrt %44 : vector<8x1xf32>
      %46 = vector.broadcast %45 : vector<8x1xf32> to vector<8x32xf32>
      %47 = arith.mulf %42, %46 : vector<8x32xf32>
      %48 = vector.broadcast %28 : vector<1x32xf32> to vector<8x32xf32>
      %49 = arith.mulf %47, %48 : vector<8x32xf32>
      %50 = vector.broadcast %29 : vector<1x32xf32> to vector<8x32xf32>
      %51 = arith.addf %49, %50 : vector<8x32xf32>
      %c0_28 = arith.constant 0 : index
      %c0_29 = arith.constant 0 : index
      %52 = vector.load %arg16[%c0_28, %c0_29] : memref<32x128xf32, #tpu.memory_space<vmem>>, vector<32x128xf32>
      %cst_30 = arith.constant dense<0.000000e+00> : vector<8x128xf32>
      %53 = tpu.matmul %51, %52, %cst_30 {dimension_numbers = #tpu.dot_dimension_numbers<[1], [0], [0], [1], [0, 0, 1, 1], [], []>} : vector<8x32xf32>, vector<32x128xf32>, vector<8x128xf32> -> vector<8x128xf32>
      %c0_31 = arith.constant 0 : index
      %c0_32 = arith.constant 0 : index
      %54 = vector.load %arg17[%c0_31, %c0_32] : memref<1x128xf32, #tpu.memory_space<vmem>>, vector<1x128xf32>
      %55 = vector.broadcast %54 : vector<1x128xf32> to vector<8x128xf32>
      %56 = arith.addf %53, %55 : vector<8x128xf32>
      %cst_33 = arith.constant 5.000000e-01 : f32
      %57 = vector.broadcast %cst_33 : f32 to vector<8x128xf32>
      %58 = arith.mulf %57, %56 : vector<8x128xf32>
      %cst_34 = arith.constant 0.707106769 : f32
      %59 = vector.broadcast %cst_34 : f32 to vector<8x128xf32>
      %60 = arith.mulf %56, %59 : vector<8x128xf32>
      %61 = math.erf %60 : vector<8x128xf32>
      %cst_35 = arith.constant 1.000000e+00 : f32
      %62 = vector.broadcast %cst_35 : f32 to vector<8x128xf32>
      %63 = arith.addf %62, %61 : vector<8x128xf32>
      %64 = arith.mulf %58, %63 : vector<8x128xf32>
      %c0_36 = arith.constant 0 : index
      %c0_37 = arith.constant 0 : index
      %65 = vector.load %arg18[%c0_36, %c0_37] : memref<128x32xf32, #tpu.memory_space<vmem>>, vector<128x32xf32>
      %cst_38 = arith.constant dense<0.000000e+00> : vector<8x32xf32>
      %66 = tpu.matmul %64, %65, %cst_38 {dimension_numbers = #tpu.dot_dimension_numbers<[1], [0], [0], [1], [0, 0, 1, 1], [], []>} : vector<8x128xf32>, vector<128x32xf32>, vector<8x32xf32> -> vector<8x32xf32>
      %c0_39 = arith.constant 0 : index
      %c0_40 = arith.constant 0 : index
      %67 = vector.load %arg19[%c0_39, %c0_40] : memref<1x32xf32, #tpu.memory_space<vmem>>, vector<1x32xf32>
      %68 = vector.broadcast %67 : vector<1x32xf32> to vector<8x32xf32>
      %69 = arith.addf %66, %68 : vector<8x32xf32>
      %70 = arith.addf %51, %69 : vector<8x32xf32>
      %c0_41 = arith.constant 0 : index
      %c0_42 = arith.constant 0 : index
      %71 = vector.load %arg20[%c0_41, %c0_42] : memref<1x32xf32, #tpu.memory_space<vmem>>, vector<1x32xf32>
      %c0_43 = arith.constant 0 : index
      %c0_44 = arith.constant 0 : index
      %72 = vector.load %arg21[%c0_43, %c0_44] : memref<1x32xf32, #tpu.memory_space<vmem>>, vector<1x32xf32>
      %cst_45 = arith.constant dense<0.000000e+00> : vector<8xf32>
      %73 = vector.multi_reduction <add>, %70, %cst_45 [1] : vector<8x32xf32> to vector<8xf32>
      %74 = vector.shape_cast %73 : vector<8xf32> to vector<8x1xf32>
      %cst_46 = arith.constant 3.200000e+01 : f32
      %75 = vector.broadcast %cst_46 : f32 to vector<8x1xf32>
      %76 = arith.divf %74, %75 : vector<8x1xf32>
      %77 = vector.broadcast %76 : vector<8x1xf32> to vector<8x32xf32>
      %78 = arith.subf %70, %77 : vector<8x32xf32>
      %79 = arith.mulf %78, %78 : vector<8x32xf32>
      %cst_47 = arith.constant dense<0.000000e+00> : vector<8xf32>
      %80 = vector.multi_reduction <add>, %79, %cst_47 [1] : vector<8x32xf32> to vector<8xf32>
      %81 = vector.shape_cast %80 : vector<8xf32> to vector<8x1xf32>
      %cst_48 = arith.constant 3.200000e+01 : f32
      %82 = vector.broadcast %cst_48 : f32 to vector<8x1xf32>
      %83 = arith.divf %81, %82 : vector<8x1xf32>
      %84 = vector.broadcast %76 : vector<8x1xf32> to vector<8x32xf32>
      %85 = arith.subf %70, %84 : vector<8x32xf32>
      %cst_49 = arith.constant 9.99999974E-6 : f32
      %86 = vector.broadcast %cst_49 : f32 to vector<8x1xf32>
      %87 = arith.addf %83, %86 : vector<8x1xf32>
      %88 = math.rsqrt %87 : vector<8x1xf32>
      %89 = vector.broadcast %88 : vector<8x1xf32> to vector<8x32xf32>
      %90 = arith.mulf %85, %89 : vector<8x32xf32>
      %91 = vector.broadcast %71 : vector<1x32xf32> to vector<8x32xf32>
      %92 = arith.mulf %90, %91 : vector<8x32xf32>
      %93 = vector.broadcast %72 : vector<1x32xf32> to vector<8x32xf32>
      %94 = arith.addf %92, %93 : vector<8x32xf32>
      %c0_50 = arith.constant 0 : index
      %c0_51 = arith.constant 0 : index
      %c0_52 = arith.constant 0 : index
      %95 = vector.load %arg22[%c0_50, %c0_51, %c0_52] : memref<1x8x32xf32, #tpu.memory_space<vmem>>, vector<1x8x32xf32>
      %96 = vector.shape_cast %95 : vector<1x8x32xf32> to vector<8x32xf32>
      %97 = vector.shape_cast %94 : vector<8x32xf32> to vector<1x8x32xf32>
      tpu.vector_store %arg22[%c0_50, %c0_51, %c0_52], %97 {strides = array<i32>} : memref<1x8x32xf32, #tpu.memory_space<vmem>>, vector<1x8x32xf32>,
    } else {
    }
    return
  }
  func.func @transform_0(%arg0: i32, %arg1: i32, %arg2: i32) -> (i32, i32, i32) {
    %c0_i32 = arith.constant 0 : i32
    %c0_i32_0 = arith.constant 0 : i32
    return %arg0, %arg1, %c0_i32 : i32, i32, i32
  }
  func.func @transform_1(%arg0: i32, %arg1: i32, %arg2: i32) -> (i32, i32, i32) {
    %c0_i32 = arith.constant 0 : i32
    %c0_i32_0 = arith.constant 0 : i32
    return %arg0, %arg2, %c0_i32 : i32, i32, i32
  }
  func.func @transform_2(%arg0: i32, %arg1: i32, %arg2: i32) -> (i32, i32, i32) {
    %c0_i32 = arith.constant 0 : i32
    %c0_i32_0 = arith.constant 0 : i32
    return %arg0, %c0_i32, %arg2 : i32, i32, i32
  }
  func.func @transform_3(%arg0: i32, %arg1: i32, %arg2: i32) -> (i32, i32) {
    %c0_i32 = arith.constant 0 : i32
    %c0_i32_0 = arith.constant 0 : i32
    %c0_i32_1 = arith.constant 0 : i32
    return %c0_i32, %c0_i32_0 : i32, i32
  }
  func.func @transform_4(%arg0: i32, %arg1: i32, %arg2: i32) -> (i32, i32) {
    %c0_i32 = arith.constant 0 : i32
    %c0_i32_0 = arith.constant 0 : i32
    %c0_i32_1 = arith.constant 0 : i32
    return %c0_i32, %c0_i32_0 : i32, i32
  }
  func.func @transform_5(%arg0: i32, %arg1: i32, %arg2: i32) -> (i32, i32) {
    %c0_i32 = arith.constant 0 : i32
    %c0_i32_0 = arith.constant 0 : i32
    %c0_i32_1 = arith.constant 0 : i32
    return %c0_i32, %c0_i32_0 : i32, i32
  }
  func.func @transform_6(%arg0: i32, %arg1: i32, %arg2: i32) -> (i32, i32) {
    %c0_i32 = arith.constant 0 : i32
    %c0_i32_0 = arith.constant 0 : i32
    %c0_i32_1 = arith.constant 0 : i32
    return %c0_i32, %c0_i32_0 : i32, i32
  }
  func.func @transform_7(%arg0: i32, %arg1: i32, %arg2: i32) -> (i32, i32) {
    %c0_i32 = arith.constant 0 : i32
    %c0_i32_0 = arith.constant 0 : i32
    %c0_i32_1 = arith.constant 0 : i32
    return %c0_i32, %c0_i32_0 : i32, i32
  }
  func.func @transform_8(%arg0: i32, %arg1: i32, %arg2: i32) -> (i32, i32) {
    %c0_i32 = arith.constant 0 : i32
    %c0_i32_0 = arith.constant 0 : i32
    %c0_i32_1 = arith.constant 0 : i32
    return %c0_i32, %c0_i32_0 : i32, i32
  }
  func.func @transform_9(%arg0: i32, %arg1: i32, %arg2: i32) -> (i32, i32) {
    %c0_i32 = arith.constant 0 : i32
    %c0_i32_0 = arith.constant 0 : i32
    %c0_i32_1 = arith.constant 0 : i32
    return %c0_i32, %c0_i32_0 : i32, i32
  }
  func.func @transform_10(%arg0: i32, %arg1: i32, %arg2: i32) -> (i32, i32) {
    %c0_i32 = arith.constant 0 : i32
    %c0_i32_0 = arith.constant 0 : i32
    %c0_i32_1 = arith.constant 0 : i32
    return %c0_i32, %c0_i32_0 : i32, i32
  }
  func.func @transform_11(%arg0: i32, %arg1: i32, %arg2: i32) -> (i32, i32) {
    %c0_i32 = arith.constant 0 : i32
    %c0_i32_0 = arith.constant 0 : i32
    %c0_i32_1 = arith.constant 0 : i32
    return %c0_i32, %c0_i32_0 : i32, i32
  }
  func.func @transform_12(%arg0: i32, %arg1: i32, %arg2: i32) -> (i32, i32) {
    %c0_i32 = arith.constant 0 : i32
    %c0_i32_0 = arith.constant 0 : i32
    %c0_i32_1 = arith.constant 0 : i32
    return %c0_i32, %c0_i32_0 : i32, i32
  }
  func.func @transform_13(%arg0: i32, %arg1: i32, %arg2: i32) -> (i32, i32) {
    %c0_i32 = arith.constant 0 : i32
    %c0_i32_0 = arith.constant 0 : i32
    %c0_i32_1 = arith.constant 0 : i32
    return %c0_i32, %c0_i32_0 : i32, i32
  }
  func.func @transform_14(%arg0: i32, %arg1: i32, %arg2: i32) -> (i32, i32) {
    %c0_i32 = arith.constant 0 : i32
    %c0_i32_0 = arith.constant 0 : i32
    %c0_i32_1 = arith.constant 0 : i32
    return %c0_i32, %c0_i32_0 : i32, i32
  }
  func.func @transform_15(%arg0: i32, %arg1: i32, %arg2: i32) -> (i32, i32) {
    %c0_i32 = arith.constant 0 : i32
    %c0_i32_0 = arith.constant 0 : i32
    %c0_i32_1 = arith.constant 0 : i32
    return %c0_i32, %c0_i32_0 : i32, i32
  }
  func.func @transform_16(%arg0: i32, %arg1: i32, %arg2: i32) -> (i32, i32) {
    %c0_i32 = arith.constant 0 : i32
    %c0_i32_0 = arith.constant 0 : i32
    %c0_i32_1 = arith.constant 0 : i32
    return %c0_i32, %c0_i32_0 : i32, i32
  }
  func.func @transform_17(%arg0: i32, %arg1: i32, %arg2: i32) -> (i32, i32) {
    %c0_i32 = arith.constant 0 : i32
    %c0_i32_0 = arith.constant 0 : i32
    %c0_i32_1 = arith.constant 0 : i32
    return %c0_i32, %c0_i32_0 : i32, i32
  }
  func.func @transform_18(%arg0: i32, %arg1: i32, %arg2: i32) -> (i32, i32) {
    %c0_i32 = arith.constant 0 : i32
    %c0_i32_0 = arith.constant 0 : i32
    %c0_i32_1 = arith.constant 0 : i32
    return %c0_i32, %c0_i32_0 : i32, i32
  }
  func.func @transform_19(%arg0: i32, %arg1: i32, %arg2: i32) -> (i32, i32, i32) {
    %c0_i32 = arith.constant 0 : i32
    %c0_i32_0 = arith.constant 0 : i32
    return %arg0, %arg1, %c0_i32 : i32, i32, i32
  }
}

</mosaic_0001>

<llo_original>
// kernel: tpu_custom_call.1
$region0: #{tpu_custom_call.1}
  #allocation0 [shape = 'u32[]', space=smem, size = 0x4, offset = 0x4, fixed_abs, tag = 'smem constant byte address 0x4 - core index']
  #allocation1 [shape = 'u32[144,128]{1,0:T(1,128)}', space=vmem, size = 0x12000, scoped, tag = 'internal scratch']
  #allocation2 [shape = 'f32[4,8,8]{2,1,0:T(8,128)}', space=vmem, size = 0x4000, scoped, tag = 'scratch operand']
  #allocation3 [shape = 'f32[4,8,1]{2,1,0:T(8,128)}', space=vmem, size = 0x4000, scoped, tag = 'scratch operand']
  #allocation4 [shape = 'f32[4,8,1]{2,1,0:T(8,128)}', space=vmem, size = 0x4000, scoped, tag = 'scratch operand']
  #allocation5 [shape = 'f32[4,8,8]{2,1,0:T(8,128)}', space=vmem, size = 0x4000, scoped, tag = 'scratch operand']
  %s0 = inlined_call_operand.hbm [shape: f32[2,8,32], index: 0, kind: input, shape index: {}]
  %s1 = inlined_call_operand.hbm [shape: f32[2,8,32], index: 1, kind: input, shape index: {}]
  %s2 = inlined_call_operand.vmem [shape: f32[2,1,8], index: 2, kind: input, shape index: {}]
  %s3 = inlined_call_operand.vmem [shape: f32[32,32], index: 3, kind: input, shape index: {}]
  %s4 = inlined_call_operand.vmem [shape: f32[1,32], index: 4, kind: input, shape index: {}]
  %s5 = inlined_call_operand.vmem [shape: f32[32,32], index: 5, kind: input, shape index: {}]
  %s6 = inlined_call_operand.vmem [shape: f32[1,32], index: 6, kind: input, shape index: {}]
  %s7 = inlined_call_operand.vmem [shape: f32[32,32], index: 7, kind: input, shape index: {}]
  %s8 = inlined_call_operand.vmem [shape: f32[1,32], index: 8, kind: input, shape index: {}]
  %s9 = inlined_call_operand.vmem [shape: f32[32,32], index: 9, kind: input, shape index: {}]
  %s10 = inlined_call_operand.vmem [shape: f32[1,32], index: 10, kind: input, shape index: {}]
  %s11 = inlined_call_operand.vmem [shape: f32[1,32], index: 11, kind: input, shape index: {}]
  %s12 = inlined_call_operand.vmem [shape: f32[1,32], index: 12, kind: input, shape index: {}]
  %s13 = inlined_call_operand.vmem [shape: f32[32,128], index: 13, kind: input, shape index: {}]
  %s14 = inlined_call_operand.vmem [shape: f32[1,128], index: 14, kind: input, shape index: {}]
  %s15 = inlined_call_operand.vmem [shape: f32[128,32], index: 15, kind: input, shape index: {}]
  %s16 = inlined_call_operand.vmem [shape: f32[1,32], index: 16, kind: input, shape index: {}]
  %s17 = inlined_call_operand.vmem [shape: f32[1,32], index: 17, kind: input, shape index: {}]
  %s18 = inlined_call_operand.vmem [shape: f32[1,32], index: 18, kind: input, shape index: {}]
  %s19 = inlined_call_operand.hbm [shape: f32[2,8,32], index: 19, kind: output, shape index: {}]
  %s20 = sld [smem:[#allocation0]]
  $region129: #{tpu_custom_call.1} parent=0
    _
  %s22 = ssub.s32 1, %s20
  %s23 = scalar_select 0, %s22, %s20
  $region1: #{tpu_custom_call.1} parent=0
    #allocation6 [shape = 'u8[8192]{0}', space=vmem, size = 0x2000, scoped, tag = 'input window, operand 0']
    #allocation7 [shape = 's32[2]{0}', space=sflag, size = 0x8, scoped, tag = 'scoped memory for tpu_custom_call.1']
    #allocation8 [shape = 's32[2]{0}', space=sflag, size = 0x8, scoped, tag = 'scoped memory for tpu_custom_call.1']
    #allocation9 [shape = 'u8[8192]{0}', space=vmem, size = 0x2000, scoped, tag = 'input window, operand 1']
    #allocation10 [shape = 's32[2]{0}', space=sflag, size = 0x8, scoped, tag = 'scoped memory for tpu_custom_call.1']
    #allocation11 [shape = 'u8[8192]{0}', space=vmem, size = 0x2000, scoped, tag = 'output window, operand 0']
    %24 = vsyncpa [#allocation7], 0
    %s25 = scalar_lea.sflag [#allocation7], 1
    %26 = vsyncpa %s25, 0
    %27 = vsyncpa [#allocation10], 0
    %s28 = scalar_lea.sflag [#allocation10], 1
    %29 = vsyncpa %s28, 0
    %30 = vsyncpa [#allocation8], 0
    %s31 = scalar_lea.sflag [#allocation8], 1
    %32 = vsyncpa %s31, 0
    loop: start=0, step=1, limit=4
    $region2: #{tpu_custom_call.1} parent=1 // loop_pre_header
      _
    $region3: #{tpu_custom_call.1} parent=1 // loop_header
      %s34 = sphi 0, %s38
      %p35 = scmp.ge.s32.totalorder %s34, 4
      %s41 = sphi 0, %s60
      %s42 = sphi 0, %s56
      %s43 = sphi 0, %s52
      %s44 = sphi 0, %s41
      %s45 = sphi 0, %s42
      %s46 = sphi 0, %s43
      %s47 = sphi 0, %s44
      %s48 = sphi 0, %s45
      %s49 = sphi 0, %s46
      %s65 = sphi 0, %s67
      %s68 = sphi 0, %s65
      %s69 = sphi 0, %s68
      %s85 = sphi 0, %s69
      %s93 = sphi 0, %s95
      %s96 = sphi 0, %s93
      %s97 = sphi 0, %s96
      %s113 = sphi 0, %s97
      %s121 = sphi 0, %s123
      %s124 = sphi 0, %s121
      %s125 = sphi 0, %s124
      %s141 = sphi 0, %s125
      %s145 = sphi 0, %s145
      %s147 = sphi 0, %s145
      %s148 = sphi 0, %s147
      %s162 = sphi 0, %s148
      %s166 = sphi 0, %s166
      %s168 = sphi 0, %s166
      %s169 = sphi 0, %s168
      %s183 = sphi 0, %s169
      %s187 = sphi 0, %s187
      %s189 = sphi 0, %s187
      %s190 = sphi 0, %s189
      %s204 = sphi 0, %s190
      %s208 = sphi 0, %s208
      %s210 = sphi 0, %s208
      %s211 = sphi 0, %s210
      %s225 = sphi 0, %s211
      %s229 = sphi 0, %s229
      %s231 = sphi 0, %s229
      %s232 = sphi 0, %s231
      %s246 = sphi 0, %s232
      %s250 = sphi 0, %s250
      %s252 = sphi 0, %s250
      %s253 = sphi 0, %s252
      %s267 = sphi 0, %s253
      %s271 = sphi 0, %s271
      %s273 = sphi 0, %s271
      %s274 = sphi 0, %s273
      %s288 = sphi 0, %s274
      %s292 = sphi 0, %s292
      %s294 = sphi 0, %s292
      %s295 = sphi 0, %s294
      %s309 = sphi 0, %s295
      %s313 = sphi 0, %s313
      %s315 = sphi 0, %s313
      %s316 = sphi 0, %s315
      %s330 = sphi 0, %s316
      %s334 = sphi 0, %s334
      %s336 = sphi 0, %s334
      %s337 = sphi 0, %s336
      %s351 = sphi 0, %s337
      %s355 = sphi 0, %s355
      %s357 = sphi 0, %s355
      %s358 = sphi 0, %s357
      %s372 = sphi 0, %s358
      %s376 = sphi 0, %s376
      %s378 = sphi 0, %s376
      %s379 = sphi 0, %s378
      %s393 = sphi 0, %s379
      %s397 = sphi 0, %s397
      %s399 = sphi 0, %s397
      %s400 = sphi 0, %s399
      %s414 = sphi 0, %s400
      %s418 = sphi 0, %s418
      %s420 = sphi 0, %s418
      %s421 = sphi 0, %s420
      %s435 = sphi 0, %s421
      %s439 = sphi 0, %s439
      %s441 = sphi 0, %s439
      %s442 = sphi 0, %s441
      %s456 = sphi 0, %s442
      %s460 = sphi 0, %s460
      %s462 = sphi 0, %s460
      %s463 = sphi 0, %s462
      %s477 = sphi 0, %s463
      %s485 = sphi 0, %s487
      %s488 = sphi 0, %s485
      %s489 = sphi 0, %s488
      %s505 = sphi 0, %s489
    $region4: #{tpu_custom_call.1} parent=1 // loop_header_branch
      %37 = sbr.rel (%p35) target = $region8
    $region5: #{tpu_custom_call.1} parent=1 // loop_body
      %s39 = ssub.s32 %s34, 1
      %s40 = ssub.s32 %s34, 2
      %s50 = sadd.s32 1, %s43
      %p51 = scmp.ge.s32.totalorder %s50, 1
      %s52 = scalar_select %p51, 0, %s50
      %s53 = sadd.s32 1, %s42
      %s54 = scalar_select %p51, %s53, %s42
      %p55 = scmp.ge.s32.totalorder %s54, 1
      %s56 = scalar_select %p55, 0, %s54
      %s57 = sadd.s32 1, %s41
      %s58 = scalar_select %p55, %s57, %s41
      %p59 = scmp.ge.s32.totalorder %s58, 2
      %s60 = scalar_select %p59, 0, %s58
      %s61 = ssub.s32 %s41, %s60
      %s62 = ssub.s32 %s42, %s56
      %s63 = sor.u32 %s61, %s62
      %p64 = scmp.eq.s32.totalorder %s63, 0
      %s66 = sadd.s32 %s65, 1
      %s67 = scalar_select %p64, %s65, %s66
      %p70 = pneg %p64
      %p71 = scmp.eq.s32.totalorder %s34, 1
      %p72 = por %p70, %p71
      %p73 = scmp.ne.s32.totalorder %s65, %s68
      %p74 = scmp.eq.s32.totalorder %s34, 0
      %p75 = por %p73, %p74
      %p76 = scmp.ne.s32.totalorder %s65, %s68
      %p77 = scmp.eq.s32.totalorder %s39, 1
      %p78 = por %p76, %p77
      %p79 = scmp.ne.s32.totalorder %s68, %s69
      %p80 = scmp.eq.s32.totalorder %s39, 0
      %p81 = por %p79, %p80
      %p82 = scmp.ne.s32.totalorder %s68, %s69
      %p83 = scmp.eq.s32.totalorder %s40, 1
      %p84 = por %p82, %p83
      %p86 = scmp.ne.s32.totalorder %s69, %s85
      %p87 = scmp.eq.s32.totalorder %s40, 0
      %p88 = por %p86, %p87
      %s89 = ssub.s32 %s41, %s60
      %s90 = ssub.s32 %s43, %s52
      %s91 = sor.u32 %s89, %s90
      %p92 = scmp.eq.s32.totalorder %s91, 0
      %s94 = sadd.s32 %s93, 1
      %s95 = scalar_select %p92, %s93, %s94
      %p98 = pneg %p92
      %p99 = scmp.eq.s32.totalorder %s34, 1
      %p100 = por %p98, %p99
      %p101 = scmp.ne.s32.totalorder %s93, %s96
      %p102 = scmp.eq.s32.totalorder %s34, 0
      %p103 = por %p101, %p102
      %p104 = scmp.ne.s32.totalorder %s93, %s96
      %p105 = scmp.eq.s32.totalorder %s39, 1
      %p106 = por %p104, %p105
      %p107 = scmp.ne.s32.totalorder %s96, %s97
      %p108 = scmp.eq.s32.totalorder %s39, 0
      %p109 = por %p107, %p108
      %p110 = scmp.ne.s32.totalorder %s96, %s97
      %p111 = scmp.eq.s32.totalorder %s40, 1
      %p112 = por %p110, %p111
      %p114 = scmp.ne.s32.totalorder %s97, %s113
      %p115 = scmp.eq.s32.totalorder %s40, 0
      %p116 = por %p114, %p115
      %s117 = ssub.s32 %s41, %s60
      %s118 = ssub.s32 %s43, %s52
      %s119 = sor.u32 %s117, %s118
      %p120 = scmp.eq.s32.totalorder %s119, 0
      %s122 = sadd.s32 %s121, 1
      %s123 = scalar_select %p120, %s121, %s122
      %p126 = pneg %p120
      %p127 = scmp.eq.s32.totalorder %s34, 1
      %p128 = por %p126, %p127
      %p129 = scmp.ne.s32.totalorder %s121, %s124
      %p130 = scmp.eq.s32.totalorder %s34, 0
      %p131 = por %p129, %p130
      %p132 = scmp.ne.s32.totalorder %s121, %s124
      %p133 = scmp.eq.s32.totalorder %s39, 1
      %p134 = por %p132, %p133
      %p135 = scmp.ne.s32.totalorder %s124, %s125
      %p136 = scmp.eq.s32.totalorder %s39, 0
      %p137 = por %p135, %p136
      %p138 = scmp.ne.s32.totalorder %s124, %s125
      %p139 = scmp.eq.s32.totalorder %s40, 1
      %p140 = por %p138, %p139
      %p142 = scmp.ne.s32.totalorder %s125, %s141
      %p143 = scmp.eq.s32.totalorder %s40, 0
      %p144 = por %p142, %p143
      %s146 = sadd.s32 %s145, 1
      %p149 = scmp.eq.s32.totalorder %s34, 1
      %p150 = scmp.ne.s32.totalorder %s145, %s147
      %p151 = scmp.eq.s32.totalorder %s34, 0
      %p152 = por %p150, %p151
      %p153 = scmp.ne.s32.totalorder %s145, %s147
      %p154 = scmp.eq.s32.totalorder %s39, 1
      %p155 = por %p153, %p154
      %p156 = scmp.ne.s32.totalorder %s147, %s148
      %p157 = scmp.eq.s32.totalorder %s39, 0
      %p158 = por %p156, %p157
      %p159 = scmp.ne.s32.totalorder %s147, %s148
      %p160 = scmp.eq.s32.totalorder %s40, 1
      %p161 = por %p159, %p160
      %p163 = scmp.ne.s32.totalorder %s148, %s162
      %p164 = scmp.eq.s32.totalorder %s40, 0
      %p165 = por %p163, %p164
      %s167 = sadd.s32 %s166, 1
      %p170 = scmp.eq.s32.totalorder %s34, 1
      %p171 = scmp.ne.s32.totalorder %s166, %s168
      %p172 = scmp.eq.s32.totalorder %s34, 0
      %p173 = por %p171, %p172
      %p174 = scmp.ne.s32.totalorder %s166, %s168
      %p175 = scmp.eq.s32.totalorder %s39, 1
      %p176 = por %p174, %p175
      %p177 = scmp.ne.s32.totalorder %s168, %s169
      %p178 = scmp.eq.s32.totalorder %s39, 0
      %p179 = por %p177, %p178
      %p180 = scmp.ne.s32.totalorder %s168, %s169
      %p181 = scmp.eq.s32.totalorder %s40, 1
      %p182 = por %p180, %p181
      %p184 = scmp.ne.s32.totalorder %s169, %s183
      %p185 = scmp.eq.s32.totalorder %s40, 0
      %p186 = por %p184, %p185
      %s188 = sadd.s32 %s187, 1
      %p191 = scmp.eq.s32.totalorder %s34, 1
      %p192 = scmp.ne.s32.totalorder %s187, %s189
      %p193 = scmp.eq.s32.totalorder %s34, 0
      %p194 = por %p192, %p193
      %p195 = scmp.ne.s32.totalorder %s187, %s189
      %p196 = scmp.eq.s32.totalorder %s39, 1
      %p197 = por %p195, %p196
      %p198 = scmp.ne.s32.totalorder %s189, %s190
      %p199 = scmp.eq.s32.totalorder %s39, 0
      %p200 = por %p198, %p199
      %p201 = scmp.ne.s32.totalorder %s189, %s190
      %p202 = scmp.eq.s32.totalorder %s40, 1
      %p203 = por %p201, %p202
      %p205 = scmp.ne.s32.totalorder %s190, %s204
      %p206 = scmp.eq.s32.totalorder %s40, 0
      %p207 = por %p205, %p206
      %s209 = sadd.s32 %s208, 1
      %p212 = scmp.eq.s32.totalorder %s34, 1
      %p213 = scmp.ne.s32.totalorder %s208, %s210
      %p214 = scmp.eq.s32.totalorder %s34, 0
      %p215 = por %p213, %p214
      %p216 = scmp.ne.s32.totalorder %s208, %s210
      %p217 = scmp.eq.s32.totalorder %s39, 1
      %p218 = por %p216, %p217
      %p219 = scmp.ne.s32.totalorder %s210, %s211
      %p220 = scmp.eq.s32.totalorder %s39, 0
      %p221 = por %p219, %p220
      %p222 = scmp.ne.s32.totalorder %s210, %s211
      %p223 = scmp.eq.s32.totalorder %s40, 1
      %p224 = por %p222, %p223
      %p226 = scmp.ne.s32.totalorder %s211, %s225
      %p227 = scmp.eq.s32.totalorder %s40, 0
      %p228 = por %p226, %p227
      %s230 = sadd.s32 %s229, 1
      %p233 = scmp.eq.s32.totalorder %s34, 1
      %p234 = scmp.ne.s32.totalorder %s229, %s231
      %p235 = scmp.eq.s32.totalorder %s34, 0
      %p236 = por %p234, %p235
      %p237 = scmp.ne.s32.totalorder %s229, %s231
      %p238 = scmp.eq.s32.totalorder %s39, 1
      %p239 = por %p237, %p238
      %p240 = scmp.ne.s32.totalorder %s231, %s232
      %p241 = scmp.eq.s32.totalorder %s39, 0
      %p242 = por %p240, %p241
      %p243 = scmp.ne.s32.totalorder %s231, %s232
      %p244 = scmp.eq.s32.totalorder %s40, 1
      %p245 = por %p243, %p244
      %p247 = scmp.ne.s32.totalorder %s232, %s246
      %p248 = scmp.eq.s32.totalorder %s40, 0
      %p249 = por %p247, %p248
      %s251 = sadd.s32 %s250, 1
      %p254 = scmp.eq.s32.totalorder %s34, 1
      %p255 = scmp.ne.s32.totalorder %s250, %s252
      %p256 = scmp.eq.s32.totalorder %s34, 0
      %p257 = por %p255, %p256
      %p258 = scmp.ne.s32.totalorder %s250, %s252
      %p259 = scmp.eq.s32.totalorder %s39, 1
      %p260 = por %p258, %p259
      %p261 = scmp.ne.s32.totalorder %s252, %s253
      %p262 = scmp.eq.s32.totalorder %s39, 0
      %p263 = por %p261, %p262
      %p264 = scmp.ne.s32.totalorder %s252, %s253
      %p265 = scmp.eq.s32.totalorder %s40, 1
      %p266 = por %p264, %p265
      %p268 = scmp.ne.s32.totalorder %s253, %s267
      %p269 = scmp.eq.s32.totalorder %s40, 0
      %p270 = por %p268, %p269
      %s272 = sadd.s32 %s271, 1
      %p275 = scmp.eq.s32.totalorder %s34, 1
      %p276 = scmp.ne.s32.totalorder %s271, %s273
      %p277 = scmp.eq.s32.totalorder %s34, 0
      %p278 = por %p276, %p277
      %p279 = scmp.ne.s32.totalorder %s271, %s273
      %p280 = scmp.eq.s32.totalorder %s39, 1
      %p281 = por %p279, %p280
      %p282 = scmp.ne.s32.totalorder %s273, %s274
      %p283 = scmp.eq.s32.totalorder %s39, 0
      %p284 = por %p282, %p283
      %p285 = scmp.ne.s32.totalorder %s273, %s274
      %p286 = scmp.eq.s32.totalorder %s40, 1
      %p287 = por %p285, %p286
      %p289 = scmp.ne.s32.totalorder %s274, %s288
      %p290 = scmp.eq.s32.totalorder %s40, 0
      %p291 = por %p289, %p290
      %s293 = sadd.s32 %s292, 1
      %p296 = scmp.eq.s32.totalorder %s34, 1
      %p297 = scmp.ne.s32.totalorder %s292, %s294
      %p298 = scmp.eq.s32.totalorder %s34, 0
      %p299 = por %p297, %p298
      %p300 = scmp.ne.s32.totalorder %s292, %s294
      %p301 = scmp.eq.s32.totalorder %s39, 1
      %p302 = por %p300, %p301
      %p303 = scmp.ne.s32.totalorder %s294, %s295
      %p304 = scmp.eq.s32.totalorder %s39, 0
      %p305 = por %p303, %p304
      %p306 = scmp.ne.s32.totalorder %s294, %s295
      %p307 = scmp.eq.s32.totalorder %s40, 1
      %p308 = por %p306, %p307
      %p310 = scmp.ne.s32.totalorder %s295, %s309
      %p311 = scmp.eq.s32.totalorder %s40, 0
      %p312 = por %p310, %p311
      %s314 = sadd.s32 %s313, 1
      %p317 = scmp.eq.s32.totalorder %s34, 1
      %p318 = scmp.ne.s32.totalorder %s313, %s315
      %p319 = scmp.eq.s32.totalorder %s34, 0
      %p320 = por %p318, %p319
      %p321 = scmp.ne.s32.totalorder %s313, %s315
      %p322 = scmp.eq.s32.totalorder %s39, 1
      %p323 = por %p321, %p322
      %p324 = scmp.ne.s32.totalorder %s315, %s316
      %p325 = scmp.eq.s32.totalorder %s39, 0
      %p326 = por %p324, %p325
      %p327 = scmp.ne.s32.totalorder %s315, %s316
      %p328 = scmp.eq.s32.totalorder %s40, 1
      %p329 = por %p327, %p328
      %p331 = scmp.ne.s32.totalorder %s316, %s330
      %p332 = scmp.eq.s32.totalorder %s40, 0
      %p333 = por %p331, %p332
      %s335 = sadd.s32 %s334, 1
      %p338 = scmp.eq.s32.totalorder %s34, 1
      %p339 = scmp.ne.s32.totalorder %s334, %s336
      %p340 = scmp.eq.s32.totalorder %s34, 0
      %p341 = por %p339, %p340
      %p342 = scmp.ne.s32.totalorder %s334, %s336
      %p343 = scmp.eq.s32.totalorder %s39, 1
      %p344 = por %p342, %p343
      %p345 = scmp.ne.s32.totalorder %s336, %s337
      %p346 = scmp.eq.s32.totalorder %s39, 0
      %p347 = por %p345, %p346
      %p348 = scmp.ne.s32.totalorder %s336, %s337
      %p349 = scmp.eq.s32.totalorder %s40, 1
      %p350 = por %p348, %p349
      %p352 = scmp.ne.s32.totalorder %s337, %s351
      %p353 = scmp.eq.s32.totalorder %s40, 0
      %p354 = por %p352, %p353
      %s356 = sadd.s32 %s355, 1
      %p359 = scmp.eq.s32.totalorder %s34, 1
      %p360 = scmp.ne.s32.totalorder %s355, %s357
      %p361 = scmp.eq.s32.totalorder %s34, 0
      %p362 = por %p360, %p361
      %p363 = scmp.ne.s32.totalorder %s355, %s357
      %p364 = scmp.eq.s32.totalorder %s39, 1
      %p365 = por %p363, %p364
      %p366 = scmp.ne.s32.totalorder %s357, %s358
      %p367 = scmp.eq.s32.totalorder %s39, 0
      %p368 = por %p366, %p367
      %p369 = scmp.ne.s32.totalorder %s357, %s358
      %p370 = scmp.eq.s32.totalorder %s40, 1
      %p371 = por %p369, %p370
      %p373 = scmp.ne.s32.totalorder %s358, %s372
      %p374 = scmp.eq.s32.totalorder %s40, 0
      %p375 = por %p373, %p374
      %s377 = sadd.s32 %s376, 1
      %p380 = scmp.eq.s32.totalorder %s34, 1
      %p381 = scmp.ne.s32.totalorder %s376, %s378
      %p382 = scmp.eq.s32.totalorder %s34, 0
      %p383 = por %p381, %p382
      %p384 = scmp.ne.s32.totalorder %s376, %s378
      %p385 = scmp.eq.s32.totalorder %s39, 1
      %p386 = por %p384, %p385
      %p387 = scmp.ne.s32.totalorder %s378, %s379
      %p388 = scmp.eq.s32.totalorder %s39, 0
      %p389 = por %p387, %p388
      %p390 = scmp.ne.s32.totalorder %s378, %s379
      %p391 = scmp.eq.s32.totalorder %s40, 1
      %p392 = por %p390, %p391
      %p394 = scmp.ne.s32.totalorder %s379, %s393
      %p395 = scmp.eq.s32.totalorder %s40, 0
      %p396 = por %p394, %p395
      %s398 = sadd.s32 %s397, 1
      %p401 = scmp.eq.s32.totalorder %s34, 1
      %p402 = scmp.ne.s32.totalorder %s397, %s399
      %p403 = scmp.eq.s32.totalorder %s34, 0
      %p404 = por %p402, %p403
      %p405 = scmp.ne.s32.totalorder %s397, %s399
      %p406 = scmp.eq.s32.totalorder %s39, 1
      %p407 = por %p405, %p406
      %p408 = scmp.ne.s32.totalorder %s399, %s400
      %p409 = scmp.eq.s32.totalorder %s39, 0
      %p410 = por %p408, %p409
      %p411 = scmp.ne.s32.totalorder %s399, %s400
      %p412 = scmp.eq.s32.totalorder %s40, 1
      %p413 = por %p411, %p412
      %p415 = scmp.ne.s32.totalorder %s400, %s414
      %p416 = scmp.eq.s32.totalorder %s40, 0
      %p417 = por %p415, %p416
      %s419 = sadd.s32 %s418, 1
      %p422 = scmp.eq.s32.totalorder %s34, 1
      %p423 = scmp.ne.s32.totalorder %s418, %s420
      %p424 = scmp.eq.s32.totalorder %s34, 0
      %p425 = por %p423, %p424
      %p426 = scmp.ne.s32.totalorder %s418, %s420
      %p427 = scmp.eq.s32.totalorder %s39, 1
      %p428 = por %p426, %p427
      %p429 = scmp.ne.s32.totalorder %s420, %s421
      %p430 = scmp.eq.s32.totalorder %s39, 0
      %p431 = por %p429, %p430
      %p432 = scmp.ne.s32.totalorder %s420, %s421
      %p433 = scmp.eq.s32.totalorder %s40, 1
      %p434 = por %p432, %p433
      %p436 = scmp.ne.s32.totalorder %s421, %s435
      %p437 = scmp.eq.s32.totalorder %s40, 0
      %p438 = por %p436, %p437
      %s440 = sadd.s32 %s439, 1
      %p443 = scmp.eq.s32.totalorder %s34, 1
      %p444 = scmp.ne.s32.totalorder %s439, %s441
      %p445 = scmp.eq.s32.totalorder %s34, 0
      %p446 = por %p444, %p445
      %p447 = scmp.ne.s32.totalorder %s439, %s441
      %p448 = scmp.eq.s32.totalorder %s39, 1
      %p449 = por %p447, %p448
      %p450 = scmp.ne.s32.totalorder %s441, %s442
      %p451 = scmp.eq.s32.totalorder %s39, 0
      %p452 = por %p450, %p451
      %p453 = scmp.ne.s32.totalorder %s441, %s442
      %p454 = scmp.eq.s32.totalorder %s40, 1
      %p455 = por %p453, %p454
      %p457 = scmp.ne.s32.totalorder %s442, %s456
      %p458 = scmp.eq.s32.totalorder %s40, 0
      %p459 = por %p457, %p458
      %s461 = sadd.s32 %s460, 1
      %p464 = scmp.eq.s32.totalorder %s34, 1
      %p465 = scmp.ne.s32.totalorder %s460, %s462
      %p466 = scmp.eq.s32.totalorder %s34, 0
      %p467 = por %p465, %p466
      %p468 = scmp.ne.s32.totalorder %s460, %s462
      %p469 = scmp.eq.s32.totalorder %s39, 1
      %p470 = por %p468, %p469
      %p471 = scmp.ne.s32.totalorder %s462, %s463
      %p472 = scmp.eq.s32.totalorder %s39, 0
      %p473 = por %p471, %p472
      %p474 = scmp.ne.s32.totalorder %s462, %s463
      %p475 = scmp.eq.s32.totalorder %s40, 1
      %p476 = por %p474, %p475
      %p478 = scmp.ne.s32.totalorder %s463, %s477
      %p479 = scmp.eq.s32.totalorder %s40, 0
      %p480 = por %p478, %p479
      %s481 = ssub.s32 %s41, %s60
      %s482 = ssub.s32 %s42, %s56
      %s483 = sor.u32 %s481, %s482
      %p484 = scmp.eq.s32.totalorder %s483, 0
      %s486 = sadd.s32 %s485, 1
      %s487 = scalar_select %p484, %s485, %s486
      %p490 = pneg %p484
      %p491 = scmp.eq.s32.totalorder %s34, 1
      %p492 = por %p490, %p491
      %p493 = scmp.ne.s32.totalorder %s485, %s488
      %p494 = scmp.eq.s32.totalorder %s34, 0
      %p495 = por %p493, %p494
      %p496 = scmp.ne.s32.totalorder %s485, %s488
      %p497 = scmp.eq.s32.totalorder %s39, 1
      %p498 = por %p496, %p497
      %p499 = scmp.ne.s32.totalorder %s488, %s489
      %p500 = scmp.eq.s32.totalorder %s39, 0
      %p501 = por %p499, %p500
      %p502 = scmp.ne.s32.totalorder %s488, %s489
      %p503 = scmp.eq.s32.totalorder %s40, 1
      %p504 = por %p502, %p503
      %p506 = scmp.ne.s32.totalorder %s489, %s505
      %p507 = scmp.eq.s32.totalorder %s40, 0
      %p508 = por %p506, %p507
      %p509 = scmp.le.s32.totalorder 1, %s34
      %p510 = scmp.lt.s32.totalorder %s34, 3
      %p511 = pnand %p509, %p510
      %p512 = pneg %p511
      // Predicated region
      $region9: #{tpu_custom_call.1} parent=5 // pred_check
        _
      $region10: #{tpu_custom_call.1} parent=5 // pred_check_branch
        %514 = sbr.rel (%p511) target = $region12
      $region11: #{tpu_custom_call.1} parent=5 // pred_region
        %s515 = ssub.s32 %s34, 1
        // Predicated region
        $region13: #{tpu_custom_call.1} parent=11 // pred_check
          %p516 = pneg %p158
        $region14: #{tpu_custom_call.1} parent=11 // pred_check_branch
          %518 = sbr.rel (%p516) target = $region16
        $region15: #{tpu_custom_call.1} parent=11 // pred_region
          _
        $region16: #{tpu_custom_call.1} parent=11 // pred_fallthru
          _
        // Predicated region
        $region17: #{tpu_custom_call.1} parent=11 // pred_check
          %p519 = pneg %p179
        $region18: #{tpu_custom_call.1} parent=11 // pred_check_branch
          %521 = sbr.rel (%p519) target = $region20
        $region19: #{tpu_custom_call.1} parent=11 // pred_region
          _
        $region20: #{tpu_custom_call.1} parent=11 // pred_fallthru
          _
        // Predicated region
        $region21: #{tpu_custom_call.1} parent=11 // pred_check
          %p522 = pneg %p200
        $region22: #{tpu_custom_call.1} parent=11 // pred_check_branch
          %524 = sbr.rel (%p522) target = $region24
        $region23: #{tpu_custom_call.1} parent=11 // pred_region
          _
        $region24: #{tpu_custom_call.1} parent=11 // pred_fallthru
          _
        // Predicated region
        $region25: #{tpu_custom_call.1} parent=11 // pred_check
          %p525 = pneg %p221
        $region26: #{tpu_custom_call.1} parent=11 // pred_check_branch
          %527 = sbr.rel (%p525) target = $region28
        $region27: #{tpu_custom_call.1} parent=11 // pred_region
          _
        $region28: #{tpu_custom_call.1} parent=11 // pred_fallthru
          _
        // Predicated region
        $region29: #{tpu_custom_call.1} parent=11 // pred_check
          %p528 = pneg %p242
        $region30: #{tpu_custom_call.1} parent=11 // pred_check_branch
          %530 = sbr.rel (%p528) target = $region32
        $region31: #{tpu_custom_call.1} parent=11 // pred_region
          _
        $region32: #{tpu_custom_call.1} parent=11 // pred_fallthru
          _
        // Predicated region
        $region33: #{tpu_custom_call.1} parent=11 // pred_check
          %p531 = pneg %p263
        $region34: #{tpu_custom_call.1} parent=11 // pred_check_branch
          %533 = sbr.rel (%p531) target = $region36
        $region35: #{tpu_custom_call.1} parent=11 // pred_region
          _
        $region36: #{tpu_custom_call.1} parent=11 // pred_fallthru
          _
        // Predicated region
        $region37: #{tpu_custom_call.1} parent=11 // pred_check
          %p534 = pneg %p284
        $region38: #{tpu_custom_call.1} parent=11 // pred_check_branch
          %536 = sbr.rel (%p534) target = $region40
        $region39: #{tpu_custom_call.1} parent=11 // pred_region
          _
        $region40: #{tpu_custom_call.1} parent=11 // pred_fallthru
          _
        // Predicated region
        $region41: #{tpu_custom_call.1} parent=11 // pred_check
          %p537 = pneg %p305
        $region42: #{tpu_custom_call.1} parent=11 // pred_check_branch
          %539 = sbr.rel (%p537) target = $region44
        $region43: #{tpu_custom_call.1} parent=11 // pred_region
          _
        $region44: #{tpu_custom_call.1} parent=11 // pred_fallthru
          _
        // Predicated region
        $region45: #{tpu_custom_call.1} parent=11 // pred_check
          %p540 = pneg %p326
        $region46: #{tpu_custom_call.1} parent=11 // pred_check_branch
          %542 = sbr.rel (%p540) target = $region48
        $region47: #{tpu_custom_call.1} parent=11 // pred_region
          _
        $region48: #{tpu_custom_call.1} parent=11 // pred_fallthru
          _
        // Predicated region
        $region49: #{tpu_custom_call.1} parent=11 // pred_check
          %p543 = pneg %p347
        $region50: #{tpu_custom_call.1} parent=11 // pred_check_branch
          %545 = sbr.rel (%p543) target = $region52
        $region51: #{tpu_custom_call.1} parent=11 // pred_region
          _
        $region52: #{tpu_custom_call.1} parent=11 // pred_fallthru
          _
        // Predicated region
        $region53: #{tpu_custom_call.1} parent=11 // pred_check
          %p546 = pneg %p368
        $region54: #{tpu_custom_call.1} parent=11 // pred_check_branch
          %548 = sbr.rel (%p546) target = $region56
        $region55: #{tpu_custom_call.1} parent=11 // pred_region
          _
        $region56: #{tpu_custom_call.1} parent=11 // pred_fallthru
          _
        // Predicated region
        $region57: #{tpu_custom_call.1} parent=11 // pred_check
          %p549 = pneg %p389
        $region58: #{tpu_custom_call.1} parent=11 // pred_check_branch
          %551 = sbr.rel (%p549) target = $region60
        $region59: #{tpu_custom_call.1} parent=11 // pred_region
          _
        $region60: #{tpu_custom_call.1} parent=11 // pred_fallthru
          _
        // Predicated region
        $region61: #{tpu_custom_call.1} parent=11 // pred_check
          %p552 = pneg %p410
        $region62: #{tpu_custom_call.1} parent=11 // pred_check_branch
          %554 = sbr.rel (%p552) target = $region64
        $region63: #{tpu_custom_call.1} parent=11 // pred_region
          _
        $region64: #{tpu_custom_call.1} parent=11 // pred_fallthru
          _
        // Predicated region
        $region65: #{tpu_custom_call.1} parent=11 // pred_check
          %p555 = pneg %p431
        $region66: #{tpu_custom_call.1} parent=11 // pred_check_branch
          %557 = sbr.rel (%p555) target = $region68
        $region67: #{tpu_custom_call.1} parent=11 // pred_region
          _
        $region68: #{tpu_custom_call.1} parent=11 // pred_fallthru
          _
        // Predicated region
        $region69: #{tpu_custom_call.1} parent=11 // pred_check
          %p558 = pneg %p452
        $region70: #{tpu_custom_call.1} parent=11 // pred_check_branch
          %560 = sbr.rel (%p558) target = $region72
        $region71: #{tpu_custom_call.1} parent=11 // pred_region
          _
        $region72: #{tpu_custom_call.1} parent=11 // pred_fallthru
          _
        // Predicated region
        $region73: #{tpu_custom_call.1} parent=11 // pred_check
          %p561 = pneg %p473
        $region74: #{tpu_custom_call.1} parent=11 // pred_check_branch
          %563 = sbr.rel (%p561) target = $region76
        $region75: #{tpu_custom_call.1} parent=11 // pred_region
          _
        $region76: #{tpu_custom_call.1} parent=11 // pred_fallthru
          _
      $region12: #{tpu_custom_call.1} parent=5 // pred_fallthru
        _
      %p564 = scmp.lt.s32.totalorder %s34, 2
      // Predicated region
      $region77: #{tpu_custom_call.1} parent=5 // pred_check
        %p565 = pneg %p564
      $region78: #{tpu_custom_call.1} parent=5 // pred_check_branch
        %567 = sbr.rel (%p565) target = $region80
      $region79: #{tpu_custom_call.1} parent=5 // pred_region
        // Predicated region
        $region81: #{tpu_custom_call.1} parent=79 // pred_check
          %p568 = pneg %p75
        $region82: #{tpu_custom_call.1} parent=79 // pred_check_branch
          %570 = sbr.rel (%p568) target = $region84
        $region83: #{tpu_custom_call.1} parent=79 // pred_region
          %s571 = sand.u32 %s65, 1
          %s572 = scalar_lea.sflag [#allocation7], %s571
          %s573 = sand.u32 %s65, 1
          %s574 = smul.addr %s573, 8
          %s575 = scalar_lea.vmem [#allocation6], %s574
          %s577 = ssub.s32 128, 128
          %578 = vsyncadd %s572, %s577
          %s579 = sadd.s32 %s42, %s41
          %s580 = smul.addr %s579, 128
          %s581 = scalar_lea.hbm %s0, %s580
          %s583 = sshll.u32 %s575, 4
          %s584 = int_to_ptr.vmem [resolvable:$true] %s583
          %586 = dma.hbm_to_vmem [thread:$0]  %s581, 128, %s584, %s572
        $region84: #{tpu_custom_call.1} parent=79 // pred_fallthru
          _
        // Predicated region
        $region85: #{tpu_custom_call.1} parent=79 // pred_check
          %p587 = pneg %p103
        $region86: #{tpu_custom_call.1} parent=79 // pred_check_branch
          %589 = sbr.rel (%p587) target = $region88
        $region87: #{tpu_custom_call.1} parent=79 // pred_region
          %s590 = sand.u32 %s93, 1
          %s591 = scalar_lea.sflag [#allocation10], %s590
          %s592 = sand.u32 %s93, 1
          %s593 = smul.addr %s592, 8
          %s594 = scalar_lea.vmem [#allocation9], %s593
          %s596 = ssub.s32 128, 128
          %597 = vsyncadd %s591, %s596
          %s598 = sadd.s32 %s43, %s41
          %s599 = smul.addr %s598, 128
          %s600 = scalar_lea.hbm %s1, %s599
          %s602 = sshll.u32 %s594, 4
          %s603 = int_to_ptr.vmem [resolvable:$true] %s602
          %605 = dma.hbm_to_vmem [thread:$0]  %s600, 128, %s603, %s591
        $region88: #{tpu_custom_call.1} parent=79 // pred_fallthru
          _
        // Predicated region
        $region89: #{tpu_custom_call.1} parent=79 // pred_check
          %p606 = pneg %p131
        $region90: #{tpu_custom_call.1} parent=79 // pred_check_branch
          %608 = sbr.rel (%p606) target = $region92
        $region91: #{tpu_custom_call.1} parent=79 // pred_region
          %p609 = scmp.lt.s32.totalorder %s41, 1
          %s610 = scalar_select %p609, %s41, 1
          %p611 = scmp.lt.s32.totalorder %s43, 0
          %s612 = scalar_select %p611, %s43, 0
          %s613 = sadd.s32 %s612, %s610
          %s614 = scalar_lea.vmem %s2, %s613
        $region92: #{tpu_custom_call.1} parent=79 // pred_fallthru
          _
      $region80: #{tpu_custom_call.1} parent=5 // pred_fallthru
        _
      %p615 = scmp.le.s32.totalorder 1, %s34
      %p616 = scmp.lt.s32.totalorder %s34, 3
      %p617 = pnand %p615, %p616
      %p618 = pneg %p617
      // Predicated region
      $region93: #{tpu_custom_call.1} parent=5 // pred_check
        _
      $region94: #{tpu_custom_call.1} parent=5 // pred_check_branch
        %620 = sbr.rel (%p617) target = $region96
      $region95: #{tpu_custom_call.1} parent=5 // pred_region
        %s621 = ssub.s32 %s34, 1
        %s622 = sand.u32 %s68, 1
        %s623 = scalar_lea.sflag [#allocation7], %s622
        %s624 = sand.u32 %s68, 1
        %s625 = smul.addr %s624, 8
        %s626 = scalar_lea.vmem [#allocation6], %s625
        // Predicated region
        $region97: #{tpu_custom_call.1} parent=95 // pred_check
          %p627 = pneg %p81
        $region98: #{tpu_custom_call.1} parent=95 // pred_check_branch
          %629 = sbr.rel (%p627) target = $region100
        $region99: #{tpu_custom_call.1} parent=95 // pred_region
          %630 = dma.done %s623, 128
        $region100: #{tpu_custom_call.1} parent=95 // pred_fallthru
          _
        %s631 = sand.u32 %s96, 1
        %s632 = scalar_lea.sflag [#allocation10], %s631
        %s633 = sand.u32 %s96, 1
        %s634 = smul.addr %s633, 8
        %s635 = scalar_lea.vmem [#allocation9], %s634
        // Predicated region
        $region101: #{tpu_custom_call.1} parent=95 // pred_check
          %p636 = pneg %p109
        $region102: #{tpu_custom_call.1} parent=95 // pred_check_branch
          %638 = sbr.rel (%p636) target = $region104
        $region103: #{tpu_custom_call.1} parent=95 // pred_region
          %639 = dma.done %s632, 128
        $region104: #{tpu_custom_call.1} parent=95 // pred_fallthru
          _
        %s640 = sand.u32 %s68, 1
        %s641 = scalar_lea.sflag [#allocation7], %s640
        %s642 = sand.u32 %s68, 1
        %s643 = smul.addr %s642, 8
        %s644 = scalar_lea.vmem [#allocation6], %s643
        %p645 = pneg %p81
        %p646 = pneg %p78
        %s647 = sand.u32 %s96, 1
        %s648 = scalar_lea.sflag [#allocation10], %s647
        %s649 = sand.u32 %s96, 1
        %s650 = smul.addr %s649, 8
        %s651 = scalar_lea.vmem [#allocation9], %s650
        %p652 = pneg %p109
        %p653 = pneg %p106
        %p654 = scmp.lt.s32.totalorder %s44, 1
        %s655 = scalar_select %p654, %s44, 1
        %p656 = scmp.lt.s32.totalorder %s46, 0
        %s657 = scalar_select %p656, %s46, 0
        %s658 = sadd.s32 %s657, %s655
        %s659 = scalar_lea.vmem %s2, %s658
        %p660 = pneg %p137
        %p661 = pneg %p134
        %p662 = pneg %p158
        %p663 = pneg %p155
        %p664 = pneg %p179
        %p665 = pneg %p176
        %p666 = pneg %p200
        %p667 = pneg %p197
        %p668 = pneg %p221
        %p669 = pneg %p218
        %p670 = pneg %p242
        %p671 = pneg %p239
        %p672 = pneg %p263
        %p673 = pneg %p260
        %p674 = pneg %p284
        %p675 = pneg %p281
        %p676 = pneg %p305
        %p677 = pneg %p302
        %p678 = pneg %p326
        %p679 = pneg %p323
        %p680 = pneg %p347
        %p681 = pneg %p344
        %p682 = pneg %p368
        %p683 = pneg %p365
        %p684 = pneg %p389
        %p685 = pneg %p386
        %p686 = pneg %p410
        %p687 = pneg %p407
        %p688 = pneg %p431
        %p689 = pneg %p428
        %p690 = pneg %p452
        %p691 = pneg %p449
        %p692 = pneg %p473
        %p693 = pneg %p470
        %p694 = pneg %p501
        %p695 = pneg %p498
        %s696 = sand.u32 %s488, 1
        %s697 = scalar_lea.sflag [#allocation8], %s696
        %s698 = sand.u32 %s488, 1
        %s699 = smul.addr %s698, 8
        %s700 = scalar_lea.vmem [#allocation11], %s699
        %p701 = scmp.lt.s32.totalorder %s44, 1
        %s702 = scalar_select %p701, %s44, 1
        %p703 = scmp.lt.s32.totalorder %s46, 0
        %s704 = scalar_select %p703, %s46, 0
        %s705 = sadd.s32 %s704, %s702
        %s706 = scalar_lea.vmem %s2, %s705
        %s707 = smul.u32 %s45, 8
        %s708 = smul.u32 %s46, 8
        %p709 = scmp.eq.s32.totalorder %s46, 0
        // Predicated region
        $region105: #{tpu_custom_call.1} parent=95 // pred_check
          %p710 = pneg %p709
        $region106: #{tpu_custom_call.1} parent=95 // pred_check_branch
          %712 = sbr.rel (%p710) target = $region108
        $region107: #{tpu_custom_call.1} parent=95 // pred_region
          %vm713 = vcmask 7168
          %714 = vst.msk [vmem:[#allocation3] sm:$0xff] %vm713, -1e+30
          %715 = vst.msk [vmem:[#allocation3 + $0x8] sm:$0xff] %vm713, -1e+30
          %716 = vst.msk [vmem:[#allocation3 + $0x10] sm:$0xff] %vm713, -1e+30
          %717 = vst.msk [vmem:[#allocation3 + $0x18] sm:$0xff] %vm713, -1e+30
          %718 = vst.msk [vmem:[#allocation4] sm:$0xff] %vm713, 0.0
          %719 = vst.msk [vmem:[#allocation4 + $0x8] sm:$0xff] %vm713, 0.0
          %720 = vst.msk [vmem:[#allocation4 + $0x10] sm:$0xff] %vm713, 0.0
          %721 = vst.msk [vmem:[#allocation4 + $0x18] sm:$0xff] %vm713, 0.0
          %vm722 = vcmask 64512
          %723 = vst.msk [vmem:[#allocation5] sm:$0xff] %vm722, 0.0
          %724 = vst.msk [vmem:[#allocation5 + $0x8] sm:$0xff] %vm722, 0.0
          %725 = vst.msk [vmem:[#allocation5 + $0x10] sm:$0xff] %vm722, 0.0
          %726 = vst.msk [vmem:[#allocation5 + $0x18] sm:$0xff] %vm722, 0.0
          %v727 = vld [vmem:[%s626] sm:$0xff]
          %v728 = vld [vmem:[%s3] sm:$0xff]
          %v729 = vld [vmem:[%s3 + $0x8] sm:$0xff]
          %v730 = vld [vmem:[%s3 + $0x10] sm:$0xff]
          %v731 = vld [vmem:[%s3 + $0x18] sm:$0xff]
          %v732 = vld [vmem:[%s4] sm:$0x1]
          %v734 = vlaneseq
          %v735 = vshrl.u32 %v734, 7
          %v736 = vsub.s32 0, %v735
          %v737 = vrot.slane %v732, %v736
          %vm739 = vcmask 261120
          %v741 = vsel %vm739, %v727, 0
          %743 = vmatprep.subr.mxu0 0.0
          %744 = vmatpush1.msra.mxu0 0.0
          %745 = vmatprep.subr.mxu0 0.0
          %746 = vmatpush1.msra.mxu0 0.0
          %747 = vmatprep.subr.mxu0 0.0
          %748 = vmatpush1.msra.mxu0 0.0
          %749 = vmatprep.subr.mxu0 0.0
          %750 = vmatpush1.msra.mxu0 0.0
          %751 = vmatprep.subr.mxu0 0.0
          %752 = vmatpush1.msra.mxu0 0.0
          %753 = vmatprep.subr.mxu0 0.0
          %754 = vmatpush1.msra.mxu0 0.0
          %755 = vmatprep.subr.mxu0 0.0
          %756 = vmatpush1.msra.mxu0 0.0
          %757 = vmatprep.subr.mxu0 0.0
          %758 = vmatpush1.msra.mxu0 0.0
          %759 = vmatprep.subr.mxu0 0.0
          %760 = vmatpush1.msra.mxu0 0.0
          %761 = vmatprep.subr.mxu0 0.0
          %762 = vmatpush1.msra.mxu0 0.0
          %763 = vmatprep.subr.mxu0 0.0
          %764 = vmatpush1.msra.mxu0 0.0
          %765 = vmatprep.subr.mxu0 0.0
          %766 = vmatpush1.msra.mxu0 0.0
          %767 = vmatprep.subr.mxu0 0.0
          %768 = vmatpush1.msra.mxu0 %v731
          %769 = vmatprep.subr.mxu0 0.0
          %770 = vmatpush1.msra.mxu0 %v730
          %771 = vmatprep.subr.mxu0 0.0
          %772 = vmatpush1.msra.mxu0 %v729
          %773 = vmatprep.subr.mxu0 0.0
          %774 = vmatpush1.msra.mxu0 %v728
          %775 = vmatprep.subr.mxu0 0.0
          %776 = vmatpush2.msra.mxu0 0.0
          %777 = vmatprep.subr.mxu0 0.0
          %778 = vmatpush2.msra.mxu0 0.0
          %779 = vmatprep.subr.mxu0 0.0
          %780 = vmatpush2.msra.mxu0 0.0
          %781 = vmatprep.subr.mxu0 0.0
          %782 = vmatpush2.msra.mxu0 0.0
          %783 = vmatprep.subr.mxu0 0.0
          %784 = vmatpush2.msra.mxu0 0.0
          %785 = vmatprep.subr.mxu0 0.0
          %786 = vmatpush2.msra.mxu0 0.0
          %787 = vmatprep.subr.mxu0 0.0
          %788 = vmatpush2.msra.mxu0 0.0
          %789 = vmatprep.subr.mxu0 0.0
          %790 = vmatpush2.msra.mxu0 0.0
          %791 = vmatprep.subr.mxu0 0.0
          %792 = vmatpush2.msra.mxu0 0.0
          %793 = vmatprep.subr.mxu0 0.0
          %794 = vmatpush2.msra.mxu0 0.0
          %795 = vmatprep.subr.mxu0 0.0
          %796 = vmatpush2.msra.mxu0 0.0
          %797 = vmatprep.subr.mxu0 0.0
          %798 = vmatpush2.msra.mxu0 0.0
          %799 = vmatprep.subr.mxu0 0.0
          %800 = vmatpush2.msra.mxu0 0.0
          %801 = vmatprep.subr.mxu0 0.0
          %802 = vmatpush2.msra.mxu0 0.0
          %803 = vmatprep.subr.mxu0 0.0
          %804 = vmatpush2.msra.mxu0 0.0
          %805 = vmatprep.subr.mxu0 0.0
          %806 = vmatpush2.msra.mxu0 0.0
          %807 = vmatprep.mubr.f32.mxu0 0.0
          %808 = vmatmul.mubr.f32.gmra.mxu0 %v741
          %v809 = vpop.f32.mrf.mxu0
          %v810 = vadd.f32 %v737, %v809
          %v811 = vpop.f32.mrf.mxu0
          %812 = vdwg.mxu0
          %814 = vrot.lane.b32.xlu0 %v810, 120
          %v815 = vpop.permute.xlu0 %814
          %817 = vrot.lane.b32.xlu0 %v810, 112
          %v818 = vpop.permute.xlu0 %817
          %820 = vrot.lane.b32.xlu0 %v810, 104
          %v821 = vpop.permute.xlu0 %820
          %v823 = vcombine.low %v810, %v818
          %v824 = vcombine.high %v810, %v818
          %v826 = vunpack.c.l.s4 1983009808
          %v827 = vunpack.c.0.s8 %v826
          %v828 = vlaneseq
          %v829 = vshrl.u32 %v828, 7
          %v830 = vsub.s32 %v827, %v829
          %v831 = vrot.slane %v823, %v830
          %v833 = vunpack.c.l.s4 1983009808
          %v834 = vunpack.c.0.s8 %v833
          %v835 = vlaneseq
          %v836 = vshrl.u32 %v835, 7
          %v837 = vsub.s32 %v834, %v836
          %v838 = vrot.slane %v824, %v837
          %v839 = vcombine.low %v815, %v821
          %v840 = vcombine.high %v815, %v821
          %v842 = vunpack.c.l.s4 1983009808
          %v843 = vunpack.c.0.s8 %v842
          %v844 = vlaneseq
          %v845 = vshrl.u32 %v844, 7
          %v846 = vsub.s32 %v843, %v845
          %v847 = vrot.slane %v839, %v846
          %v849 = vunpack.c.l.s4 1983009808
          %v850 = vunpack.c.0.s8 %v849
          %v851 = vlaneseq
          %v852 = vshrl.u32 %v851, 7
          %v853 = vsub.s32 %v850, %v852
          %v854 = vrot.slane %v840, %v853
          %v855 = vcombine.low %v831, %v847
          %v856 = vcombine.high %v831, %v847
          %v858 = vunpack.c.l.s4 1934713408
          %v859 = vunpack.c.0.s8 %v858
          %v860 = vlaneseq
          %v861 = vshrl.u32 %v860, 7
          %v862 = vsub.s32 %v859, %v861
          %v863 = vrot.slane %v855, %v862
          %v865 = vunpack.c.l.s4 1934713408
          %v866 = vunpack.c.0.s8 %v865
          %v867 = vlaneseq
          %v868 = vshrl.u32 %v867, 7
          %v869 = vsub.s32 %v866, %v868
          %v870 = vrot.slane %v856, %v869
          %v871 = vcombine.low %v838, %v854
          %v872 = vcombine.high %v838, %v854
          %v874 = vunpack.c.l.s4 1934713408
          %v875 = vunpack.c.0.s8 %v874
          %v876 = vlaneseq
          %v877 = vshrl.u32 %v876, 7
          %v878 = vsub.s32 %v875, %v877
          %v879 = vrot.slane %v871, %v878
          %v881 = vunpack.c.l.s4 1934713408
          %v882 = vunpack.c.0.s8 %v881
          %v883 = vlaneseq
          %v884 = vshrl.u32 %v883, 7
          %v885 = vsub.s32 %v882, %v884
          %v886 = vrot.slane %v872, %v885
          %v887 = vcombine.high %v863, 0.0
          %v888 = vcombine.high %v870, 0.0
          %v889 = vcombine.high %v879, 0.0
          %v890 = vcombine.high %v886, 0.0
          %v891 = vcombine.low %v863, %v870
          %v893 = vunpack.c.l.s4 1983009808
          %v894 = vunpack.c.0.s8 %v893
          %v895 = vlaneseq
          %v896 = vshrl.u32 %v895, 7
          %v897 = vsub.s32 %v894, %v896
          %v898 = vrot.slane %v891, %v897
          %v899 = vcombine.low %v887, %v888
          %v901 = vunpack.c.l.s4 1983009808
          %v902 = vunpack.c.0.s8 %v901
          %v903 = vlaneseq
          %v904 = vshrl.u32 %v903, 7
          %v905 = vsub.s32 %v902, %v904
          %v906 = vrot.slane %v899, %v905
          %v907 = vcombine.low %v879, %v886
          %v909 = vunpack.c.l.s4 1983009808
          %v910 = vunpack.c.0.s8 %v909
          %v911 = vlaneseq
          %v912 = vshrl.u32 %v911, 7
          %v913 = vsub.s32 %v910, %v912
          %v914 = vrot.slane %v907, %v913
          %v915 = vcombine.low %v889, %v890
          %v917 = vunpack.c.l.s4 1983009808
          %v918 = vunpack.c.0.s8 %v917
          %v919 = vlaneseq
          %v920 = vshrl.u32 %v919, 7
          %v921 = vsub.s32 %v918, %v920
          %v922 = vrot.slane %v915, %v921
          %v923 = vcombine.low %v898, %v906
          %v924 = vcombine.high %v898, %v906
          %v926 = vunpack.c.l.s4 1934713408
          %v927 = vunpack.c.0.s8 %v926
          %v928 = vlaneseq
          %v929 = vshrl.u32 %v928, 7
          %v930 = vsub.s32 %v927, %v929
          %v931 = vrot.slane %v923, %v930
          %v933 = vunpack.c.l.s4 1934713408
          %v934 = vunpack.c.0.s8 %v933
          %v935 = vlaneseq
          %v936 = vshrl.u32 %v935, 7
          %v937 = vsub.s32 %v934, %v936
          %v938 = vrot.slane %v924, %v937
          %v939 = vcombine.low %v914, %v922
          %v940 = vcombine.high %v914, %v922
          %v942 = vunpack.c.l.s4 1934713408
          %v943 = vunpack.c.0.s8 %v942
          %v944 = vlaneseq
          %v945 = vshrl.u32 %v944, 7
          %v946 = vsub.s32 %v943, %v945
          %v947 = vrot.slane %v939, %v946
          %v949 = vunpack.c.l.s4 1934713408
          %v950 = vunpack.c.0.s8 %v949
          %v951 = vlaneseq
          %v952 = vshrl.u32 %v951, 7
          %v953 = vsub.s32 %v950, %v952
          %v954 = vrot.slane %v940, %v953
          %v955 = vcombine.low %v931, %v947
          %v956 = vcombine.high %v931, %v947
          %v957 = vcombine.low %v938, %v954
          %v958 = vcombine.high %v938, %v954
          %959 = vst.msk [vmem:[#allocation2] sm:$0xff] %vm722, %v955
          %960 = vst.msk [vmem:[#allocation2 + $0x8] sm:$0xff] %vm722, %v956
          %961 = vst.msk [vmem:[#allocation2 + $0x10] sm:$0xff] %vm722, %v957
          %962 = vst.msk [vmem:[#allocation2 + $0x18] sm:$0xff] %vm722, %v958
        $region108: #{tpu_custom_call.1} parent=95 // pred_fallthru
          _
        %s963 = sadd.s32 %s707, 7
        %p964 = scmp.le.s32.totalorder %s708, %s963
        // Predicated region
        $region109: #{tpu_custom_call.1} parent=95 // pred_check
          %p965 = pneg %p964
        $region110: #{tpu_custom_call.1} parent=95 // pred_check_branch
          %967 = sbr.rel (%p965) target = $region112
        $region111: #{tpu_custom_call.1} parent=95 // pred_region
          %v968 = vld [vmem:[%s635] sm:$0xff]
          %v969 = vld [vmem:[%s5] sm:$0xff]
          %v970 = vld [vmem:[%s5 + $0x8] sm:$0xff]
          %v971 = vld [vmem:[%s5 + $0x10] sm:$0xff]
          %v972 = vld [vmem:[%s5 + $0x18] sm:$0xff]
          %v973 = vld [vmem:[%s6] sm:$0x1]
          %v975 = vlaneseq
          %v976 = vshrl.u32 %v975, 7
          %v977 = vsub.s32 0, %v976
          %v978 = vrot.slane %v973, %v977
          %vm980 = vcmask 261120
          %v982 = vsel %vm980, %v968, 0
          %984 = vmatprep.subr.mxu0 0.0
          %985 = vmatpush1.msra.mxu0 0.0
          %986 = vmatprep.subr.mxu0 0.0
          %987 = vmatpush1.msra.mxu0 0.0
          %988 = vmatprep.subr.mxu0 0.0
          %989 = vmatpush1.msra.mxu0 0.0
          %990 = vmatprep.subr.mxu0 0.0
          %991 = vmatpush1.msra.mxu0 0.0
          %992 = vmatprep.subr.mxu0 0.0
          %993 = vmatpush1.msra.mxu0 0.0
          %994 = vmatprep.subr.mxu0 0.0
          %995 = vmatpush1.msra.mxu0 0.0
          %996 = vmatprep.subr.mxu0 0.0
          %997 = vmatpush1.msra.mxu0 0.0
          %998 = vmatprep.subr.mxu0 0.0
          %999 = vmatpush1.msra.mxu0 0.0
          %1000 = vmatprep.subr.mxu0 0.0
          %1001 = vmatpush1.msra.mxu0 0.0
          %1002 = vmatprep.subr.mxu0 0.0
          %1003 = vmatpush1.msra.mxu0 0.0
          %1004 = vmatprep.subr.mxu0 0.0
          %1005 = vmatpush1.msra.mxu0 0.0
          %1006 = vmatprep.subr.mxu0 0.0
          %1007 = vmatpush1.msra.mxu0 0.0
          %1008 = vmatprep.subr.mxu0 0.0
          %1009 = vmatpush1.msra.mxu0 %v972
          %1010 = vmatprep.subr.mxu0 0.0
          %1011 = vmatpush1.msra.mxu0 %v971
          %1012 = vmatprep.subr.mxu0 0.0
          %1013 = vmatpush1.msra.mxu0 %v970
          %1014 = vmatprep.subr.mxu0 0.0
          %1015 = vmatpush1.msra.mxu0 %v969
          %1016 = vmatprep.subr.mxu0 0.0
          %1017 = vmatpush2.msra.mxu0 0.0
          %1018 = vmatprep.subr.mxu0 0.0
          %1019 = vmatpush2.msra.mxu0 0.0
          %1020 = vmatprep.subr.mxu0 0.0
          %1021 = vmatpush2.msra.mxu0 0.0
          %1022 = vmatprep.subr.mxu0 0.0
          %1023 = vmatpush2.msra.mxu0 0.0
          %1024 = vmatprep.subr.mxu0 0.0
          %1025 = vmatpush2.msra.mxu0 0.0
          %1026 = vmatprep.subr.mxu0 0.0
          %1027 = vmatpush2.msra.mxu0 0.0
          %1028 = vmatprep.subr.mxu0 0.0
          %1029 = vmatpush2.msra.mxu0 0.0
          %1030 = vmatprep.subr.mxu0 0.0
          %1031 = vmatpush2.msra.mxu0 0.0
          %1032 = vmatprep.subr.mxu0 0.0
          %1033 = vmatpush2.msra.mxu0 0.0
          %1034 = vmatprep.subr.mxu0 0.0
          %1035 = vmatpush2.msra.mxu0 0.0
          %1036 = vmatprep.subr.mxu0 0.0
          %1037 = vmatpush2.msra.mxu0 0.0
          %1038 = vmatprep.subr.mxu0 0.0
          %1039 = vmatpush2.msra.mxu0 0.0
          %1040 = vmatprep.subr.mxu0 0.0
          %1041 = vmatpush2.msra.mxu0 0.0
          %1042 = vmatprep.subr.mxu0 0.0
          %1043 = vmatpush2.msra.mxu0 0.0
          %1044 = vmatprep.subr.mxu0 0.0
          %1045 = vmatpush2.msra.mxu0 0.0
          %1046 = vmatprep.subr.mxu0 0.0
          %1047 = vmatpush2.msra.mxu0 0.0
          %1048 = vmatprep.mubr.f32.mxu0 0.0
          %1049 = vmatmul.mubr.f32.gmra.mxu0 %v982
          %v1050 = vpop.f32.mrf.mxu0
          %v1051 = vadd.f32 %v978, %v1050
          %v1052 = vpop.f32.mrf.mxu0
          %1053 = vdwg.mxu0
          %v1054 = vld [vmem:[%s7] sm:$0xff]
          %v1055 = vld [vmem:[%s7 + $0x8] sm:$0xff]
          %v1056 = vld [vmem:[%s7 + $0x10] sm:$0xff]
          %v1057 = vld [vmem:[%s7 + $0x18] sm:$0xff]
          %v1058 = vld [vmem:[%s8] sm:$0x1]
          %v1060 = vlaneseq
          %v1061 = vshrl.u32 %v1060, 7
          %v1062 = vsub.s32 0, %v1061
          %v1063 = vrot.slane %v1058, %v1062
          %1065 = vmatprep.subr.mxu0 0.0
          %1066 = vmatpush1.msra.mxu0 0.0
          %1067 = vmatprep.subr.mxu0 0.0
          %1068 = vmatpush1.msra.mxu0 0.0
          %1069 = vmatprep.subr.mxu0 0.0
          %1070 = vmatpush1.msra.mxu0 0.0
          %1071 = vmatprep.subr.mxu0 0.0
          %1072 = vmatpush1.msra.mxu0 0.0
          %1073 = vmatprep.subr.mxu0 0.0
          %1074 = vmatpush1.msra.mxu0 0.0
          %1075 = vmatprep.subr.mxu0 0.0
          %1076 = vmatpush1.msra.mxu0 0.0
          %1077 = vmatprep.subr.mxu0 0.0
          %1078 = vmatpush1.msra.mxu0 0.0
          %1079 = vmatprep.subr.mxu0 0.0
          %1080 = vmatpush1.msra.mxu0 0.0
          %1081 = vmatprep.subr.mxu0 0.0
          %1082 = vmatpush1.msra.mxu0 0.0
          %1083 = vmatprep.subr.mxu0 0.0
          %1084 = vmatpush1.msra.mxu0 0.0
          %1085 = vmatprep.subr.mxu0 0.0
          %1086 = vmatpush1.msra.mxu0 0.0
          %1087 = vmatprep.subr.mxu0 0.0
          %1088 = vmatpush1.msra.mxu0 0.0
          %1089 = vmatprep.subr.mxu0 0.0
          %1090 = vmatpush1.msra.mxu0 %v1057
          %1091 = vmatprep.subr.mxu0 0.0
          %1092 = vmatpush1.msra.mxu0 %v1056
          %1093 = vmatprep.subr.mxu0 0.0
          %1094 = vmatpush1.msra.mxu0 %v1055
          %1095 = vmatprep.subr.mxu0 0.0
          %1096 = vmatpush1.msra.mxu0 %v1054
          %1097 = vmatprep.subr.mxu0 0.0
          %1098 = vmatpush2.msra.mxu0 0.0
          %1099 = vmatprep.subr.mxu0 0.0
          %1100 = vmatpush2.msra.mxu0 0.0
          %1101 = vmatprep.subr.mxu0 0.0
          %1102 = vmatpush2.msra.mxu0 0.0
          %1103 = vmatprep.subr.mxu0 0.0
          %1104 = vmatpush2.msra.mxu0 0.0
          %1105 = vmatprep.subr.mxu0 0.0
          %1106 = vmatpush2.msra.mxu0 0.0
          %1107 = vmatprep.subr.mxu0 0.0
          %1108 = vmatpush2.msra.mxu0 0.0
          %1109 = vmatprep.subr.mxu0 0.0
          %1110 = vmatpush2.msra.mxu0 0.0
          %1111 = vmatprep.subr.mxu0 0.0
          %1112 = vmatpush2.msra.mxu0 0.0
          %1113 = vmatprep.subr.mxu0 0.0
          %1114 = vmatpush2.msra.mxu0 0.0
          %1115 = vmatprep.subr.mxu0 0.0
          %1116 = vmatpush2.msra.mxu0 0.0
          %1117 = vmatprep.subr.mxu0 0.0
          %1118 = vmatpush2.msra.mxu0 0.0
          %1119 = vmatprep.subr.mxu0 0.0
          %1120 = vmatpush2.msra.mxu0 0.0
          %1121 = vmatprep.subr.mxu0 0.0
          %1122 = vmatpush2.msra.mxu0 0.0
          %1123 = vmatprep.subr.mxu0 0.0
          %1124 = vmatpush2.msra.mxu0 0.0
          %1125 = vmatprep.subr.mxu0 0.0
          %1126 = vmatpush2.msra.mxu0 0.0
          %1127 = vmatprep.subr.mxu0 0.0
          %1128 = vmatpush2.msra.mxu0 0.0
          %1129 = vmatprep.mubr.f32.mxu0 0.0
          %1130 = vmatmul.mubr.f32.gmra.mxu0 %v982
          %v1131 = vpop.f32.mrf.mxu0
          %v1132 = vadd.f32 %v1063, %v1131
          %v1133 = vpop.f32.mrf.mxu0
          %1134 = vdwg.mxu0
          %1136 = vrot.lane.b32.xlu0 %v1051, 120
          %v1137 = vpop.permute.xlu0 %1136
          %1139 = vrot.lane.b32.xlu0 %v1051, 112
          %v1140 = vpop.permute.xlu0 %1139
          %1142 = vrot.lane.b32.xlu0 %v1051, 104
          %v1143 = vpop.permute.xlu0 %1142
          %v1145 = vcombine.low %v1051, %v1140
          %v1146 = vcombine.high %v1051, %v1140
          %v1148 = vunpack.c.l.s4 1983009808
          %v1149 = vunpack.c.0.s8 %v1148
          %v1150 = vlaneseq
          %v1151 = vshrl.u32 %v1150, 7
          %v1152 = vsub.s32 %v1149, %v1151
          %v1153 = vrot.slane %v1145, %v1152
          %v1155 = vunpack.c.l.s4 1983009808
          %v1156 = vunpack.c.0.s8 %v1155
          %v1157 = vlaneseq
          %v1158 = vshrl.u32 %v1157, 7
          %v1159 = vsub.s32 %v1156, %v1158
          %v1160 = vrot.slane %v1146, %v1159
          %v1161 = vcombine.low %v1137, %v1143
          %v1162 = vcombine.high %v1137, %v1143
          %v1164 = vunpack.c.l.s4 1983009808
          %v1165 = vunpack.c.0.s8 %v1164
          %v1166 = vlaneseq
          %v1167 = vshrl.u32 %v1166, 7
          %v1168 = vsub.s32 %v1165, %v1167
          %v1169 = vrot.slane %v1161, %v1168
          %v1171 = vunpack.c.l.s4 1983009808
          %v1172 = vunpack.c.0.s8 %v1171
          %v1173 = vlaneseq
          %v1174 = vshrl.u32 %v1173, 7
          %v1175 = vsub.s32 %v1172, %v1174
          %v1176 = vrot.slane %v1162, %v1175
          %v1177 = vcombine.low %v1153, %v1169
          %v1178 = vcombine.high %v1153, %v1169
          %v1180 = vunpack.c.l.s4 1934713408
          %v1181 = vunpack.c.0.s8 %v1180
          %v1182 = vlaneseq
          %v1183 = vshrl.u32 %v1182, 7
          %v1184 = vsub.s32 %v1181, %v1183
          %v1185 = vrot.slane %v1177, %v1184
          %v1187 = vunpack.c.l.s4 1934713408
          %v1188 = vunpack.c.0.s8 %v1187
          %v1189 = vlaneseq
          %v1190 = vshrl.u32 %v1189, 7
          %v1191 = vsub.s32 %v1188, %v1190
          %v1192 = vrot.slane %v1178, %v1191
          %v1193 = vcombine.low %v1160, %v1176
          %v1194 = vcombine.high %v1160, %v1176
          %v1196 = vunpack.c.l.s4 1934713408
          %v1197 = vunpack.c.0.s8 %v1196
          %v1198 = vlaneseq
          %v1199 = vshrl.u32 %v1198, 7
          %v1200 = vsub.s32 %v1197, %v1199
          %v1201 = vrot.slane %v1193, %v1200
          %v1203 = vunpack.c.l.s4 1934713408
          %v1204 = vunpack.c.0.s8 %v1203
          %v1205 = vlaneseq
          %v1206 = vshrl.u32 %v1205, 7
          %v1207 = vsub.s32 %v1204, %v1206
          %v1208 = vrot.slane %v1194, %v1207
          %v1209 = vcombine.high %v1185, 0.0
          %v1210 = vcombine.high %v1192, 0.0
          %v1211 = vcombine.high %v1201, 0.0
          %v1212 = vcombine.high %v1208, 0.0
          %v1213 = vcombine.low %v1185, %v1192
          %v1215 = vunpack.c.l.s4 1983009808
          %v1216 = vunpack.c.0.s8 %v1215
          %v1217 = vlaneseq
          %v1218 = vshrl.u32 %v1217, 7
          %v1219 = vsub.s32 %v1216, %v1218
          %v1220 = vrot.slane %v1213, %v1219
          %v1221 = vcombine.low %v1209, %v1210
          %v1223 = vunpack.c.l.s4 1983009808
          %v1224 = vunpack.c.0.s8 %v1223
          %v1225 = vlaneseq
          %v1226 = vshrl.u32 %v1225, 7
          %v1227 = vsub.s32 %v1224, %v1226
          %v1228 = vrot.slane %v1221, %v1227
          %v1229 = vcombine.low %v1201, %v1208
          %v1231 = vunpack.c.l.s4 1983009808
          %v1232 = vunpack.c.0.s8 %v1231
          %v1233 = vlaneseq
          %v1234 = vshrl.u32 %v1233, 7
          %v1235 = vsub.s32 %v1232, %v1234
          %v1236 = vrot.slane %v1229, %v1235
          %v1237 = vcombine.low %v1211, %v1212
          %v1239 = vunpack.c.l.s4 1983009808
          %v1240 = vunpack.c.0.s8 %v1239
          %v1241 = vlaneseq
          %v1242 = vshrl.u32 %v1241, 7
          %v1243 = vsub.s32 %v1240, %v1242
          %v1244 = vrot.slane %v1237, %v1243
          %v1245 = vcombine.low %v1220, %v1228
          %v1246 = vcombine.high %v1220, %v1228
          %v1248 = vunpack.c.l.s4 1934713408
          %v1249 = vunpack.c.0.s8 %v1248
          %v1250 = vlaneseq
          %v1251 = vshrl.u32 %v1250, 7
          %v1252 = vsub.s32 %v1249, %v1251
          %v1253 = vrot.slane %v1245, %v1252
          %v1255 = vunpack.c.l.s4 1934713408
          %v1256 = vunpack.c.0.s8 %v1255
          %v1257 = vlaneseq
          %v1258 = vshrl.u32 %v1257, 7
          %v1259 = vsub.s32 %v1256, %v1258
          %v1260 = vrot.slane %v1246, %v1259
          %v1261 = vcombine.low %v1236, %v1244
          %v1262 = vcombine.high %v1236, %v1244
          %v1264 = vunpack.c.l.s4 1934713408
          %v1265 = vunpack.c.0.s8 %v1264
          %v1266 = vlaneseq
          %v1267 = vshrl.u32 %v1266, 7
          %v1268 = vsub.s32 %v1265, %v1267
          %v1269 = vrot.slane %v1261, %v1268
          %v1271 = vunpack.c.l.s4 1934713408
          %v1272 = vunpack.c.0.s8 %v1271
          %v1273 = vlaneseq
          %v1274 = vshrl.u32 %v1273, 7
          %v1275 = vsub.s32 %v1272, %v1274
          %v1276 = vrot.slane %v1262, %v1275
          %v1277 = vcombine.low %v1253, %v1269
          %v1278 = vcombine.high %v1253, %v1269
          %v1279 = vcombine.low %v1260, %v1276
          %v1280 = vcombine.high %v1260, %v1276
          %1282 = vrot.lane.b32.xlu0 %v1132, 120
          %v1283 = vpop.permute.xlu0 %1282
          %1285 = vrot.lane.b32.xlu0 %v1132, 112
          %v1286 = vpop.permute.xlu0 %1285
          %1288 = vrot.lane.b32.xlu0 %v1132, 104
          %v1289 = vpop.permute.xlu0 %1288
          %v1291 = vcombine.low %v1132, %v1286
          %v1292 = vcombine.high %v1132, %v1286
          %v1294 = vunpack.c.l.s4 1983009808
          %v1295 = vunpack.c.0.s8 %v1294
          %v1296 = vlaneseq
          %v1297 = vshrl.u32 %v1296, 7
          %v1298 = vsub.s32 %v1295, %v1297
          %v1299 = vrot.slane %v1291, %v1298
          %v1301 = vunpack.c.l.s4 1983009808
          %v1302 = vunpack.c.0.s8 %v1301
          %v1303 = vlaneseq
          %v1304 = vshrl.u32 %v1303, 7
          %v1305 = vsub.s32 %v1302, %v1304
          %v1306 = vrot.slane %v1292, %v1305
          %v1307 = vcombine.low %v1283, %v1289
          %v1308 = vcombine.high %v1283, %v1289
          %v1310 = vunpack.c.l.s4 1983009808
          %v1311 = vunpack.c.0.s8 %v1310
          %v1312 = vlaneseq
          %v1313 = vshrl.u32 %v1312, 7
          %v1314 = vsub.s32 %v1311, %v1313
          %v1315 = vrot.slane %v1307, %v1314
          %v1317 = vunpack.c.l.s4 1983009808
          %v1318 = vunpack.c.0.s8 %v1317
          %v1319 = vlaneseq
          %v1320 = vshrl.u32 %v1319, 7
          %v1321 = vsub.s32 %v1318, %v1320
          %v1322 = vrot.slane %v1308, %v1321
          %v1323 = vcombine.low %v1299, %v1315
          %v1324 = vcombine.high %v1299, %v1315
          %v1326 = vunpack.c.l.s4 1934713408
          %v1327 = vunpack.c.0.s8 %v1326
          %v1328 = vlaneseq
          %v1329 = vshrl.u32 %v1328, 7
          %v1330 = vsub.s32 %v1327, %v1329
          %v1331 = vrot.slane %v1323, %v1330
          %v1333 = vunpack.c.l.s4 1934713408
          %v1334 = vunpack.c.0.s8 %v1333
          %v1335 = vlaneseq
          %v1336 = vshrl.u32 %v1335, 7
          %v1337 = vsub.s32 %v1334, %v1336
          %v1338 = vrot.slane %v1324, %v1337
          %v1339 = vcombine.low %v1306, %v1322
          %v1340 = vcombine.high %v1306, %v1322
          %v1342 = vunpack.c.l.s4 1934713408
          %v1343 = vunpack.c.0.s8 %v1342
          %v1344 = vlaneseq
          %v1345 = vshrl.u32 %v1344, 7
          %v1346 = vsub.s32 %v1343, %v1345
          %v1347 = vrot.slane %v1339, %v1346
          %v1349 = vunpack.c.l.s4 1934713408
          %v1350 = vunpack.c.0.s8 %v1349
          %v1351 = vlaneseq
          %v1352 = vshrl.u32 %v1351, 7
          %v1353 = vsub.s32 %v1350, %v1352
          %v1354 = vrot.slane %v1340, %v1353
          %v1355 = vcombine.high %v1331, 0.0
          %v1356 = vcombine.high %v1338, 0.0
          %v1357 = vcombine.high %v1347, 0.0
          %v1358 = vcombine.high %v1354, 0.0
          %v1359 = vcombine.low %v1331, %v1338
          %v1361 = vunpack.c.l.s4 1983009808
          %v1362 = vunpack.c.0.s8 %v1361
          %v1363 = vlaneseq
          %v1364 = vshrl.u32 %v1363, 7
          %v1365 = vsub.s32 %v1362, %v1364
          %v1366 = vrot.slane %v1359, %v1365
          %v1367 = vcombine.low %v1355, %v1356
          %v1369 = vunpack.c.l.s4 1983009808
          %v1370 = vunpack.c.0.s8 %v1369
          %v1371 = vlaneseq
          %v1372 = vshrl.u32 %v1371, 7
          %v1373 = vsub.s32 %v1370, %v1372
          %v1374 = vrot.slane %v1367, %v1373
          %v1375 = vcombine.low %v1347, %v1354
          %v1377 = vunpack.c.l.s4 1983009808
          %v1378 = vunpack.c.0.s8 %v1377
          %v1379 = vlaneseq
          %v1380 = vshrl.u32 %v1379, 7
          %v1381 = vsub.s32 %v1378, %v1380
          %v1382 = vrot.slane %v1375, %v1381
          %v1383 = vcombine.low %v1357, %v1358
          %v1385 = vunpack.c.l.s4 1983009808
          %v1386 = vunpack.c.0.s8 %v1385
          %v1387 = vlaneseq
          %v1388 = vshrl.u32 %v1387, 7
          %v1389 = vsub.s32 %v1386, %v1388
          %v1390 = vrot.slane %v1383, %v1389
          %v1391 = vcombine.low %v1366, %v1374
          %v1392 = vcombine.high %v1366, %v1374
          %v1394 = vunpack.c.l.s4 1934713408
          %v1395 = vunpack.c.0.s8 %v1394
          %v1396 = vlaneseq
          %v1397 = vshrl.u32 %v1396, 7
          %v1398 = vsub.s32 %v1395, %v1397
          %v1399 = vrot.slane %v1391, %v1398
          %v1401 = vunpack.c.l.s4 1934713408
          %v1402 = vunpack.c.0.s8 %v1401
          %v1403 = vlaneseq
          %v1404 = vshrl.u32 %v1403, 7
          %v1405 = vsub.s32 %v1402, %v1404
          %v1406 = vrot.slane %v1392, %v1405
          %v1407 = vcombine.low %v1382, %v1390
          %v1408 = vcombine.high %v1382, %v1390
          %v1410 = vunpack.c.l.s4 1934713408
          %v1411 = vunpack.c.0.s8 %v1410
          %v1412 = vlaneseq
          %v1413 = vshrl.u32 %v1412, 7
          %v1414 = vsub.s32 %v1411, %v1413
          %v1415 = vrot.slane %v1407, %v1414
          %v1417 = vunpack.c.l.s4 1934713408
          %v1418 = vunpack.c.0.s8 %v1417
          %v1419 = vlaneseq
          %v1420 = vshrl.u32 %v1419, 7
          %v1421 = vsub.s32 %v1418, %v1420
          %v1422 = vrot.slane %v1408, %v1421
          %v1423 = vcombine.low %v1399, %v1415
          %v1424 = vcombine.high %v1399, %v1415
          %v1425 = vcombine.low %v1406, %v1422
          %v1426 = vcombine.high %v1406, %v1422
          %v1427 = vld [vmem:[#allocation2] sm:$0xff]
          %v1428 = vld [vmem:[#allocation2 + $0x8] sm:$0xff]
          %v1429 = vld [vmem:[#allocation2 + $0x10] sm:$0xff]
          %v1430 = vld [vmem:[#allocation2 + $0x18] sm:$0xff]
          %vm1431 = vcmask 64512
          %v1433 = vsel %vm1431, %v1427, 0
          %v1436 = vsel %vm1431, %v1277, 0
          %1438 = vmatprep.subr.mxu0 0.0
          %1439 = vmatpush1.xpose.msra.mxu0 0.0
          %1440 = vmatprep.subr.mxu0 0.0
          %1441 = vmatpush1.xpose.msra.mxu0 0.0
          %1442 = vmatprep.subr.mxu0 0.0
          %1443 = vmatpush1.xpose.msra.mxu0 0.0
          %1444 = vmatprep.subr.mxu0 0.0
          %1445 = vmatpush1.xpose.msra.mxu0 0.0
          %1446 = vmatprep.subr.mxu0 0.0
          %1447 = vmatpush1.xpose.msra.mxu0 0.0
          %1448 = vmatprep.subr.mxu0 0.0
          %1449 = vmatpush1.xpose.msra.mxu0 0.0
          %1450 = vmatprep.subr.mxu0 0.0
          %1451 = vmatpush1.xpose.msra.mxu0 0.0
          %1452 = vmatprep.subr.mxu0 0.0
          %1453 = vmatpush1.xpose.msra.mxu0 0.0
          %1454 = vmatprep.subr.mxu0 0.0
          %1455 = vmatpush1.xpose.msra.mxu0 0.0
          %1456 = vmatprep.subr.mxu0 0.0
          %1457 = vmatpush1.xpose.msra.mxu0 0.0
          %1458 = vmatprep.subr.mxu0 0.0
          %1459 = vmatpush1.xpose.msra.mxu0 0.0
          %1460 = vmatprep.subr.mxu0 0.0
          %1461 = vmatpush1.xpose.msra.mxu0 0.0
          %1462 = vmatprep.subr.mxu0 0.0
          %1463 = vmatpush1.xpose.msra.mxu0 0.0
          %1464 = vmatprep.subr.mxu0 0.0
          %1465 = vmatpush1.xpose.msra.mxu0 0.0
          %1466 = vmatprep.subr.mxu0 0.0
          %1467 = vmatpush1.xpose.msra.mxu0 0.0
          %1468 = vmatprep.subr.mxu0 0.0
          %1469 = vmatpush1.xpose.msra.mxu0 %v1436
          %1470 = vmatprep.subr.mxu0 0.0
          %1471 = vmatpush2.xpose.msra.mxu0 0.0
          %1472 = vmatprep.subr.mxu0 0.0
          %1473 = vmatpush2.xpose.msra.mxu0 0.0
          %1474 = vmatprep.subr.mxu0 0.0
          %1475 = vmatpush2.xpose.msra.mxu0 0.0
          %1476 = vmatprep.subr.mxu0 0.0
          %1477 = vmatpush2.xpose.msra.mxu0 0.0
          %1478 = vmatprep.subr.mxu0 0.0
          %1479 = vmatpush2.xpose.msra.mxu0 0.0
          %1480 = vmatprep.subr.mxu0 0.0
          %1481 = vmatpush2.xpose.msra.mxu0 0.0
          %1482 = vmatprep.subr.mxu0 0.0
          %1483 = vmatpush2.xpose.msra.mxu0 0.0
          %1484 = vmatprep.subr.mxu0 0.0
          %1485 = vmatpush2.xpose.msra.mxu0 0.0
          %1486 = vmatprep.subr.mxu0 0.0
          %1487 = vmatpush2.xpose.msra.mxu0 0.0
          %1488 = vmatprep.subr.mxu0 0.0
          %1489 = vmatpush2.xpose.msra.mxu0 0.0
          %1490 = vmatprep.subr.mxu0 0.0
          %1491 = vmatpush2.xpose.msra.mxu0 0.0
          %1492 = vmatprep.subr.mxu0 0.0
          %1493 = vmatpush2.xpose.msra.mxu0 0.0
          %1494 = vmatprep.subr.mxu0 0.0
          %1495 = vmatpush2.xpose.msra.mxu0 0.0
          %1496 = vmatprep.subr.mxu0 0.0
          %1497 = vmatpush2.xpose.msra.mxu0 0.0
          %1498 = vmatprep.subr.mxu0 0.0
          %1499 = vmatpush2.xpose.msra.mxu0 0.0
          %1500 = vmatprep.subr.mxu0 0.0
          %1501 = vmatpush2.xpose.msra.mxu0 0.0
          %1502 = vmatprep.mubr.f32.mxu0 0.0
          %1503 = vmatmul.mubr.f32.gmra.mxu0 %v1433
          %v1504 = vpop.f32.mrf.mxu0
          %v1505 = vadd.f32 0.0, %v1504
          %v1506 = vpop.f32.mrf.mxu0
          %1507 = vdwg.mxu0
          %v1509 = vsel %vm1431, %v1428, 0
          %v1512 = vsel %vm1431, %v1278, 0
          %1514 = vmatprep.subr.mxu0 0.0
          %1515 = vmatpush1.xpose.msra.mxu0 0.0
          %1516 = vmatprep.subr.mxu0 0.0
          %1517 = vmatpush1.xpose.msra.mxu0 0.0
          %1518 = vmatprep.subr.mxu0 0.0
          %1519 = vmatpush1.xpose.msra.mxu0 0.0
          %1520 = vmatprep.subr.mxu0 0.0
          %1521 = vmatpush1.xpose.msra.mxu0 0.0
          %1522 = vmatprep.subr.mxu0 0.0
          %1523 = vmatpush1.xpose.msra.mxu0 0.0
          %1524 = vmatprep.subr.mxu0 0.0
          %1525 = vmatpush1.xpose.msra.mxu0 0.0
          %1526 = vmatprep.subr.mxu0 0.0
          %1527 = vmatpush1.xpose.msra.mxu0 0.0
          %1528 = vmatprep.subr.mxu0 0.0
          %1529 = vmatpush1.xpose.msra.mxu0 0.0
          %1530 = vmatprep.subr.mxu0 0.0
          %1531 = vmatpush1.xpose.msra.mxu0 0.0
          %1532 = vmatprep.subr.mxu0 0.0
          %1533 = vmatpush1.xpose.msra.mxu0 0.0
          %1534 = vmatprep.subr.mxu0 0.0
          %1535 = vmatpush1.xpose.msra.mxu0 0.0
          %1536 = vmatprep.subr.mxu0 0.0
          %1537 = vmatpush1.xpose.msra.mxu0 0.0
          %1538 = vmatprep.subr.mxu0 0.0
          %1539 = vmatpush1.xpose.msra.mxu0 0.0
          %1540 = vmatprep.subr.mxu0 0.0
          %1541 = vmatpush1.xpose.msra.mxu0 0.0
          %1542 = vmatprep.subr.mxu0 0.0
          %1543 = vmatpush1.xpose.msra.mxu0 0.0
          %1544 = vmatprep.subr.mxu0 0.0
          %1545 = vmatpush1.xpose.msra.mxu0 %v1512
          %1546 = vmatprep.subr.mxu0 0.0
          %1547 = vmatpush2.xpose.msra.mxu0 0.0
          %1548 = vmatprep.subr.mxu0 0.0
          %1549 = vmatpush2.xpose.msra.mxu0 0.0
          %1550 = vmatprep.subr.mxu0 0.0
          %1551 = vmatpush2.xpose.msra.mxu0 0.0
          %1552 = vmatprep.subr.mxu0 0.0
          %1553 = vmatpush2.xpose.msra.mxu0 0.0
          %1554 = vmatprep.subr.mxu0 0.0
          %1555 = vmatpush2.xpose.msra.mxu0 0.0
          %1556 = vmatprep.subr.mxu0 0.0
          %1557 = vmatpush2.xpose.msra.mxu0 0.0
          %1558 = vmatprep.subr.mxu0 0.0
          %1559 = vmatpush2.xpose.msra.mxu0 0.0
          %1560 = vmatprep.subr.mxu0 0.0
          %1561 = vmatpush2.xpose.msra.mxu0 0.0
          %1562 = vmatprep.subr.mxu0 0.0
          %1563 = vmatpush2.xpose.msra.mxu0 0.0
          %1564 = vmatprep.subr.mxu0 0.0
          %1565 = vmatpush2.xpose.msra.mxu0 0.0
          %1566 = vmatprep.subr.mxu0 0.0
          %1567 = vmatpush2.xpose.msra.mxu0 0.0
          %1568 = vmatprep.subr.mxu0 0.0
          %1569 = vmatpush2.xpose.msra.mxu0 0.0
          %1570 = vmatprep.subr.mxu0 0.0
          %1571 = vmatpush2.xpose.msra.mxu0 0.0
          %1572 = vmatprep.subr.mxu0 0.0
          %1573 = vmatpush2.xpose.msra.mxu0 0.0
          %1574 = vmatprep.subr.mxu0 0.0
          %1575 = vmatpush2.xpose.msra.mxu0 0.0
          %1576 = vmatprep.subr.mxu0 0.0
          %1577 = vmatpush2.xpose.msra.mxu0 0.0
          %1578 = vmatprep.mubr.f32.mxu0 0.0
          %1579 = vmatmul.mubr.f32.gmra.mxu0 %v1509
          %v1580 = vpop.f32.mrf.mxu0
          %v1581 = vadd.f32 0.0, %v1580
          %v1582 = vpop.f32.mrf.mxu0
          %1583 = vdwg.mxu0
          %v1585 = vsel %vm1431, %v1429, 0
          %v1588 = vsel %vm1431, %v1279, 0
          %1590 = vmatprep.subr.mxu0 0.0
          %1591 = vmatpush1.xpose.msra.mxu0 0.0
          %1592 = vmatprep.subr.mxu0 0.0
          %1593 = vmatpush1.xpose.msra.mxu0 0.0
          %1594 = vmatprep.subr.mxu0 0.0
          %1595 = vmatpush1.xpose.msra.mxu0 0.0
          %1596 = vmatprep.subr.mxu0 0.0
          %1597 = vmatpush1.xpose.msra.mxu0 0.0
          %1598 = vmatprep.subr.mxu0 0.0
          %1599 = vmatpush1.xpose.msra.mxu0 0.0
          %1600 = vmatprep.subr.mxu0 0.0
          %1601 = vmatpush1.xpose.msra.mxu0 0.0
          %1602 = vmatprep.subr.mxu0 0.0
          %1603 = vmatpush1.xpose.msra.mxu0 0.0
          %1604 = vmatprep.subr.mxu0 0.0
          %1605 = vmatpush1.xpose.msra.mxu0 0.0
          %1606 = vmatprep.subr.mxu0 0.0
          %1607 = vmatpush1.xpose.msra.mxu0 0.0
          %1608 = vmatprep.subr.mxu0 0.0
          %1609 = vmatpush1.xpose.msra.mxu0 0.0
          %1610 = vmatprep.subr.mxu0 0.0
          %1611 = vmatpush1.xpose.msra.mxu0 0.0
          %1612 = vmatprep.subr.mxu0 0.0
          %1613 = vmatpush1.xpose.msra.mxu0 0.0
          %1614 = vmatprep.subr.mxu0 0.0
          %1615 = vmatpush1.xpose.msra.mxu0 0.0
          %1616 = vmatprep.subr.mxu0 0.0
          %1617 = vmatpush1.xpose.msra.mxu0 0.0
          %1618 = vmatprep.subr.mxu0 0.0
          %1619 = vmatpush1.xpose.msra.mxu0 0.0
          %1620 = vmatprep.subr.mxu0 0.0
          %1621 = vmatpush1.xpose.msra.mxu0 %v1588
          %1622 = vmatprep.subr.mxu0 0.0
          %1623 = vmatpush2.xpose.msra.mxu0 0.0
          %1624 = vmatprep.subr.mxu0 0.0
          %1625 = vmatpush2.xpose.msra.mxu0 0.0
          %1626 = vmatprep.subr.mxu0 0.0
          %1627 = vmatpush2.xpose.msra.mxu0 0.0
          %1628 = vmatprep.subr.mxu0 0.0
          %1629 = vmatpush2.xpose.msra.mxu0 0.0
          %1630 = vmatprep.subr.mxu0 0.0
          %1631 = vmatpush2.xpose.msra.mxu0 0.0
          %1632 = vmatprep.subr.mxu0 0.0
          %1633 = vmatpush2.xpose.msra.mxu0 0.0
          %1634 = vmatprep.subr.mxu0 0.0
          %1635 = vmatpush2.xpose.msra.mxu0 0.0
          %1636 = vmatprep.subr.mxu0 0.0
          %1637 = vmatpush2.xpose.msra.mxu0 0.0
          %1638 = vmatprep.subr.mxu0 0.0
          %1639 = vmatpush2.xpose.msra.mxu0 0.0
          %1640 = vmatprep.subr.mxu0 0.0
          %1641 = vmatpush2.xpose.msra.mxu0 0.0
          %1642 = vmatprep.subr.mxu0 0.0
          %1643 = vmatpush2.xpose.msra.mxu0 0.0
          %1644 = vmatprep.subr.mxu0 0.0
          %1645 = vmatpush2.xpose.msra.mxu0 0.0
          %1646 = vmatprep.subr.mxu0 0.0
          %1647 = vmatpush2.xpose.msra.mxu0 0.0
          %1648 = vmatprep.subr.mxu0 0.0
          %1649 = vmatpush2.xpose.msra.mxu0 0.0
          %1650 = vmatprep.subr.mxu0 0.0
          %1651 = vmatpush2.xpose.msra.mxu0 0.0
          %1652 = vmatprep.subr.mxu0 0.0
          %1653 = vmatpush2.xpose.msra.mxu0 0.0
          %1654 = vmatprep.mubr.f32.mxu0 0.0
          %1655 = vmatmul.mubr.f32.gmra.mxu0 %v1585
          %v1656 = vpop.f32.mrf.mxu0
          %v1657 = vadd.f32 0.0, %v1656
          %v1658 = vpop.f32.mrf.mxu0
          %1659 = vdwg.mxu0
          %v1661 = vsel %vm1431, %v1430, 0
          %v1664 = vsel %vm1431, %v1280, 0
          %1666 = vmatprep.subr.mxu0 0.0
          %1667 = vmatpush1.xpose.msra.mxu0 0.0
          %1668 = vmatprep.subr.mxu0 0.0
          %1669 = vmatpush1.xpose.msra.mxu0 0.0
          %1670 = vmatprep.subr.mxu0 0.0
          %1671 = vmatpush1.xpose.msra.mxu0 0.0
          %1672 = vmatprep.subr.mxu0 0.0
          %1673 = vmatpush1.xpose.msra.mxu0 0.0
          %1674 = vmatprep.subr.mxu0 0.0
          %1675 = vmatpush1.xpose.msra.mxu0 0.0
          %1676 = vmatprep.subr.mxu0 0.0
          %1677 = vmatpush1.xpose.msra.mxu0 0.0
          %1678 = vmatprep.subr.mxu0 0.0
          %1679 = vmatpush1.xpose.msra.mxu0 0.0
          %1680 = vmatprep.subr.mxu0 0.0
          %1681 = vmatpush1.xpose.msra.mxu0 0.0
          %1682 = vmatprep.subr.mxu0 0.0
          %1683 = vmatpush1.xpose.msra.mxu0 0.0
          %1684 = vmatprep.subr.mxu0 0.0
          %1685 = vmatpush1.xpose.msra.mxu0 0.0
          %1686 = vmatprep.subr.mxu0 0.0
          %1687 = vmatpush1.xpose.msra.mxu0 0.0
          %1688 = vmatprep.subr.mxu0 0.0
          %1689 = vmatpush1.xpose.msra.mxu0 0.0
          %1690 = vmatprep.subr.mxu0 0.0
          %1691 = vmatpush1.xpose.msra.mxu0 0.0
          %1692 = vmatprep.subr.mxu0 0.0
          %1693 = vmatpush1.xpose.msra.mxu0 0.0
          %1694 = vmatprep.subr.mxu0 0.0
          %1695 = vmatpush1.xpose.msra.mxu0 0.0
          %1696 = vmatprep.subr.mxu0 0.0
          %1697 = vmatpush1.xpose.msra.mxu0 %v1664
          %1698 = vmatprep.subr.mxu0 0.0
          %1699 = vmatpush2.xpose.msra.mxu0 0.0
          %1700 = vmatprep.subr.mxu0 0.0
          %1701 = vmatpush2.xpose.msra.mxu0 0.0
          %1702 = vmatprep.subr.mxu0 0.0
          %1703 = vmatpush2.xpose.msra.mxu0 0.0
          %1704 = vmatprep.subr.mxu0 0.0
          %1705 = vmatpush2.xpose.msra.mxu0 0.0
          %1706 = vmatprep.subr.mxu0 0.0
          %1707 = vmatpush2.xpose.msra.mxu0 0.0
          %1708 = vmatprep.subr.mxu0 0.0
          %1709 = vmatpush2.xpose.msra.mxu0 0.0
          %1710 = vmatprep.subr.mxu0 0.0
          %1711 = vmatpush2.xpose.msra.mxu0 0.0
          %1712 = vmatprep.subr.mxu0 0.0
          %1713 = vmatpush2.xpose.msra.mxu0 0.0
          %1714 = vmatprep.subr.mxu0 0.0
          %1715 = vmatpush2.xpose.msra.mxu0 0.0
          %1716 = vmatprep.subr.mxu0 0.0
          %1717 = vmatpush2.xpose.msra.mxu0 0.0
          %1718 = vmatprep.subr.mxu0 0.0
          %1719 = vmatpush2.xpose.msra.mxu0 0.0
          %1720 = vmatprep.subr.mxu0 0.0
          %1721 = vmatpush2.xpose.msra.mxu0 0.0
          %1722 = vmatprep.subr.mxu0 0.0
          %1723 = vmatpush2.xpose.msra.mxu0 0.0
          %1724 = vmatprep.subr.mxu0 0.0
          %1725 = vmatpush2.xpose.msra.mxu0 0.0
          %1726 = vmatprep.subr.mxu0 0.0
          %1727 = vmatpush2.xpose.msra.mxu0 0.0
          %1728 = vmatprep.subr.mxu0 0.0
          %1729 = vmatpush2.xpose.msra.mxu0 0.0
          %1730 = vmatprep.mubr.f32.mxu0 0.0
          %1731 = vmatmul.mubr.f32.gmra.mxu0 %v1661
          %v1732 = vpop.f32.mrf.mxu0
          %v1733 = vadd.f32 0.0, %v1732
          %v1734 = vpop.f32.mrf.mxu0
          %1735 = vdwg.mxu0
          %v1736 = vmul.f32 %v1505, 0.35355338
          %v1737 = vmul.f32 %v1581, 0.35355338
          %v1738 = vmul.f32 %v1657, 0.35355338
          %v1739 = vmul.f32 %v1733, 0.35355338
          %v1740 = vlaneseq
          %v1741 = vshrl.u32 %v1740, 7
          %v1742 = vstv %s707
          %v1743 = vadd.s32 %v1742, %v1741
          %v1744 = vlaneseq
          %v1745 = vand.u32 %v1744, 127
          %v1746 = vstv %s708
          %v1747 = vadd.s32 %v1746, %v1745
          %vm1748 = vcmp.le.s32.totalorder %v1747, %v1743
          %v1749 = vld [vmem:[%s706] sm:$0x1]
          %vm1750 = vcmp.gt.f32.partialorder %v1749, 0.5
          %v1751 = vsel %vm1750, 1, 0
          %v1752 = vlaneseq
          %v1753 = vshrl.u32 %v1752, 7
          %v1754 = vsub.s32 0, %v1753
          %v1755 = vrot.slane %v1751, %v1754
          %vm1756 = vcmp.eq.s32.totalorder %v1755, 1
          %vm1757 = vmand %vm1748, %vm1756
          %v1758 = vsel %vm1757, 1, 0
          %vm1759 = vcmp.eq.s32.totalorder %v1758, 1
          %v1760 = vsel %vm1759, %v1736, -1e+30
          %v1761 = vsel %vm1759, %v1737, -1e+30
          %v1762 = vsel %vm1759, %v1738, -1e+30
          %v1763 = vsel %vm1759, %v1739, -1e+30
          %v1764 = vld [vmem:[#allocation3] sm:$0xff]
          %v1765 = vld [vmem:[#allocation3 + $0x8] sm:$0xff]
          %v1766 = vld [vmem:[#allocation3 + $0x10] sm:$0xff]
          %v1767 = vld [vmem:[#allocation3 + $0x18] sm:$0xff]
          %v1768 = vsel %vm1431, %v1760, -inf
          %1769 = vmax.xlane.f32.xlu0 %v1768
          %v1770 = vpop.xlane.xlu0 %1769
          %v1771 = vsel %vm1431, %v1761, -inf
          %1772 = vmax.xlane.f32.xlu0 %v1771
          %v1773 = vpop.xlane.xlu0 %1772
          %v1774 = vsel %vm1431, %v1762, -inf
          %1775 = vmax.xlane.f32.xlu0 %v1774
          %v1776 = vpop.xlane.xlu0 %1775
          %v1777 = vsel %vm1431, %v1763, -inf
          %1778 = vmax.xlane.f32.xlu0 %v1777
          %v1779 = vpop.xlane.xlu0 %1778
          %v1780 = vmax.f32 %v1764, %v1770
          %v1781 = vmax.f32 %v1765, %v1773
          %v1782 = vmax.f32 %v1766, %v1776
          %v1783 = vmax.f32 %v1767, %v1779
          %v1784 = vsub.f32 %v1764, %v1780
          %v1785 = vsub.f32 %v1765, %v1781
          %v1786 = vsub.f32 %v1766, %v1782
          %v1787 = vsub.f32 %v1767, %v1783
          %v1788 = vmul.f32 %v1784, 1.442695
          %v1789 = vpow.pop %v1788
          %v1790 = vmul.f32 %v1785, 1.442695
          %v1791 = vpow.pop %v1790
          %v1792 = vmul.f32 %v1786, 1.442695
          %v1793 = vpow.pop %v1792
          %v1794 = vmul.f32 %v1787, 1.442695
          %v1795 = vpow.pop %v1794
          %1797 = vset.pattern.permute.xlu0 0
          %1798 = vperm.xlu0 %1797, %v1780
          %v1799 = vpop.permute.xlu0 %1798
          %1802 = vset.pattern.permute.xlu0 0
          %1803 = vperm.xlu0 %1802, %v1781
          %v1804 = vpop.permute.xlu0 %1803
          %1807 = vset.pattern.permute.xlu0 0
          %1808 = vperm.xlu0 %1807, %v1782
          %v1809 = vpop.permute.xlu0 %1808
          %1812 = vset.pattern.permute.xlu0 0
          %1813 = vperm.xlu0 %1812, %v1783
          %v1814 = vpop.permute.xlu0 %1813
          %v1816 = vsub.f32 %v1760, %v1799
          %v1817 = vsub.f32 %v1761, %v1804
          %v1818 = vsub.f32 %v1762, %v1809
          %v1819 = vsub.f32 %v1763, %v1814
          %v1820 = vmul.f32 %v1816, 1.442695
          %v1821 = vpow.pop %v1820
          %v1822 = vmul.f32 %v1817, 1.442695
          %v1823 = vpow.pop %v1822
          %v1824 = vmul.f32 %v1818, 1.442695
          %v1825 = vpow.pop %v1824
          %v1826 = vmul.f32 %v1819, 1.442695
          %v1827 = vpow.pop %v1826
          %v1828 = vld [vmem:[#allocation4] sm:$0xff]
          %v1829 = vld [vmem:[#allocation4 + $0x8] sm:$0xff]
          %v1830 = vld [vmem:[#allocation4 + $0x10] sm:$0xff]
          %v1831 = vld [vmem:[#allocation4 + $0x18] sm:$0xff]
          %v1832 = vmul.f32 %v1789, %v1828
          %v1833 = vmul.f32 %v1791, %v1829
          %v1834 = vmul.f32 %v1793, %v1830
          %v1835 = vmul.f32 %v1795, %v1831
          %v1836 = vsel %vm1431, %v1821, 0.0
          %1837 = vadd.xlane.f32.xlu0 %v1836
          %v1838 = vpop.xlane.xlu0 %1837
          %v1839 = vsel %vm1431, %v1823, 0.0
          %1840 = vadd.xlane.f32.xlu0 %v1839
          %v1841 = vpop.xlane.xlu0 %1840
          %v1842 = vsel %vm1431, %v1825, 0.0
          %1843 = vadd.xlane.f32.xlu0 %v1842
          %v1844 = vpop.xlane.xlu0 %1843
          %v1845 = vsel %vm1431, %v1827, 0.0
          %1846 = vadd.xlane.f32.xlu0 %v1845
          %v1847 = vpop.xlane.xlu0 %1846
          %v1848 = vadd.f32 %v1832, %v1838
          %v1849 = vadd.f32 %v1833, %v1841
          %v1850 = vadd.f32 %v1834, %v1844
          %v1851 = vadd.f32 %v1835, %v1847
          %vm1852 = vcmask 7168
          %1853 = vst.msk [vmem:[#allocation4] sm:$0xff] %vm1852, %v1848
          %1854 = vst.msk [vmem:[#allocation4 + $0x8] sm:$0xff] %vm1852, %v1849
          %1855 = vst.msk [vmem:[#allocation4 + $0x10] sm:$0xff] %vm1852, %v1850
          %1856 = vst.msk [vmem:[#allocation4 + $0x18] sm:$0xff] %vm1852, %v1851
          %v1857 = vld [vmem:[#allocation5] sm:$0xff]
          %v1858 = vld [vmem:[#allocation5 + $0x8] sm:$0xff]
          %v1859 = vld [vmem:[#allocation5 + $0x10] sm:$0xff]
          %v1860 = vld [vmem:[#allocation5 + $0x18] sm:$0xff]
          %1862 = vset.pattern.permute.xlu0 0
          %1863 = vperm.xlu0 %1862, %v1789
          %v1864 = vpop.permute.xlu0 %1863
          %1867 = vset.pattern.permute.xlu0 0
          %1868 = vperm.xlu0 %1867, %v1791
          %v1869 = vpop.permute.xlu0 %1868
          %1872 = vset.pattern.permute.xlu0 0
          %1873 = vperm.xlu0 %1872, %v1793
          %v1874 = vpop.permute.xlu0 %1873
          %1877 = vset.pattern.permute.xlu0 0
          %1878 = vperm.xlu0 %1877, %v1795
          %v1879 = vpop.permute.xlu0 %1878
          %v1881 = vmul.f32 %v1864, %v1857
          %v1882 = vmul.f32 %v1869, %v1858
          %v1883 = vmul.f32 %v1874, %v1859
          %v1884 = vmul.f32 %v1879, %v1860
          %v1886 = vsel %vm1431, %v1821, 0
          %1888 = vmatprep.subr.mxu0 0.0
          %1889 = vmatpush1.msra.mxu0 0.0
          %1890 = vmatprep.subr.mxu0 0.0
          %1891 = vmatpush1.msra.mxu0 0.0
          %1892 = vmatprep.subr.mxu0 0.0
          %1893 = vmatpush1.msra.mxu0 0.0
          %1894 = vmatprep.subr.mxu0 0.0
          %1895 = vmatpush1.msra.mxu0 0.0
          %1896 = vmatprep.subr.mxu0 0.0
          %1897 = vmatpush1.msra.mxu0 0.0
          %1898 = vmatprep.subr.mxu0 0.0
          %1899 = vmatpush1.msra.mxu0 0.0
          %1900 = vmatprep.subr.mxu0 0.0
          %1901 = vmatpush1.msra.mxu0 0.0
          %1902 = vmatprep.subr.mxu0 0.0
          %1903 = vmatpush1.msra.mxu0 0.0
          %1904 = vmatprep.subr.mxu0 0.0
          %1905 = vmatpush1.msra.mxu0 0.0
          %1906 = vmatprep.subr.mxu0 0.0
          %1907 = vmatpush1.msra.mxu0 0.0
          %1908 = vmatprep.subr.mxu0 0.0
          %1909 = vmatpush1.msra.mxu0 0.0
          %1910 = vmatprep.subr.mxu0 0.0
          %1911 = vmatpush1.msra.mxu0 0.0
          %1912 = vmatprep.subr.mxu0 0.0
          %1913 = vmatpush1.msra.mxu0 0.0
          %1914 = vmatprep.subr.mxu0 0.0
          %1915 = vmatpush1.msra.mxu0 0.0
          %1916 = vmatprep.subr.mxu0 0.0
          %1917 = vmatpush1.msra.mxu0 0.0
          %1918 = vmatprep.subr.mxu0 0.0
          %1919 = vmatpush1.msra.mxu0 %v1423
          %1920 = vmatprep.subr.mxu0 0.0
          %1921 = vmatpush2.msra.mxu0 0.0
          %1922 = vmatprep.subr.mxu0 0.0
          %1923 = vmatpush2.msra.mxu0 0.0
          %1924 = vmatprep.subr.mxu0 0.0
          %1925 = vmatpush2.msra.mxu0 0.0
          %1926 = vmatprep.subr.mxu0 0.0
          %1927 = vmatpush2.msra.mxu0 0.0
          %1928 = vmatprep.subr.mxu0 0.0
          %1929 = vmatpush2.msra.mxu0 0.0
          %1930 = vmatprep.subr.mxu0 0.0
          %1931 = vmatpush2.msra.mxu0 0.0
          %1932 = vmatprep.subr.mxu0 0.0
          %1933 = vmatpush2.msra.mxu0 0.0
          %1934 = vmatprep.subr.mxu0 0.0
          %1935 = vmatpush2.msra.mxu0 0.0
          %1936 = vmatprep.subr.mxu0 0.0
          %1937 = vmatpush2.msra.mxu0 0.0
          %1938 = vmatprep.subr.mxu0 0.0
          %1939 = vmatpush2.msra.mxu0 0.0
          %1940 = vmatprep.subr.mxu0 0.0
          %1941 = vmatpush2.msra.mxu0 0.0
          %1942 = vmatprep.subr.mxu0 0.0
          %1943 = vmatpush2.msra.mxu0 0.0
          %1944 = vmatprep.subr.mxu0 0.0
          %1945 = vmatpush2.msra.mxu0 0.0
          %1946 = vmatprep.subr.mxu0 0.0
          %1947 = vmatpush2.msra.mxu0 0.0
          %1948 = vmatprep.subr.mxu0 0.0
          %1949 = vmatpush2.msra.mxu0 0.0
          %1950 = vmatprep.subr.mxu0 0.0
          %1951 = vmatpush2.msra.mxu0 0.0
          %1952 = vmatprep.mubr.f32.mxu0 0.0
          %1953 = vmatmul.mubr.f32.gmra.mxu0 %v1886
          %v1954 = vpop.f32.mrf.mxu0
          %v1955 = vadd.f32 0.0, %v1954
          %v1956 = vpop.f32.mrf.mxu0
          %1957 = vdwg.mxu0
          %v1959 = vsel %vm1431, %v1823, 0
          %1961 = vmatprep.subr.mxu0 0.0
          %1962 = vmatpush1.msra.mxu0 0.0
          %1963 = vmatprep.subr.mxu0 0.0
          %1964 = vmatpush1.msra.mxu0 0.0
          %1965 = vmatprep.subr.mxu0 0.0
          %1966 = vmatpush1.msra.mxu0 0.0
          %1967 = vmatprep.subr.mxu0 0.0
          %1968 = vmatpush1.msra.mxu0 0.0
          %1969 = vmatprep.subr.mxu0 0.0
          %1970 = vmatpush1.msra.mxu0 0.0
          %1971 = vmatprep.subr.mxu0 0.0
          %1972 = vmatpush1.msra.mxu0 0.0
          %1973 = vmatprep.subr.mxu0 0.0
          %1974 = vmatpush1.msra.mxu0 0.0
          %1975 = vmatprep.subr.mxu0 0.0
          %1976 = vmatpush1.msra.mxu0 0.0
          %1977 = vmatprep.subr.mxu0 0.0
          %1978 = vmatpush1.msra.mxu0 0.0
          %1979 = vmatprep.subr.mxu0 0.0
          %1980 = vmatpush1.msra.mxu0 0.0
          %1981 = vmatprep.subr.mxu0 0.0
          %1982 = vmatpush1.msra.mxu0 0.0
          %1983 = vmatprep.subr.mxu0 0.0
          %1984 = vmatpush1.msra.mxu0 0.0
          %1985 = vmatprep.subr.mxu0 0.0
          %1986 = vmatpush1.msra.mxu0 0.0
          %1987 = vmatprep.subr.mxu0 0.0
          %1988 = vmatpush1.msra.mxu0 0.0
          %1989 = vmatprep.subr.mxu0 0.0
          %1990 = vmatpush1.msra.mxu0 0.0
          %1991 = vmatprep.subr.mxu0 0.0
          %1992 = vmatpush1.msra.mxu0 %v1424
          %1993 = vmatprep.subr.mxu0 0.0
          %1994 = vmatpush2.msra.mxu0 0.0
          %1995 = vmatprep.subr.mxu0 0.0
          %1996 = vmatpush2.msra.mxu0 0.0
          %1997 = vmatprep.subr.mxu0 0.0
          %1998 = vmatpush2.msra.mxu0 0.0
          %1999 = vmatprep.subr.mxu0 0.0
          %2000 = vmatpush2.msra.mxu0 0.0
          %2001 = vmatprep.subr.mxu0 0.0
          %2002 = vmatpush2.msra.mxu0 0.0
          %2003 = vmatprep.subr.mxu0 0.0
          %2004 = vmatpush2.msra.mxu0 0.0
          %2005 = vmatprep.subr.mxu0 0.0
          %2006 = vmatpush2.msra.mxu0 0.0
          %2007 = vmatprep.subr.mxu0 0.0
          %2008 = vmatpush2.msra.mxu0 0.0
          %2009 = vmatprep.subr.mxu0 0.0
          %2010 = vmatpush2.msra.mxu0 0.0
          %2011 = vmatprep.subr.mxu0 0.0
          %2012 = vmatpush2.msra.mxu0 0.0
          %2013 = vmatprep.subr.mxu0 0.0
          %2014 = vmatpush2.msra.mxu0 0.0
          %2015 = vmatprep.subr.mxu0 0.0
          %2016 = vmatpush2.msra.mxu0 0.0
          %2017 = vmatprep.subr.mxu0 0.0
          %2018 = vmatpush2.msra.mxu0 0.0
          %2019 = vmatprep.subr.mxu0 0.0
          %2020 = vmatpush2.msra.mxu0 0.0
          %2021 = vmatprep.subr.mxu0 0.0
          %2022 = vmatpush2.msra.mxu0 0.0
          %2023 = vmatprep.subr.mxu0 0.0
          %2024 = vmatpush2.msra.mxu0 0.0
          %2025 = vmatprep.mubr.f32.mxu0 0.0
          %2026 = vmatmul.mubr.f32.gmra.mxu0 %v1959
          %v2027 = vpop.f32.mrf.mxu0
          %v2028 = vadd.f32 0.0, %v2027
          %v2029 = vpop.f32.mrf.mxu0
          %2030 = vdwg.mxu0
          %v2032 = vsel %vm1431, %v1825, 0
          %2034 = vmatprep.subr.mxu0 0.0
          %2035 = vmatpush1.msra.mxu0 0.0
          %2036 = vmatprep.subr.mxu0 0.0
          %2037 = vmatpush1.msra.mxu0 0.0
          %2038 = vmatprep.subr.mxu0 0.0
          %2039 = vmatpush1.msra.mxu0 0.0
          %2040 = vmatprep.subr.mxu0 0.0
          %2041 = vmatpush1.msra.mxu0 0.0
          %2042 = vmatprep.subr.mxu0 0.0
          %2043 = vmatpush1.msra.mxu0 0.0
          %2044 = vmatprep.subr.mxu0 0.0
          %2045 = vmatpush1.msra.mxu0 0.0
          %2046 = vmatprep.subr.mxu0 0.0
          %2047 = vmatpush1.msra.mxu0 0.0
          %2048 = vmatprep.subr.mxu0 0.0
          %2049 = vmatpush1.msra.mxu0 0.0
          %2050 = vmatprep.subr.mxu0 0.0
          %2051 = vmatpush1.msra.mxu0 0.0
          %2052 = vmatprep.subr.mxu0 0.0
          %2053 = vmatpush1.msra.mxu0 0.0
          %2054 = vmatprep.subr.mxu0 0.0
          %2055 = vmatpush1.msra.mxu0 0.0
          %2056 = vmatprep.subr.mxu0 0.0
          %2057 = vmatpush1.msra.mxu0 0.0
          %2058 = vmatprep.subr.mxu0 0.0
          %2059 = vmatpush1.msra.mxu0 0.0
          %2060 = vmatprep.subr.mxu0 0.0
          %2061 = vmatpush1.msra.mxu0 0.0
          %2062 = vmatprep.subr.mxu0 0.0
          %2063 = vmatpush1.msra.mxu0 0.0
          %2064 = vmatprep.subr.mxu0 0.0
          %2065 = vmatpush1.msra.mxu0 %v1425
          %2066 = vmatprep.subr.mxu0 0.0
          %2067 = vmatpush2.msra.mxu0 0.0
          %2068 = vmatprep.subr.mxu0 0.0
          %2069 = vmatpush2.msra.mxu0 0.0
          %2070 = vmatprep.subr.mxu0 0.0
          %2071 = vmatpush2.msra.mxu0 0.0
          %2072 = vmatprep.subr.mxu0 0.0
          %2073 = vmatpush2.msra.mxu0 0.0
          %2074 = vmatprep.subr.mxu0 0.0
          %2075 = vmatpush2.msra.mxu0 0.0
          %2076 = vmatprep.subr.mxu0 0.0
          %2077 = vmatpush2.msra.mxu0 0.0
          %2078 = vmatprep.subr.mxu0 0.0
          %2079 = vmatpush2.msra.mxu0 0.0
          %2080 = vmatprep.subr.mxu0 0.0
          %2081 = vmatpush2.msra.mxu0 0.0
          %2082 = vmatprep.subr.mxu0 0.0
          %2083 = vmatpush2.msra.mxu0 0.0
          %2084 = vmatprep.subr.mxu0 0.0
          %2085 = vmatpush2.msra.mxu0 0.0
          %2086 = vmatprep.subr.mxu0 0.0
          %2087 = vmatpush2.msra.mxu0 0.0
          %2088 = vmatprep.subr.mxu0 0.0
          %2089 = vmatpush2.msra.mxu0 0.0
          %2090 = vmatprep.subr.mxu0 0.0
          %2091 = vmatpush2.msra.mxu0 0.0
          %2092 = vmatprep.subr.mxu0 0.0
          %2093 = vmatpush2.msra.mxu0 0.0
          %2094 = vmatprep.subr.mxu0 0.0
          %2095 = vmatpush2.msra.mxu0 0.0
          %2096 = vmatprep.subr.mxu0 0.0
          %2097 = vmatpush2.msra.mxu0 0.0
          %2098 = vmatprep.mubr.f32.mxu0 0.0
          %2099 = vmatmul.mubr.f32.gmra.mxu0 %v2032
          %v2100 = vpop.f32.mrf.mxu0
          %v2101 = vadd.f32 0.0, %v2100
          %v2102 = vpop.f32.mrf.mxu0
          %2103 = vdwg.mxu0
          %v2105 = vsel %vm1431, %v1827, 0
          %2107 = vmatprep.subr.mxu0 0.0
          %2108 = vmatpush1.msra.mxu0 0.0
          %2109 = vmatprep.subr.mxu0 0.0
          %2110 = vmatpush1.msra.mxu0 0.0
          %2111 = vmatprep.subr.mxu0 0.0
          %2112 = vmatpush1.msra.mxu0 0.0
          %2113 = vmatprep.subr.mxu0 0.0
          %2114 = vmatpush1.msra.mxu0 0.0
          %2115 = vmatprep.subr.mxu0 0.0
          %2116 = vmatpush1.msra.mxu0 0.0
          %2117 = vmatprep.subr.mxu0 0.0
          %2118 = vmatpush1.msra.mxu0 0.0
          %2119 = vmatprep.subr.mxu0 0.0
          %2120 = vmatpush1.msra.mxu0 0.0
          %2121 = vmatprep.subr.mxu0 0.0
          %2122 = vmatpush1.msra.mxu0 0.0
          %2123 = vmatprep.subr.mxu0 0.0
          %2124 = vmatpush1.msra.mxu0 0.0
          %2125 = vmatprep.subr.mxu0 0.0
          %2126 = vmatpush1.msra.mxu0 0.0
          %2127 = vmatprep.subr.mxu0 0.0
          %2128 = vmatpush1.msra.mxu0 0.0
          %2129 = vmatprep.subr.mxu0 0.0
          %2130 = vmatpush1.msra.mxu0 0.0
          %2131 = vmatprep.subr.mxu0 0.0
          %2132 = vmatpush1.msra.mxu0 0.0
          %2133 = vmatprep.subr.mxu0 0.0
          %2134 = vmatpush1.msra.mxu0 0.0
          %2135 = vmatprep.subr.mxu0 0.0
          %2136 = vmatpush1.msra.mxu0 0.0
          %2137 = vmatprep.subr.mxu0 0.0
          %2138 = vmatpush1.msra.mxu0 %v1426
          %2139 = vmatprep.subr.mxu0 0.0
          %2140 = vmatpush2.msra.mxu0 0.0
          %2141 = vmatprep.subr.mxu0 0.0
          %2142 = vmatpush2.msra.mxu0 0.0
          %2143 = vmatprep.subr.mxu0 0.0
          %2144 = vmatpush2.msra.mxu0 0.0
          %2145 = vmatprep.subr.mxu0 0.0
          %2146 = vmatpush2.msra.mxu0 0.0
          %2147 = vmatprep.subr.mxu0 0.0
          %2148 = vmatpush2.msra.mxu0 0.0
          %2149 = vmatprep.subr.mxu0 0.0
          %2150 = vmatpush2.msra.mxu0 0.0
          %2151 = vmatprep.subr.mxu0 0.0
          %2152 = vmatpush2.msra.mxu0 0.0
          %2153 = vmatprep.subr.mxu0 0.0
          %2154 = vmatpush2.msra.mxu0 0.0
          %2155 = vmatprep.subr.mxu0 0.0
          %2156 = vmatpush2.msra.mxu0 0.0
          %2157 = vmatprep.subr.mxu0 0.0
          %2158 = vmatpush2.msra.mxu0 0.0
          %2159 = vmatprep.subr.mxu0 0.0
          %2160 = vmatpush2.msra.mxu0 0.0
          %2161 = vmatprep.subr.mxu0 0.0
          %2162 = vmatpush2.msra.mxu0 0.0
          %2163 = vmatprep.subr.mxu0 0.0
          %2164 = vmatpush2.msra.mxu0 0.0
          %2165 = vmatprep.subr.mxu0 0.0
          %2166 = vmatpush2.msra.mxu0 0.0
          %2167 = vmatprep.subr.mxu0 0.0
          %2168 = vmatpush2.msra.mxu0 0.0
          %2169 = vmatprep.subr.mxu0 0.0
          %2170 = vmatpush2.msra.mxu0 0.0
          %2171 = vmatprep.mubr.f32.mxu0 0.0
          %2172 = vmatmul.mubr.f32.gmra.mxu0 %v2105
          %v2173 = vpop.f32.mrf.mxu0
          %v2174 = vadd.f32 0.0, %v2173
          %v2175 = vpop.f32.mrf.mxu0
          %2176 = vdwg.mxu0
          %v2177 = vadd.f32 %v1881, %v1955
          %v2178 = vadd.f32 %v1882, %v2028
          %v2179 = vadd.f32 %v1883, %v2101
          %v2180 = vadd.f32 %v1884, %v2174
          %2181 = vst.msk [vmem:[#allocation5] sm:$0xff] %vm1431, %v2177
          %2182 = vst.msk [vmem:[#allocation5 + $0x8] sm:$0xff] %vm1431, %v2178
          %2183 = vst.msk [vmem:[#allocation5 + $0x10] sm:$0xff] %vm1431, %v2179
          %2184 = vst.msk [vmem:[#allocation5 + $0x18] sm:$0xff] %vm1431, %v2180
          %2185 = vst.msk [vmem:[#allocation3] sm:$0xff] %vm1852, %v1780
          %2186 = vst.msk [vmem:[#allocation3 + $0x8] sm:$0xff] %vm1852, %v1781
          %2187 = vst.msk [vmem:[#allocation3 + $0x10] sm:$0xff] %vm1852, %v1782
          %2188 = vst.msk [vmem:[#allocation3 + $0x18] sm:$0xff] %vm1852, %v1783
        $region112: #{tpu_custom_call.1} parent=95 // pred_fallthru
          _
        // Predicated region
        $region113: #{tpu_custom_call.1} parent=95 // pred_check
          %p2189 = pneg %p709
        $region114: #{tpu_custom_call.1} parent=95 // pred_check_branch
          %2191 = sbr.rel (%p2189) target = $region116
        $region115: #{tpu_custom_call.1} parent=95 // pred_region
          %v2192 = vld [vmem:[%s626] sm:$0xff]
          %v2193 = vld [vmem:[#allocation4] sm:$0xff]
          %v2194 = vld [vmem:[#allocation4 + $0x8] sm:$0xff]
          %v2195 = vld [vmem:[#allocation4 + $0x10] sm:$0xff]
          %v2196 = vld [vmem:[#allocation4 + $0x18] sm:$0xff]
          %v2197 = vrcp.pop %v2193
          %v2198 = vrcp.pop %v2194
          %v2199 = vrcp.pop %v2195
          %v2200 = vrcp.pop %v2196
          %v2201 = vld [vmem:[#allocation5] sm:$0xff]
          %v2202 = vld [vmem:[#allocation5 + $0x8] sm:$0xff]
          %v2203 = vld [vmem:[#allocation5 + $0x10] sm:$0xff]
          %v2204 = vld [vmem:[#allocation5 + $0x18] sm:$0xff]
          %2206 = vset.pattern.permute.xlu0 0
          %2207 = vperm.xlu0 %2206, %v2197
          %v2208 = vpop.permute.xlu0 %2207
          %2211 = vset.pattern.permute.xlu0 0
          %2212 = vperm.xlu0 %2211, %v2198
          %v2213 = vpop.permute.xlu0 %2212
          %2216 = vset.pattern.permute.xlu0 0
          %2217 = vperm.xlu0 %2216, %v2199
          %v2218 = vpop.permute.xlu0 %2217
          %2221 = vset.pattern.permute.xlu0 0
          %2222 = vperm.xlu0 %2221, %v2200
          %v2223 = vpop.permute.xlu0 %2222
          %v2225 = vmul.f32 %v2201, %v2208
          %v2226 = vmul.f32 %v2202, %v2213
          %v2227 = vmul.f32 %v2203, %v2218
          %v2228 = vmul.f32 %v2204, %v2223
          %v2229 = vcombine.low %v2225, %v2227
          %v2230 = vcombine.high %v2225, %v2227
          %v2232 = vunpack.c.l.s4 1983009808
          %v2233 = vunpack.c.0.s8 %v2232
          %v2234 = vlaneseq
          %v2235 = vshrl.u32 %v2234, 7
          %v2236 = vsub.s32 %v2233, %v2235
          %v2237 = vrot.slane %v2229, %v2236
          %v2239 = vunpack.c.l.s4 1983009808
          %v2240 = vunpack.c.0.s8 %v2239
          %v2241 = vlaneseq
          %v2242 = vshrl.u32 %v2241, 7
          %v2243 = vsub.s32 %v2240, %v2242
          %v2244 = vrot.slane %v2230, %v2243
          %v2245 = vcombine.low %v2226, %v2228
          %v2246 = vcombine.high %v2226, %v2228
          %v2248 = vunpack.c.l.s4 1983009808
          %v2249 = vunpack.c.0.s8 %v2248
          %v2250 = vlaneseq
          %v2251 = vshrl.u32 %v2250, 7
          %v2252 = vsub.s32 %v2249, %v2251
          %v2253 = vrot.slane %v2245, %v2252
          %v2255 = vunpack.c.l.s4 1983009808
          %v2256 = vunpack.c.0.s8 %v2255
          %v2257 = vlaneseq
          %v2258 = vshrl.u32 %v2257, 7
          %v2259 = vsub.s32 %v2256, %v2258
          %v2260 = vrot.slane %v2246, %v2259
          %v2261 = vcombine.low %v2237, %v2253
          %v2262 = vcombine.high %v2237, %v2253
          %v2264 = vunpack.c.l.s4 1934713408
          %v2265 = vunpack.c.0.s8 %v2264
          %v2266 = vlaneseq
          %v2267 = vshrl.u32 %v2266, 7
          %v2268 = vsub.s32 %v2265, %v2267
          %v2269 = vrot.slane %v2261, %v2268
          %v2271 = vunpack.c.l.s4 1934713408
          %v2272 = vunpack.c.0.s8 %v2271
          %v2273 = vlaneseq
          %v2274 = vshrl.u32 %v2273, 7
          %v2275 = vsub.s32 %v2272, %v2274
          %v2276 = vrot.slane %v2262, %v2275
          %v2277 = vcombine.low %v2244, %v2260
          %v2278 = vcombine.high %v2244, %v2260
          %v2280 = vunpack.c.l.s4 1934713408
          %v2281 = vunpack.c.0.s8 %v2280
          %v2282 = vlaneseq
          %v2283 = vshrl.u32 %v2282, 7
          %v2284 = vsub.s32 %v2281, %v2283
          %v2285 = vrot.slane %v2277, %v2284
          %v2287 = vunpack.c.l.s4 1934713408
          %v2288 = vunpack.c.0.s8 %v2287
          %v2289 = vlaneseq
          %v2290 = vshrl.u32 %v2289, 7
          %v2291 = vsub.s32 %v2288, %v2290
          %v2292 = vrot.slane %v2278, %v2291
          %v2293 = vcombine.high %v2269, 0.0
          %v2294 = vcombine.high %v2276, 0.0
          %v2295 = vcombine.high %v2285, 0.0
          %v2296 = vcombine.high %v2292, 0.0
          %v2297 = vcombine.low %v2269, %v2276
          %v2299 = vunpack.c.l.s4 1983009808
          %v2300 = vunpack.c.0.s8 %v2299
          %v2301 = vlaneseq
          %v2302 = vshrl.u32 %v2301, 7
          %v2303 = vsub.s32 %v2300, %v2302
          %v2304 = vrot.slane %v2297, %v2303
          %v2305 = vcombine.low %v2293, %v2294
          %v2307 = vunpack.c.l.s4 1983009808
          %v2308 = vunpack.c.0.s8 %v2307
          %v2309 = vlaneseq
          %v2310 = vshrl.u32 %v2309, 7
          %v2311 = vsub.s32 %v2308, %v2310
          %v2312 = vrot.slane %v2305, %v2311
          %v2313 = vcombine.low %v2285, %v2292
          %v2315 = vunpack.c.l.s4 1983009808
          %v2316 = vunpack.c.0.s8 %v2315
          %v2317 = vlaneseq
          %v2318 = vshrl.u32 %v2317, 7
          %v2319 = vsub.s32 %v2316, %v2318
          %v2320 = vrot.slane %v2313, %v2319
          %v2321 = vcombine.low %v2295, %v2296
          %v2323 = vunpack.c.l.s4 1983009808
          %v2324 = vunpack.c.0.s8 %v2323
          %v2325 = vlaneseq
          %v2326 = vshrl.u32 %v2325, 7
          %v2327 = vsub.s32 %v2324, %v2326
          %v2328 = vrot.slane %v2321, %v2327
          %v2329 = vcombine.low %v2304, %v2312
          %v2330 = vcombine.high %v2304, %v2312
          %v2332 = vunpack.c.l.s4 1934713408
          %v2333 = vunpack.c.0.s8 %v2332
          %v2334 = vlaneseq
          %v2335 = vshrl.u32 %v2334, 7
          %v2336 = vsub.s32 %v2333, %v2335
          %v2337 = vrot.slane %v2329, %v2336
          %v2339 = vunpack.c.l.s4 1934713408
          %v2340 = vunpack.c.0.s8 %v2339
          %v2341 = vlaneseq
          %v2342 = vshrl.u32 %v2341, 7
          %v2343 = vsub.s32 %v2340, %v2342
          %v2344 = vrot.slane %v2330, %v2343
          %v2345 = vcombine.low %v2320, %v2328
          %v2346 = vcombine.high %v2320, %v2328
          %v2348 = vunpack.c.l.s4 1934713408
          %v2349 = vunpack.c.0.s8 %v2348
          %v2350 = vlaneseq
          %v2351 = vshrl.u32 %v2350, 7
          %v2352 = vsub.s32 %v2349, %v2351
          %v2353 = vrot.slane %v2345, %v2352
          %v2355 = vunpack.c.l.s4 1934713408
          %v2356 = vunpack.c.0.s8 %v2355
          %v2357 = vlaneseq
          %v2358 = vshrl.u32 %v2357, 7
          %v2359 = vsub.s32 %v2356, %v2358
          %v2360 = vrot.slane %v2346, %v2359
          %v2361 = vcombine.low %v2337, %v2353
          %v2362 = vcombine.high %v2337, %v2353
          %v2363 = vcombine.low %v2344, %v2360
          %v2364 = vcombine.high %v2344, %v2360
          %2366 = vrot.lane.b32.xlu0 %v2362, 8
          %v2367 = vpop.permute.xlu0 %2366
          %2370 = vrot.lane.b32.xlu0 %v2363, 16
          %v2371 = vpop.permute.xlu0 %2370
          %2374 = vrot.lane.b32.xlu0 %v2364, 24
          %v2375 = vpop.permute.xlu0 %2374
          %vm2377 = vcmask 64512
          %v2378 = vsel %vm2377, %v2361, %v2367
          %vm2379 = vcmask 130048
          %v2380 = vsel %vm2379, %v2378, %v2371
          %vm2381 = vcmask 195584
          %v2382 = vsel %vm2381, %v2380, %v2375
          %v2383 = vld [vmem:[%s9] sm:$0xff]
          %v2384 = vld [vmem:[%s9 + $0x8] sm:$0xff]
          %v2385 = vld [vmem:[%s9 + $0x10] sm:$0xff]
          %v2386 = vld [vmem:[%s9 + $0x18] sm:$0xff]
          %v2387 = vld [vmem:[%s10] sm:$0x1]
          %v2389 = vlaneseq
          %v2390 = vshrl.u32 %v2389, 7
          %v2391 = vsub.s32 0, %v2390
          %v2392 = vrot.slane %v2387, %v2391
          %vm2394 = vcmask 261120
          %v2396 = vsel %vm2394, %v2382, 0
          %2398 = vmatprep.subr.mxu0 0.0
          %2399 = vmatpush1.msra.mxu0 0.0
          %2400 = vmatprep.subr.mxu0 0.0
          %2401 = vmatpush1.msra.mxu0 0.0
          %2402 = vmatprep.subr.mxu0 0.0
          %2403 = vmatpush1.msra.mxu0 0.0
          %2404 = vmatprep.subr.mxu0 0.0
          %2405 = vmatpush1.msra.mxu0 0.0
          %2406 = vmatprep.subr.mxu0 0.0
          %2407 = vmatpush1.msra.mxu0 0.0
          %2408 = vmatprep.subr.mxu0 0.0
          %2409 = vmatpush1.msra.mxu0 0.0
          %2410 = vmatprep.subr.mxu0 0.0
          %2411 = vmatpush1.msra.mxu0 0.0
          %2412 = vmatprep.subr.mxu0 0.0
          %2413 = vmatpush1.msra.mxu0 0.0
          %2414 = vmatprep.subr.mxu0 0.0
          %2415 = vmatpush1.msra.mxu0 0.0
          %2416 = vmatprep.subr.mxu0 0.0
          %2417 = vmatpush1.msra.mxu0 0.0
          %2418 = vmatprep.subr.mxu0 0.0
          %2419 = vmatpush1.msra.mxu0 0.0
          %2420 = vmatprep.subr.mxu0 0.0
          %2421 = vmatpush1.msra.mxu0 0.0
          %2422 = vmatprep.subr.mxu0 0.0
          %2423 = vmatpush1.msra.mxu0 %v2386
          %2424 = vmatprep.subr.mxu0 0.0
          %2425 = vmatpush1.msra.mxu0 %v2385
          %2426 = vmatprep.subr.mxu0 0.0
          %2427 = vmatpush1.msra.mxu0 %v2384
          %2428 = vmatprep.subr.mxu0 0.0
          %2429 = vmatpush1.msra.mxu0 %v2383
          %2430 = vmatprep.subr.mxu0 0.0
          %2431 = vmatpush2.msra.mxu0 0.0
          %2432 = vmatprep.subr.mxu0 0.0
          %2433 = vmatpush2.msra.mxu0 0.0
          %2434 = vmatprep.subr.mxu0 0.0
          %2435 = vmatpush2.msra.mxu0 0.0
          %2436 = vmatprep.subr.mxu0 0.0
          %2437 = vmatpush2.msra.mxu0 0.0
          %2438 = vmatprep.subr.mxu0 0.0
          %2439 = vmatpush2.msra.mxu0 0.0
          %2440 = vmatprep.subr.mxu0 0.0
          %2441 = vmatpush2.msra.mxu0 0.0
          %2442 = vmatprep.subr.mxu0 0.0
          %2443 = vmatpush2.msra.mxu0 0.0
          %2444 = vmatprep.subr.mxu0 0.0
          %2445 = vmatpush2.msra.mxu0 0.0
          %2446 = vmatprep.subr.mxu0 0.0
          %2447 = vmatpush2.msra.mxu0 0.0
          %2448 = vmatprep.subr.mxu0 0.0
          %2449 = vmatpush2.msra.mxu0 0.0
          %2450 = vmatprep.subr.mxu0 0.0
          %2451 = vmatpush2.msra.mxu0 0.0
          %2452 = vmatprep.subr.mxu0 0.0
          %2453 = vmatpush2.msra.mxu0 0.0
          %2454 = vmatprep.subr.mxu0 0.0
          %2455 = vmatpush2.msra.mxu0 0.0
          %2456 = vmatprep.subr.mxu0 0.0
          %2457 = vmatpush2.msra.mxu0 0.0
          %2458 = vmatprep.subr.mxu0 0.0
          %2459 = vmatpush2.msra.mxu0 0.0
          %2460 = vmatprep.subr.mxu0 0.0
          %2461 = vmatpush2.msra.mxu0 0.0
          %2462 = vmatprep.mubr.f32.mxu0 0.0
          %2463 = vmatmul.mubr.f32.gmra.mxu0 %v2396
          %v2464 = vpop.f32.mrf.mxu0
          %v2465 = vadd.f32 %v2392, %v2464
          %v2466 = vpop.f32.mrf.mxu0
          %2467 = vdwg.mxu0
          %v2468 = vadd.f32 %v2192, %v2465
          %v2469 = vld [vmem:[%s11] sm:$0x1]
          %v2470 = vld [vmem:[%s12] sm:$0x1]
          %v2471 = vsel %vm2394, %v2468, 0.0
          %2472 = vadd.xlane.f32.xlu0 %v2471
          %v2473 = vpop.xlane.xlu0 %2472
          %v2474 = vrcp.pop 32.0
          %v2475 = vmul.f32 %v2473, %v2474
          %v2476 = vsub.f32 %v2468, %v2475
          %v2477 = vmul.f32 %v2476, %v2476
          %v2478 = vsel %vm2394, %v2477, 0.0
          %2479 = vadd.xlane.f32.xlu0 %v2478
          %v2480 = vpop.xlane.xlu0 %2479
          %v2481 = vmul.f32 %v2480, %v2474
          %v2482 = vadd.f32 %v2481, 1e-05
          %v2483 = vrsqrt.pop %v2482
          %v2484 = vmul.f32 %v2476, %v2483
          %v2486 = vlaneseq
          %v2487 = vshrl.u32 %v2486, 7
          %v2488 = vsub.s32 0, %v2487
          %v2489 = vrot.slane %v2469, %v2488
          %v2491 = vmul.f32 %v2484, %v2489
          %v2493 = vlaneseq
          %v2494 = vshrl.u32 %v2493, 7
          %v2495 = vsub.s32 0, %v2494
          %v2496 = vrot.slane %v2470, %v2495
          %v2498 = vadd.f32 %v2491, %v2496
          %v2499 = vld [vmem:[%s13] sm:$0xff]
          %v2500 = vld [vmem:[%s13 + $0x8] sm:$0xff]
          %v2501 = vld [vmem:[%s13 + $0x10] sm:$0xff]
          %v2502 = vld [vmem:[%s13 + $0x18] sm:$0xff]
          %v2503 = vld [vmem:[%s14] sm:$0x1]
          %v2505 = vlaneseq
          %v2506 = vshrl.u32 %v2505, 7
          %v2507 = vsub.s32 0, %v2506
          %v2508 = vrot.slane %v2503, %v2507
          %v2511 = vsel %vm2394, %v2498, 0
          %2513 = vmatprep.subr.mxu0 0.0
          %2514 = vmatpush1.msra.mxu0 0.0
          %2515 = vmatprep.subr.mxu0 0.0
          %2516 = vmatpush1.msra.mxu0 0.0
          %2517 = vmatprep.subr.mxu0 0.0
          %2518 = vmatpush1.msra.mxu0 0.0
          %2519 = vmatprep.subr.mxu0 0.0
          %2520 = vmatpush1.msra.mxu0 0.0
          %2521 = vmatprep.subr.mxu0 0.0
          %2522 = vmatpush1.msra.mxu0 0.0
          %2523 = vmatprep.subr.mxu0 0.0
          %2524 = vmatpush1.msra.mxu0 0.0
          %2525 = vmatprep.subr.mxu0 0.0
          %2526 = vmatpush1.msra.mxu0 0.0
          %2527 = vmatprep.subr.mxu0 0.0
          %2528 = vmatpush1.msra.mxu0 0.0
          %2529 = vmatprep.subr.mxu0 0.0
          %2530 = vmatpush1.msra.mxu0 0.0
          %2531 = vmatprep.subr.mxu0 0.0
          %2532 = vmatpush1.msra.mxu0 0.0
          %2533 = vmatprep.subr.mxu0 0.0
          %2534 = vmatpush1.msra.mxu0 0.0
          %2535 = vmatprep.subr.mxu0 0.0
          %2536 = vmatpush1.msra.mxu0 0.0
          %2537 = vmatprep.subr.mxu0 0.0
          %2538 = vmatpush1.msra.mxu0 %v2502
          %2539 = vmatprep.subr.mxu0 0.0
          %2540 = vmatpush1.msra.mxu0 %v2501
          %2541 = vmatprep.subr.mxu0 0.0
          %2542 = vmatpush1.msra.mxu0 %v2500
          %2543 = vmatprep.subr.mxu0 0.0
          %2544 = vmatpush1.msra.mxu0 %v2499
          %2545 = vmatprep.subr.mxu0 0.0
          %2546 = vmatpush2.msra.mxu0 0.0
          %2547 = vmatprep.subr.mxu0 0.0
          %2548 = vmatpush2.msra.mxu0 0.0
          %2549 = vmatprep.subr.mxu0 0.0
          %2550 = vmatpush2.msra.mxu0 0.0
          %2551 = vmatprep.subr.mxu0 0.0
          %2552 = vmatpush2.msra.mxu0 0.0
          %2553 = vmatprep.subr.mxu0 0.0
          %2554 = vmatpush2.msra.mxu0 0.0
          %2555 = vmatprep.subr.mxu0 0.0
          %2556 = vmatpush2.msra.mxu0 0.0
          %2557 = vmatprep.subr.mxu0 0.0
          %2558 = vmatpush2.msra.mxu0 0.0
          %2559 = vmatprep.subr.mxu0 0.0
          %2560 = vmatpush2.msra.mxu0 0.0
          %2561 = vmatprep.subr.mxu0 0.0
          %2562 = vmatpush2.msra.mxu0 0.0
          %2563 = vmatprep.subr.mxu0 0.0
          %2564 = vmatpush2.msra.mxu0 0.0
          %2565 = vmatprep.subr.mxu0 0.0
          %2566 = vmatpush2.msra.mxu0 0.0
          %2567 = vmatprep.subr.mxu0 0.0
          %2568 = vmatpush2.msra.mxu0 0.0
          %2569 = vmatprep.subr.mxu0 0.0
          %2570 = vmatpush2.msra.mxu0 0.0
          %2571 = vmatprep.subr.mxu0 0.0
          %2572 = vmatpush2.msra.mxu0 0.0
          %2573 = vmatprep.subr.mxu0 0.0
          %2574 = vmatpush2.msra.mxu0 0.0
          %2575 = vmatprep.subr.mxu0 0.0
          %2576 = vmatpush2.msra.mxu0 0.0
          %2577 = vmatprep.mubr.f32.mxu0 0.0
          %2578 = vmatmul.mubr.f32.gmra.mxu0 %v2511
          %v2579 = vpop.f32.mrf.mxu0
          %v2580 = vadd.f32 %v2508, %v2579
          %v2581 = vpop.f32.mrf.mxu0
          %2582 = vdwg.mxu0
          %v2583 = vmul.f32 %v2580, 0.5
          %v2584 = vmul.f32 %v2580, 0.70710677
          %v2585 = verf.f32.pop %v2584
          %v2586 = vadd.f32 %v2585, 1.0
          %v2587 = vmul.f32 %v2583, %v2586
          %v2588 = vld [vmem:[%s15] sm:$0xff]
          %v2589 = vld [vmem:[%s15 + $0x8] sm:$0xff]
          %v2590 = vld [vmem:[%s15 + $0x10] sm:$0xff]
          %v2591 = vld [vmem:[%s15 + $0x18] sm:$0xff]
          %v2592 = vld [vmem:[%s15 + $0x20] sm:$0xff]
          %v2593 = vld [vmem:[%s15 + $0x28] sm:$0xff]
          %v2594 = vld [vmem:[%s15 + $0x30] sm:$0xff]
          %v2595 = vld [vmem:[%s15 + $0x38] sm:$0xff]
          %v2596 = vld [vmem:[%s15 + $0x40] sm:$0xff]
          %v2597 = vld [vmem:[%s15 + $0x48] sm:$0xff]
          %v2598 = vld [vmem:[%s15 + $0x50] sm:$0xff]
          %v2599 = vld [vmem:[%s15 + $0x58] sm:$0xff]
          %v2600 = vld [vmem:[%s15 + $0x60] sm:$0xff]
          %v2601 = vld [vmem:[%s15 + $0x68] sm:$0xff]
          %v2602 = vld [vmem:[%s15 + $0x70] sm:$0xff]
          %v2603 = vld [vmem:[%s15 + $0x78] sm:$0xff]
          %v2604 = vld [vmem:[%s16] sm:$0x1]
          %v2606 = vlaneseq
          %v2607 = vshrl.u32 %v2606, 7
          %v2608 = vsub.s32 0, %v2607
          %v2609 = vrot.slane %v2604, %v2608
          %2611 = vmatprep.subr.mxu0 0.0
          %2612 = vmatpush1.msra.mxu0 %v2603
          %2613 = vmatprep.subr.mxu0 0.0
          %2614 = vmatpush1.msra.mxu0 %v2602
          %2615 = vmatprep.subr.mxu0 0.0
          %2616 = vmatpush1.msra.mxu0 %v2601
          %2617 = vmatprep.subr.mxu0 0.0
          %2618 = vmatpush1.msra.mxu0 %v2600
          %2619 = vmatprep.subr.mxu0 0.0
          %2620 = vmatpush1.msra.mxu0 %v2599
          %2621 = vmatprep.subr.mxu0 0.0
          %2622 = vmatpush1.msra.mxu0 %v2598
          %2623 = vmatprep.subr.mxu0 0.0
          %2624 = vmatpush1.msra.mxu0 %v2597
          %2625 = vmatprep.subr.mxu0 0.0
          %2626 = vmatpush1.msra.mxu0 %v2596
          %2627 = vmatprep.subr.mxu0 0.0
          %2628 = vmatpush1.msra.mxu0 %v2595
          %2629 = vmatprep.subr.mxu0 0.0
          %2630 = vmatpush1.msra.mxu0 %v2594
          %2631 = vmatprep.subr.mxu0 0.0
          %2632 = vmatpush1.msra.mxu0 %v2593
          %2633 = vmatprep.subr.mxu0 0.0
          %2634 = vmatpush1.msra.mxu0 %v2592
          %2635 = vmatprep.subr.mxu0 0.0
          %2636 = vmatpush1.msra.mxu0 %v2591
          %2637 = vmatprep.subr.mxu0 0.0
          %2638 = vmatpush1.msra.mxu0 %v2590
          %2639 = vmatprep.subr.mxu0 0.0
          %2640 = vmatpush1.msra.mxu0 %v2589
          %2641 = vmatprep.subr.mxu0 0.0
          %2642 = vmatpush1.msra.mxu0 %v2588
          %2643 = vmatprep.subr.mxu0 0.0
          %2644 = vmatpush2.msra.mxu0 0.0
          %2645 = vmatprep.subr.mxu0 0.0
          %2646 = vmatpush2.msra.mxu0 0.0
          %2647 = vmatprep.subr.mxu0 0.0
          %2648 = vmatpush2.msra.mxu0 0.0
          %2649 = vmatprep.subr.mxu0 0.0
          %2650 = vmatpush2.msra.mxu0 0.0
          %2651 = vmatprep.subr.mxu0 0.0
          %2652 = vmatpush2.msra.mxu0 0.0
          %2653 = vmatprep.subr.mxu0 0.0
          %2654 = vmatpush2.msra.mxu0 0.0
          %2655 = vmatprep.subr.mxu0 0.0
          %2656 = vmatpush2.msra.mxu0 0.0
          %2657 = vmatprep.subr.mxu0 0.0
          %2658 = vmatpush2.msra.mxu0 0.0
          %2659 = vmatprep.subr.mxu0 0.0
          %2660 = vmatpush2.msra.mxu0 0.0
          %2661 = vmatprep.subr.mxu0 0.0
          %2662 = vmatpush2.msra.mxu0 0.0
          %2663 = vmatprep.subr.mxu0 0.0
          %2664 = vmatpush2.msra.mxu0 0.0
          %2665 = vmatprep.subr.mxu0 0.0
          %2666 = vmatpush2.msra.mxu0 0.0
          %2667 = vmatprep.subr.mxu0 0.0
          %2668 = vmatpush2.msra.mxu0 0.0
          %2669 = vmatprep.subr.mxu0 0.0
          %2670 = vmatpush2.msra.mxu0 0.0
          %2671 = vmatprep.subr.mxu0 0.0
          %2672 = vmatpush2.msra.mxu0 0.0
          %2673 = vmatprep.subr.mxu0 0.0
          %2674 = vmatpush2.msra.mxu0 0.0
          %2675 = vmatprep.mubr.f32.mxu0 0.0
          %2676 = vmatmul.mubr.f32.gmra.mxu0 %v2587
          %v2677 = vpop.f32.mrf.mxu0
          %v2678 = vadd.f32 %v2609, %v2677
          %v2679 = vpop.f32.mrf.mxu0
          %2680 = vdwg.mxu0
          %v2681 = vadd.f32 %v2498, %v2678
          %v2682 = vld [vmem:[%s17] sm:$0x1]
          %v2683 = vld [vmem:[%s18] sm:$0x1]
          %v2684 = vsel %vm2394, %v2681, 0.0
          %2685 = vadd.xlane.f32.xlu0 %v2684
          %v2686 = vpop.xlane.xlu0 %2685
          %v2687 = vmul.f32 %v2686, %v2474
          %v2688 = vsub.f32 %v2681, %v2687
          %v2689 = vmul.f32 %v2688, %v2688
          %v2690 = vsel %vm2394, %v2689, 0.0
          %2691 = vadd.xlane.f32.xlu0 %v2690
          %v2692 = vpop.xlane.xlu0 %2691
          %v2693 = vmul.f32 %v2692, %v2474
          %v2694 = vadd.f32 %v2693, 1e-05
          %v2695 = vrsqrt.pop %v2694
          %v2696 = vmul.f32 %v2688, %v2695
          %v2698 = vlaneseq
          %v2699 = vshrl.u32 %v2698, 7
          %v2700 = vsub.s32 0, %v2699
          %v2701 = vrot.slane %v2682, %v2700
          %v2703 = vmul.f32 %v2696, %v2701
          %v2705 = vlaneseq
          %v2706 = vshrl.u32 %v2705, 7
          %v2707 = vsub.s32 0, %v2706
          %v2708 = vrot.slane %v2683, %v2707
          %v2710 = vadd.f32 %v2703, %v2708
          %2711 = vst.msk [vmem:[%s700] sm:$0xff] %vm2394, %v2710
        $region116: #{tpu_custom_call.1} parent=95 // pred_fallthru
          _
        %s2712 = sand.u32 %s488, 1
        %s2713 = scalar_lea.sflag [#allocation8], %s2712
        %s2714 = sand.u32 %s488, 1
        %s2715 = smul.addr %s2714, 8
        %s2716 = scalar_lea.vmem [#allocation11], %s2715
        // Predicated region
        $region117: #{tpu_custom_call.1} parent=95 // pred_check
          %p2717 = pneg %p498
        $region118: #{tpu_custom_call.1} parent=95 // pred_check_branch
          %2719 = sbr.rel (%p2717) target = $region120
        $region119: #{tpu_custom_call.1} parent=95 // pred_region
          %s2721 = ssub.s32 128, 128
          %2722 = vsyncadd %s2713, %s2721
          %s2723 = sadd.s32 %s45, %s44
          %s2724 = smul.addr %s2723, 128
          %s2725 = scalar_lea.hbm %s19, %s2724
          %s2727 = sshll.u32 %s2716, 4
          %s2728 = int_to_ptr.vmem [resolvable:$true] %s2727
          %2730 = dma.vmem_to_hbm [thread:$0]  %s2728, 128, %s2725, %s2713
        $region120: #{tpu_custom_call.1} parent=95 // pred_fallthru
          _
      $region96: #{tpu_custom_call.1} parent=5 // pred_fallthru
        _
      %p2731 = scmp.le.s32.totalorder 2, %s34
      // Predicated region
      $region121: #{tpu_custom_call.1} parent=5 // pred_check
        %p2732 = pneg %p2731
      $region122: #{tpu_custom_call.1} parent=5 // pred_check_branch
        %2734 = sbr.rel (%p2732) target = $region124
      $region123: #{tpu_custom_call.1} parent=5 // pred_region
        %s2735 = ssub.s32 %s34, 2
        // Predicated region
        $region125: #{tpu_custom_call.1} parent=123 // pred_check
          %p2736 = pneg %p504
        $region126: #{tpu_custom_call.1} parent=123 // pred_check_branch
          %2738 = sbr.rel (%p2736) target = $region128
        $region127: #{tpu_custom_call.1} parent=123 // pred_region
          %s2739 = sand.u32 %s489, 1
          %s2740 = scalar_lea.sflag [#allocation8], %s2739
          %s2741 = sand.u32 %s489, 1
          %s2742 = smul.addr %s2741, 8
          %s2743 = scalar_lea.vmem [#allocation11], %s2742
          %2744 = dma.done %s2740, 128
        $region128: #{tpu_custom_call.1} parent=123 // pred_fallthru
          _
      $region124: #{tpu_custom_call.1} parent=5 // pred_fallthru
        _
    $region6: #{tpu_custom_call.1} parent=1 // loop_footer
      %s38 = sadd.s32 1, %s34
    $region7: #{tpu_custom_call.1} parent=1 // loop_footer_branch
      %33 = sbr.rel target = $region3
    $region8: #{tpu_custom_call.1} parent=1 // loop_exit
      _
    %2745 = vsyncpa [#allocation7], 1
    %s2746 = scalar_lea.sflag [#allocation7], 1
    %2747 = vsyncpa %s2746, 1
    %2748 = vsyncpa [#allocation10], 1
    %s2749 = scalar_lea.sflag [#allocation10], 1
    %2750 = vsyncpa %s2749, 1
    %2751 = vsyncpa [#allocation8], 1
    %s2752 = scalar_lea.sflag [#allocation8], 1
    %2753 = vsyncpa %s2752, 1

</llo_original>
